<compile_context>
chip_gen: v7x
topology: tpu7x:2x2x1
jax: 0.10.0
libtpu: 0.0.40
codegen_flags: <defaults>
</compile_context>

<pallas_src>
import functools

import jax
import jax.numpy as jnp
from jax.experimental import pallas as pl
from jax.experimental.pallas import tpu as pltpu


def _round_up(v, m):
    return (v + m - 1) // m * m


def fused_conv_stack_kernel(x_ref, w_ref, mask_ref, o_ref, act_ref, taps_ref,
                            *, wp, guard, n_layers):
    """All conv layers + bias + residual + ReLU for one batch element.

    x_ref    : (1, C, Sa)  zero-padded, flattened NCHW input (lane-dense).
    w_ref    : (L, C, K)   im2col-packed weights, bias folded at column 9*C.
    mask_ref : (1, Sa)     1.0 at interior (non-halo, non-lane-pad) positions.
    o_ref    : (1, C, Sa)  output in the same padded-flat layout.
    act_ref  : VMEM (C, Sa + 2*guard) f32; image lives at cols [guard, guard+Sa).
    taps_ref : VMEM (K, Sa) f32 im2col RHS for the per-layer MXU dot.
    """
    C = x_ref.shape[1]
    Sa = x_ref.shape[2]
    K = w_ref.shape[2]

    # Constant K-tail: row 9*C is the all-ones bias row, rows 9*C+1..K-1 are 0.
    tail_rows = K - 9 * C
    row_id = jax.lax.broadcasted_iota(jnp.int32, (tail_rows, Sa), 0)
    taps_ref[pl.ds(9 * C, tail_rows), :] = jnp.where(
        row_id == 0, 1.0, 0.0).astype(jnp.float32)

    # Place this batch element's padded image into the activation buffer.
    act_ref[:, pl.ds(guard, Sa)] = x_ref[0].astype(jnp.float32)

    interior = jnp.broadcast_to(mask_ref[...] > 0.5, (C, Sa))   # hoisted once

    for layer in range(n_layers):
        # Build the 9 shifted taps: contiguous (C, Sa) lane-offset reads into
        # sublane-aligned 16-row blocks of the (K, Sa) RHS.
        for kh in range(3):
            for kw in range(3):
                k = kh * 3 + kw
                d = (kh - 1) * wp + (kw - 1)
                taps_ref[pl.ds(k * C, C), :] = act_ref[:, pl.ds(guard + d, Sa)]

        out = jnp.dot(w_ref[layer], taps_ref[...],
                      preferred_element_type=jnp.float32)        # (C, Sa)
        out = jnp.where(interior, out, 0.0)                      # re-zero halo

        if layer == n_layers - 1:
            res = jnp.maximum(out + x_ref[0].astype(jnp.float32), 0.0)
            o_ref[...] = res[None].astype(o_ref.dtype)
        else:
            act_ref[:, pl.ds(guard, Sa)] = out


def pack_params(params):
    """OIHW weights + bias -> (L, Cout, K), K = round_up(9*Cin + 1, 8).

    Column ordering matches the kernel's tap layout: k*Cin + cin with
    k = kh*3 + kw; column 9*Cin holds the bias; remaining columns are zero.
    """
    w_list = []
    for w_oihw, b in params:
        cout, cin, kh, kw = w_oihw.shape
        k_taps = kh * kw * cin
        k_pad = _round_up(k_taps + 1, 8)
        w_k = jnp.transpose(w_oihw, (0, 2, 3, 1)).reshape(cout, k_taps)
        w_k = jnp.concatenate(
            [w_k, b.reshape(cout, 1),
             jnp.zeros((cout, k_pad - k_taps - 1), w_k.dtype)], axis=1)
        w_list.append(w_k)
    return jnp.stack(w_list, 0)


@jax.jit
def model_forward(x_nchw, w_packed):
    """Reproduces Model.forward: 5 convs, residual add with input, ReLU."""
    N, C, H, W = x_nchw.shape
    L, _, K = w_packed.shape
    Hp, Wp = H + 2, W + 2
    Sp = Hp * Wp
    Sa = _round_up(Sp, 128)          # lane-dense flattened padded-spatial size
    guard = Wp + 1                   # max |tap shift|

    # NCHW -> zero-padded, flattened, lane-padded (N, C, Sa).  No transposes.
    x_pad = jnp.pad(x_nchw, ((0, 0), (0, 0), (1, 1), (1, 1)))
    x_flat = jnp.pad(x_pad.reshape(N, C, Sp), ((0, 0), (0, 0), (0, Sa - Sp)))

    # Interior mask in padded-flat coordinates (1.0 = real output pixel).
    pos = jnp.arange(Sa)
    row = pos // Wp
    col = pos % Wp
    mask = ((pos < Sp) & (row >= 1) & (row <= H) & (col >= 1) & (col <= W))
    mask = mask.astype(jnp.float32).reshape(1, Sa)

    kernel = functools.partial(fused_conv_stack_kernel,
                               wp=Wp, guard=guard, n_layers=L)

    flops = 2 * N * L * C * K * Sp
    bytes_accessed = 4 * (2 * N * C * Sa + w_packed.size + Sa)

    out_flat = pl.pallas_call(
        kernel,
        out_shape=jax.ShapeDtypeStruct((N, C, Sa), x_nchw.dtype),
        grid_spec=pltpu.PrefetchScalarGridSpec(
            num_scalar_prefetch=0,
            grid=(N,),
            in_specs=[
                pl.BlockSpec((1, C, Sa), lambda n: (n, 0, 0)),
                pl.BlockSpec((L, C, K), lambda n: (0, 0, 0)),
                pl.BlockSpec((1, Sa), lambda n: (0, 0)),
            ],
            out_specs=pl.BlockSpec((1, C, Sa), lambda n: (n, 0, 0)),
            scratch_shapes=[
                pltpu.VMEM((C, Sa + 2 * guard), jnp.float32),   # activation
                pltpu.VMEM((K, Sa), jnp.float32),               # im2col RHS
            ],
        ),
        compiler_params=pltpu.CompilerParams(
            dimension_semantics=("parallel",),
            vmem_limit_bytes=32 * 1024 * 1024,
        ),
        cost_estimate=pl.CostEstimate(
            flops=flops, transcendentals=0, bytes_accessed=bytes_accessed),
    )(x_flat, w_packed, mask)

    # Strip lane padding and the 1-pixel halo -> NCHW.
    out = out_flat[:, :, :Sp].reshape(N, C, Hp, Wp)[:, :, 1:H + 1, 1:W + 1]
    return out


def init_conv_params(key, cin, cout, ksize=3):
    """PyTorch-style uniform(-k, k), k = 1/sqrt(fan_in). Weights in OIHW."""
    kw_key, kb_key = jax.random.split(key)
    fan_in = cin * ksize * ksize
    bound = 1.0 / jnp.sqrt(fan_in)
    w = jax.random.uniform(
        kw_key, (cout, cin, ksize, ksize), jnp.float32, -bound, bound)
    b = jax.random.uniform(kb_key, (cout,), jnp.float32, -bound, bound)
    return w, b


def reference_forward(x_nchw, params):
    """Pure-JAX reference using lax conv (correctness sanity check)."""
    h = x_nchw
    for w_oihw, b in params:
        h = jax.lax.conv_general_dilated(
            h, w_oihw, window_strides=(1, 1), padding=((1, 1), (1, 1)),
            dimension_numbers=("NCHW", "OIHW", "NCHW"),
        ) + b[None, :, None, None]
    return jnp.maximum(h + x_nchw, 0.0)


if __name__ == "__main__":
    key = jax.random.PRNGKey(0)
    k_x, *k_layers = jax.random.split(key, 6)

    # Small-shape version of the original (1, 16, 64, 64) input (C must be 16).
    N, C, H, W = 2, 16, 16, 16
    x = jax.random.normal(k_x, (N, C, H, W), jnp.float32)

    params = [init_conv_params(k, C, C) for k in k_layers]
    w_packed = pack_params(params)     # packed once, outside the forward

    out = jax.block_until_ready(model_forward(x, w_packed))
    ref = jax.block_until_ready(reference_forward(x, params))

    assert out.shape == (N, C, H, W)
    max_err = float(jnp.max(jnp.abs(out - ref)))
    assert jnp.allclose(out, ref, atol=1e-3, rtol=1e-3), f"mismatch: {max_err}"

    print("KERNEL_OK")
</pallas_src>

<mosaic_0001>
module attributes {stable_mosaic.version = 11 : i64} {
  func.func @fused_conv_stack_kernel(%arg0: i32, %arg1: memref<1x16x384xf32, #tpu.memory_space<vmem>>, %arg2: memref<5x16x152xf32, #tpu.memory_space<vmem>>, %arg3: memref<1x384xf32, #tpu.memory_space<vmem>>, %arg4: memref<1x16x384xf32, #tpu.memory_space<vmem>>, %arg5: memref<16x422xf32, #tpu.memory_space<vmem>>, %arg6: memref<152x384xf32, #tpu.memory_space<vmem>>) attributes {dimension_semantics = [#tpu.dimension_semantics<parallel>], iteration_bounds = array<i64: 2>, scalar_prefetch = 0 : i64, scratch_operands = 2 : i64, tpu.core_type = #tpu.core_type<tc>, window_params = [{transform_indices = @transform_0, window_bounds = array<i64: 1, 16, 384>}, {pipeline_mode = #tpu.pipeline_mode<synchronous>, transform_indices = @transform_1, window_bounds = array<i64: 5, 16, 152>}, {pipeline_mode = #tpu.pipeline_mode<synchronous>, transform_indices = @transform_2, window_bounds = array<i64: 1, 384>}, {transform_indices = @transform_3, window_bounds = array<i64: 1, 16, 384>}]} {
    %0 = tpu.iota {dimensions = array<i32: 0>} : vector<8x384xi32>
    %c0_i32 = arith.constant 0 : i32
    %1 = vector.broadcast %c0_i32 : i32 to vector<8x384xi32>
    %2 = arith.cmpi eq, %0, %1 : vector<8x384xi32>
    %cst = arith.constant 1.000000e+00 : f32
    %cst_0 = arith.constant 0.000000e+00 : f32
    %3 = vector.broadcast %cst : f32 to vector<8x384xf32>
    %4 = vector.broadcast %cst_0 : f32 to vector<8x384xf32>
    %5 = arith.select %2, %3, %4 : vector<8x384xi1>, vector<8x384xf32>
    %c144 = arith.constant 144 : index
    %c0 = arith.constant 0 : index
    %6 = vector.load %arg6[%c144, %c0] : memref<152x384xf32, #tpu.memory_space<vmem>>, vector<8x384xf32>
    tpu.vector_store %arg6[%c144, %c0], %5 {strides = array<i32>} : memref<152x384xf32, #tpu.memory_space<vmem>>, vector<8x384xf32>,
    %c0_1 = arith.constant 0 : index
    %c0_2 = arith.constant 0 : index
    %c0_3 = arith.constant 0 : index
    %7 = vector.load %arg1[%c0_1, %c0_2, %c0_3] : memref<1x16x384xf32, #tpu.memory_space<vmem>>, vector<1x16x384xf32>
    %8 = vector.shape_cast %7 : vector<1x16x384xf32> to vector<16x384xf32>
    %c0_4 = arith.constant 0 : index
    %c19 = arith.constant 19 : index
    %9 = vector.load %arg5[%c0_4, %c19] : memref<16x422xf32, #tpu.memory_space<vmem>>, vector<16x384xf32>
    tpu.vector_store %arg5[%c0_4, %c19], %8 {strides = array<i32>} : memref<16x422xf32, #tpu.memory_space<vmem>>, vector<16x384xf32>,
    %c0_5 = arith.constant 0 : index
    %c0_6 = arith.constant 0 : index
    %10 = vector.load %arg3[%c0_5, %c0_6] : memref<1x384xf32, #tpu.memory_space<vmem>>, vector<1x384xf32>
    %cst_7 = arith.constant 5.000000e-01 : f32
    %11 = vector.broadcast %cst_7 : f32 to vector<1x384xf32>
    %12 = arith.cmpf ogt, %10, %11 : vector<1x384xf32>
    %13 = vector.shape_cast %12 : vector<1x384xi1> to vector<1x384xi1>
    %14 = vector.broadcast %13 : vector<1x384xi1> to vector<16x384xi1>
    %c0_8 = arith.constant 0 : index
    %c0_9 = arith.constant 0 : index
    %15 = vector.load %arg5[%c0_8, %c0_9] : memref<16x422xf32, #tpu.memory_space<vmem>>, vector<16x384xf32>
    %c0_10 = arith.constant 0 : index
    %c0_11 = arith.constant 0 : index
    %16 = vector.load %arg6[%c0_10, %c0_11] : memref<152x384xf32, #tpu.memory_space<vmem>>, vector<16x384xf32>
    tpu.vector_store %arg6[%c0_10, %c0_11], %15 {strides = array<i32>} : memref<152x384xf32, #tpu.memory_space<vmem>>, vector<16x384xf32>,
    %c0_12 = arith.constant 0 : index
    %c1 = arith.constant 1 : index
    %17 = vector.load %arg5[%c0_12, %c1] : memref<16x422xf32, #tpu.memory_space<vmem>>, vector<16x384xf32>
    %c16 = arith.constant 16 : index
    %c0_13 = arith.constant 0 : index
    %18 = vector.load %arg6[%c16, %c0_13] : memref<152x384xf32, #tpu.memory_space<vmem>>, vector<16x384xf32>
    tpu.vector_store %arg6[%c16, %c0_13], %17 {strides = array<i32>} : memref<152x384xf32, #tpu.memory_space<vmem>>, vector<16x384xf32>,
    %c0_14 = arith.constant 0 : index
    %c2 = arith.constant 2 : index
    %19 = vector.load %arg5[%c0_14, %c2] : memref<16x422xf32, #tpu.memory_space<vmem>>, vector<16x384xf32>
    %c32 = arith.constant 32 : index
    %c0_15 = arith.constant 0 : index
    %20 = vector.load %arg6[%c32, %c0_15] : memref<152x384xf32, #tpu.memory_space<vmem>>, vector<16x384xf32>
    tpu.vector_store %arg6[%c32, %c0_15], %19 {strides = array<i32>} : memref<152x384xf32, #tpu.memory_space<vmem>>, vector<16x384xf32>,
    %c0_16 = arith.constant 0 : index
    %c18 = arith.constant 18 : index
    %21 = vector.load %arg5[%c0_16, %c18] : memref<16x422xf32, #tpu.memory_space<vmem>>, vector<16x384xf32>
    %c48 = arith.constant 48 : index
    %c0_17 = arith.constant 0 : index
    %22 = vector.load %arg6[%c48, %c0_17] : memref<152x384xf32, #tpu.memory_space<vmem>>, vector<16x384xf32>
    tpu.vector_store %arg6[%c48, %c0_17], %21 {strides = array<i32>} : memref<152x384xf32, #tpu.memory_space<vmem>>, vector<16x384xf32>,
    %c0_18 = arith.constant 0 : index
    %c19_19 = arith.constant 19 : index
    %23 = vector.load %arg5[%c0_18, %c19_19] : memref<16x422xf32, #tpu.memory_space<vmem>>, vector<16x384xf32>
    %c64 = arith.constant 64 : index
    %c0_20 = arith.constant 0 : index
    %24 = vector.load %arg6[%c64, %c0_20] : memref<152x384xf32, #tpu.memory_space<vmem>>, vector<16x384xf32>
    tpu.vector_store %arg6[%c64, %c0_20], %23 {strides = array<i32>} : memref<152x384xf32, #tpu.memory_space<vmem>>, vector<16x384xf32>,
    %c0_21 = arith.constant 0 : index
    %c20 = arith.constant 20 : index
    %25 = vector.load %arg5[%c0_21, %c20] : memref<16x422xf32, #tpu.memory_space<vmem>>, vector<16x384xf32>
    %c80 = arith.constant 80 : index
    %c0_22 = arith.constant 0 : index
    %26 = vector.load %arg6[%c80, %c0_22] : memref<152x384xf32, #tpu.memory_space<vmem>>, vector<16x384xf32>
    tpu.vector_store %arg6[%c80, %c0_22], %25 {strides = array<i32>} : memref<152x384xf32, #tpu.memory_space<vmem>>, vector<16x384xf32>,
    %c0_23 = arith.constant 0 : index
    %c36 = arith.constant 36 : index
    %27 = vector.load %arg5[%c0_23, %c36] : memref<16x422xf32, #tpu.memory_space<vmem>>, vector<16x384xf32>
    %c96 = arith.constant 96 : index
    %c0_24 = arith.constant 0 : index
    %28 = vector.load %arg6[%c96, %c0_24] : memref<152x384xf32, #tpu.memory_space<vmem>>, vector<16x384xf32>
    tpu.vector_store %arg6[%c96, %c0_24], %27 {strides = array<i32>} : memref<152x384xf32, #tpu.memory_space<vmem>>, vector<16x384xf32>,
    %c0_25 = arith.constant 0 : index
    %c37 = arith.constant 37 : index
    %29 = vector.load %arg5[%c0_25, %c37] : memref<16x422xf32, #tpu.memory_space<vmem>>, vector<16x384xf32>
    %c112 = arith.constant 112 : index
    %c0_26 = arith.constant 0 : index
    %30 = vector.load %arg6[%c112, %c0_26] : memref<152x384xf32, #tpu.memory_space<vmem>>, vector<16x384xf32>
    tpu.vector_store %arg6[%c112, %c0_26], %29 {strides = array<i32>} : memref<152x384xf32, #tpu.memory_space<vmem>>, vector<16x384xf32>,
    %c0_27 = arith.constant 0 : index
    %c38 = arith.constant 38 : index
    %31 = vector.load %arg5[%c0_27, %c38] : memref<16x422xf32, #tpu.memory_space<vmem>>, vector<16x384xf32>
    %c128 = arith.constant 128 : index
    %c0_28 = arith.constant 0 : index
    %32 = vector.load %arg6[%c128, %c0_28] : memref<152x384xf32, #tpu.memory_space<vmem>>, vector<16x384xf32>
    tpu.vector_store %arg6[%c128, %c0_28], %31 {strides = array<i32>} : memref<152x384xf32, #tpu.memory_space<vmem>>, vector<16x384xf32>,
    %c0_29 = arith.constant 0 : index
    %c0_30 = arith.constant 0 : index
    %c0_31 = arith.constant 0 : index
    %33 = vector.load %arg2[%c0_29, %c0_30, %c0_31] : memref<5x16x152xf32, #tpu.memory_space<vmem>>, vector<1x16x152xf32>
    %34 = vector.shape_cast %33 : vector<1x16x152xf32> to vector<16x152xf32>
    %c0_32 = arith.constant 0 : index
    %c0_33 = arith.constant 0 : index
    %35 = vector.load %arg6[%c0_32, %c0_33] : memref<152x384xf32, #tpu.memory_space<vmem>>, vector<152x384xf32>
    %cst_34 = arith.constant dense<0.000000e+00> : vector<16x384xf32>
    %36 = tpu.matmul %34, %35, %cst_34 {dimension_numbers = #tpu.dot_dimension_numbers<[1], [0], [0], [1], [0, 0, 1, 1], [], []>} : vector<16x152xf32>, vector<152x384xf32>, vector<16x384xf32> -> vector<16x384xf32>
    %cst_35 = arith.constant 0.000000e+00 : f32
    %37 = vector.broadcast %cst_35 : f32 to vector<16x384xf32>
    %38 = arith.select %14, %36, %37 : vector<16x384xi1>, vector<16x384xf32>
    %c0_36 = arith.constant 0 : index
    %c19_37 = arith.constant 19 : index
    %39 = vector.load %arg5[%c0_36, %c19_37] : memref<16x422xf32, #tpu.memory_space<vmem>>, vector<16x384xf32>
    tpu.vector_store %arg5[%c0_36, %c19_37], %38 {strides = array<i32>} : memref<16x422xf32, #tpu.memory_space<vmem>>, vector<16x384xf32>,
    %c0_38 = arith.constant 0 : index
    %c0_39 = arith.constant 0 : index
    %40 = vector.load %arg5[%c0_38, %c0_39] : memref<16x422xf32, #tpu.memory_space<vmem>>, vector<16x384xf32>
    %c0_40 = arith.constant 0 : index
    %c0_41 = arith.constant 0 : index
    %41 = vector.load %arg6[%c0_40, %c0_41] : memref<152x384xf32, #tpu.memory_space<vmem>>, vector<16x384xf32>
    tpu.vector_store %arg6[%c0_40, %c0_41], %40 {strides = array<i32>} : memref<152x384xf32, #tpu.memory_space<vmem>>, vector<16x384xf32>,
    %c0_42 = arith.constant 0 : index
    %c1_43 = arith.constant 1 : index
    %42 = vector.load %arg5[%c0_42, %c1_43] : memref<16x422xf32, #tpu.memory_space<vmem>>, vector<16x384xf32>
    %c16_44 = arith.constant 16 : index
    %c0_45 = arith.constant 0 : index
    %43 = vector.load %arg6[%c16_44, %c0_45] : memref<152x384xf32, #tpu.memory_space<vmem>>, vector<16x384xf32>
    tpu.vector_store %arg6[%c16_44, %c0_45], %42 {strides = array<i32>} : memref<152x384xf32, #tpu.memory_space<vmem>>, vector<16x384xf32>,
    %c0_46 = arith.constant 0 : index
    %c2_47 = arith.constant 2 : index
    %44 = vector.load %arg5[%c0_46, %c2_47] : memref<16x422xf32, #tpu.memory_space<vmem>>, vector<16x384xf32>
    %c32_48 = arith.constant 32 : index
    %c0_49 = arith.constant 0 : index
    %45 = vector.load %arg6[%c32_48, %c0_49] : memref<152x384xf32, #tpu.memory_space<vmem>>, vector<16x384xf32>
    tpu.vector_store %arg6[%c32_48, %c0_49], %44 {strides = array<i32>} : memref<152x384xf32, #tpu.memory_space<vmem>>, vector<16x384xf32>,
    %c0_50 = arith.constant 0 : index
    %c18_51 = arith.constant 18 : index
    %46 = vector.load %arg5[%c0_50, %c18_51] : memref<16x422xf32, #tpu.memory_space<vmem>>, vector<16x384xf32>
    %c48_52 = arith.constant 48 : index
    %c0_53 = arith.constant 0 : index
    %47 = vector.load %arg6[%c48_52, %c0_53] : memref<152x384xf32, #tpu.memory_space<vmem>>, vector<16x384xf32>
    tpu.vector_store %arg6[%c48_52, %c0_53], %46 {strides = array<i32>} : memref<152x384xf32, #tpu.memory_space<vmem>>, vector<16x384xf32>,
    %c0_54 = arith.constant 0 : index
    %c19_55 = arith.constant 19 : index
    %48 = vector.load %arg5[%c0_54, %c19_55] : memref<16x422xf32, #tpu.memory_space<vmem>>, vector<16x384xf32>
    %c64_56 = arith.constant 64 : index
    %c0_57 = arith.constant 0 : index
    %49 = vector.load %arg6[%c64_56, %c0_57] : memref<152x384xf32, #tpu.memory_space<vmem>>, vector<16x384xf32>
    tpu.vector_store %arg6[%c64_56, %c0_57], %48 {strides = array<i32>} : memref<152x384xf32, #tpu.memory_space<vmem>>, vector<16x384xf32>,
    %c0_58 = arith.constant 0 : index
    %c20_59 = arith.constant 20 : index
    %50 = vector.load %arg5[%c0_58, %c20_59] : memref<16x422xf32, #tpu.memory_space<vmem>>, vector<16x384xf32>
    %c80_60 = arith.constant 80 : index
    %c0_61 = arith.constant 0 : index
    %51 = vector.load %arg6[%c80_60, %c0_61] : memref<152x384xf32, #tpu.memory_space<vmem>>, vector<16x384xf32>
    tpu.vector_store %arg6[%c80_60, %c0_61], %50 {strides = array<i32>} : memref<152x384xf32, #tpu.memory_space<vmem>>, vector<16x384xf32>,
    %c0_62 = arith.constant 0 : index
    %c36_63 = arith.constant 36 : index
    %52 = vector.load %arg5[%c0_62, %c36_63] : memref<16x422xf32, #tpu.memory_space<vmem>>, vector<16x384xf32>
    %c96_64 = arith.constant 96 : index
    %c0_65 = arith.constant 0 : index
    %53 = vector.load %arg6[%c96_64, %c0_65] : memref<152x384xf32, #tpu.memory_space<vmem>>, vector<16x384xf32>
    tpu.vector_store %arg6[%c96_64, %c0_65], %52 {strides = array<i32>} : memref<152x384xf32, #tpu.memory_space<vmem>>, vector<16x384xf32>,
    %c0_66 = arith.constant 0 : index
    %c37_67 = arith.constant 37 : index
    %54 = vector.load %arg5[%c0_66, %c37_67] : memref<16x422xf32, #tpu.memory_space<vmem>>, vector<16x384xf32>
    %c112_68 = arith.constant 112 : index
    %c0_69 = arith.constant 0 : index
    %55 = vector.load %arg6[%c112_68, %c0_69] : memref<152x384xf32, #tpu.memory_space<vmem>>, vector<16x384xf32>
    tpu.vector_store %arg6[%c112_68, %c0_69], %54 {strides = array<i32>} : memref<152x384xf32, #tpu.memory_space<vmem>>, vector<16x384xf32>,
    %c0_70 = arith.constant 0 : index
    %c38_71 = arith.constant 38 : index
    %56 = vector.load %arg5[%c0_70, %c38_71] : memref<16x422xf32, #tpu.memory_space<vmem>>, vector<16x384xf32>
    %c128_72 = arith.constant 128 : index
    %c0_73 = arith.constant 0 : index
    %57 = vector.load %arg6[%c128_72, %c0_73] : memref<152x384xf32, #tpu.memory_space<vmem>>, vector<16x384xf32>
    tpu.vector_store %arg6[%c128_72, %c0_73], %56 {strides = array<i32>} : memref<152x384xf32, #tpu.memory_space<vmem>>, vector<16x384xf32>,
    %c1_74 = arith.constant 1 : index
    %c0_75 = arith.constant 0 : index
    %c0_76 = arith.constant 0 : index
    %58 = vector.load %arg2[%c1_74, %c0_75, %c0_76] : memref<5x16x152xf32, #tpu.memory_space<vmem>>, vector<1x16x152xf32>
    %59 = vector.shape_cast %58 : vector<1x16x152xf32> to vector<16x152xf32>
    %c0_77 = arith.constant 0 : index
    %c0_78 = arith.constant 0 : index
    %60 = vector.load %arg6[%c0_77, %c0_78] : memref<152x384xf32, #tpu.memory_space<vmem>>, vector<152x384xf32>
    %cst_79 = arith.constant dense<0.000000e+00> : vector<16x384xf32>
    %61 = tpu.matmul %59, %60, %cst_79 {dimension_numbers = #tpu.dot_dimension_numbers<[1], [0], [0], [1], [0, 0, 1, 1], [], []>} : vector<16x152xf32>, vector<152x384xf32>, vector<16x384xf32> -> vector<16x384xf32>
    %cst_80 = arith.constant 0.000000e+00 : f32
    %62 = vector.broadcast %cst_80 : f32 to vector<16x384xf32>
    %63 = arith.select %14, %61, %62 : vector<16x384xi1>, vector<16x384xf32>
    %c0_81 = arith.constant 0 : index
    %c19_82 = arith.constant 19 : index
    %64 = vector.load %arg5[%c0_81, %c19_82] : memref<16x422xf32, #tpu.memory_space<vmem>>, vector<16x384xf32>
    tpu.vector_store %arg5[%c0_81, %c19_82], %63 {strides = array<i32>} : memref<16x422xf32, #tpu.memory_space<vmem>>, vector<16x384xf32>,
    %c0_83 = arith.constant 0 : index
    %c0_84 = arith.constant 0 : index
    %65 = vector.load %arg5[%c0_83, %c0_84] : memref<16x422xf32, #tpu.memory_space<vmem>>, vector<16x384xf32>
    %c0_85 = arith.constant 0 : index
    %c0_86 = arith.constant 0 : index
    %66 = vector.load %arg6[%c0_85, %c0_86] : memref<152x384xf32, #tpu.memory_space<vmem>>, vector<16x384xf32>
    tpu.vector_store %arg6[%c0_85, %c0_86], %65 {strides = array<i32>} : memref<152x384xf32, #tpu.memory_space<vmem>>, vector<16x384xf32>,
    %c0_87 = arith.constant 0 : index
    %c1_88 = arith.constant 1 : index
    %67 = vector.load %arg5[%c0_87, %c1_88] : memref<16x422xf32, #tpu.memory_space<vmem>>, vector<16x384xf32>
    %c16_89 = arith.constant 16 : index
    %c0_90 = arith.constant 0 : index
    %68 = vector.load %arg6[%c16_89, %c0_90] : memref<152x384xf32, #tpu.memory_space<vmem>>, vector<16x384xf32>
    tpu.vector_store %arg6[%c16_89, %c0_90], %67 {strides = array<i32>} : memref<152x384xf32, #tpu.memory_space<vmem>>, vector<16x384xf32>,
    %c0_91 = arith.constant 0 : index
    %c2_92 = arith.constant 2 : index
    %69 = vector.load %arg5[%c0_91, %c2_92] : memref<16x422xf32, #tpu.memory_space<vmem>>, vector<16x384xf32>
    %c32_93 = arith.constant 32 : index
    %c0_94 = arith.constant 0 : index
    %70 = vector.load %arg6[%c32_93, %c0_94] : memref<152x384xf32, #tpu.memory_space<vmem>>, vector<16x384xf32>
    tpu.vector_store %arg6[%c32_93, %c0_94], %69 {strides = array<i32>} : memref<152x384xf32, #tpu.memory_space<vmem>>, vector<16x384xf32>,
    %c0_95 = arith.constant 0 : index
    %c18_96 = arith.constant 18 : index
    %71 = vector.load %arg5[%c0_95, %c18_96] : memref<16x422xf32, #tpu.memory_space<vmem>>, vector<16x384xf32>
    %c48_97 = arith.constant 48 : index
    %c0_98 = arith.constant 0 : index
    %72 = vector.load %arg6[%c48_97, %c0_98] : memref<152x384xf32, #tpu.memory_space<vmem>>, vector<16x384xf32>
    tpu.vector_store %arg6[%c48_97, %c0_98], %71 {strides = array<i32>} : memref<152x384xf32, #tpu.memory_space<vmem>>, vector<16x384xf32>,
    %c0_99 = arith.constant 0 : index
    %c19_100 = arith.constant 19 : index
    %73 = vector.load %arg5[%c0_99, %c19_100] : memref<16x422xf32, #tpu.memory_space<vmem>>, vector<16x384xf32>
    %c64_101 = arith.constant 64 : index
    %c0_102 = arith.constant 0 : index
    %74 = vector.load %arg6[%c64_101, %c0_102] : memref<152x384xf32, #tpu.memory_space<vmem>>, vector<16x384xf32>
    tpu.vector_store %arg6[%c64_101, %c0_102], %73 {strides = array<i32>} : memref<152x384xf32, #tpu.memory_space<vmem>>, vector<16x384xf32>,
    %c0_103 = arith.constant 0 : index
    %c20_104 = arith.constant 20 : index
    %75 = vector.load %arg5[%c0_103, %c20_104] : memref<16x422xf32, #tpu.memory_space<vmem>>, vector<16x384xf32>
    %c80_105 = arith.constant 80 : index
    %c0_106 = arith.constant 0 : index
    %76 = vector.load %arg6[%c80_105, %c0_106] : memref<152x384xf32, #tpu.memory_space<vmem>>, vector<16x384xf32>
    tpu.vector_store %arg6[%c80_105, %c0_106], %75 {strides = array<i32>} : memref<152x384xf32, #tpu.memory_space<vmem>>, vector<16x384xf32>,
    %c0_107 = arith.constant 0 : index
    %c36_108 = arith.constant 36 : index
    %77 = vector.load %arg5[%c0_107, %c36_108] : memref<16x422xf32, #tpu.memory_space<vmem>>, vector<16x384xf32>
    %c96_109 = arith.constant 96 : index
    %c0_110 = arith.constant 0 : index
    %78 = vector.load %arg6[%c96_109, %c0_110] : memref<152x384xf32, #tpu.memory_space<vmem>>, vector<16x384xf32>
    tpu.vector_store %arg6[%c96_109, %c0_110], %77 {strides = array<i32>} : memref<152x384xf32, #tpu.memory_space<vmem>>, vector<16x384xf32>,
    %c0_111 = arith.constant 0 : index
    %c37_112 = arith.constant 37 : index
    %79 = vector.load %arg5[%c0_111, %c37_112] : memref<16x422xf32, #tpu.memory_space<vmem>>, vector<16x384xf32>
    %c112_113 = arith.constant 112 : index
    %c0_114 = arith.constant 0 : index
    %80 = vector.load %arg6[%c112_113, %c0_114] : memref<152x384xf32, #tpu.memory_space<vmem>>, vector<16x384xf32>
    tpu.vector_store %arg6[%c112_113, %c0_114], %79 {strides = array<i32>} : memref<152x384xf32, #tpu.memory_space<vmem>>, vector<16x384xf32>,
    %c0_115 = arith.constant 0 : index
    %c38_116 = arith.constant 38 : index
    %81 = vector.load %arg5[%c0_115, %c38_116] : memref<16x422xf32, #tpu.memory_space<vmem>>, vector<16x384xf32>
    %c128_117 = arith.constant 128 : index
    %c0_118 = arith.constant 0 : index
    %82 = vector.load %arg6[%c128_117, %c0_118] : memref<152x384xf32, #tpu.memory_space<vmem>>, vector<16x384xf32>
    tpu.vector_store %arg6[%c128_117, %c0_118], %81 {strides = array<i32>} : memref<152x384xf32, #tpu.memory_space<vmem>>, vector<16x384xf32>,
    %c2_119 = arith.constant 2 : index
    %c0_120 = arith.constant 0 : index
    %c0_121 = arith.constant 0 : index
    %83 = vector.load %arg2[%c2_119, %c0_120, %c0_121] : memref<5x16x152xf32, #tpu.memory_space<vmem>>, vector<1x16x152xf32>
    %84 = vector.shape_cast %83 : vector<1x16x152xf32> to vector<16x152xf32>
    %c0_122 = arith.constant 0 : index
    %c0_123 = arith.constant 0 : index
    %85 = vector.load %arg6[%c0_122, %c0_123] : memref<152x384xf32, #tpu.memory_space<vmem>>, vector<152x384xf32>
    %cst_124 = arith.constant dense<0.000000e+00> : vector<16x384xf32>
    %86 = tpu.matmul %84, %85, %cst_124 {dimension_numbers = #tpu.dot_dimension_numbers<[1], [0], [0], [1], [0, 0, 1, 1], [], []>} : vector<16x152xf32>, vector<152x384xf32>, vector<16x384xf32> -> vector<16x384xf32>
    %cst_125 = arith.constant 0.000000e+00 : f32
    %87 = vector.broadcast %cst_125 : f32 to vector<16x384xf32>
    %88 = arith.select %14, %86, %87 : vector<16x384xi1>, vector<16x384xf32>
    %c0_126 = arith.constant 0 : index
    %c19_127 = arith.constant 19 : index
    %89 = vector.load %arg5[%c0_126, %c19_127] : memref<16x422xf32, #tpu.memory_space<vmem>>, vector<16x384xf32>
    tpu.vector_store %arg5[%c0_126, %c19_127], %88 {strides = array<i32>} : memref<16x422xf32, #tpu.memory_space<vmem>>, vector<16x384xf32>,
    %c0_128 = arith.constant 0 : index
    %c0_129 = arith.constant 0 : index
    %90 = vector.load %arg5[%c0_128, %c0_129] : memref<16x422xf32, #tpu.memory_space<vmem>>, vector<16x384xf32>
    %c0_130 = arith.constant 0 : index
    %c0_131 = arith.constant 0 : index
    %91 = vector.load %arg6[%c0_130, %c0_131] : memref<152x384xf32, #tpu.memory_space<vmem>>, vector<16x384xf32>
    tpu.vector_store %arg6[%c0_130, %c0_131], %90 {strides = array<i32>} : memref<152x384xf32, #tpu.memory_space<vmem>>, vector<16x384xf32>,
    %c0_132 = arith.constant 0 : index
    %c1_133 = arith.constant 1 : index
    %92 = vector.load %arg5[%c0_132, %c1_133] : memref<16x422xf32, #tpu.memory_space<vmem>>, vector<16x384xf32>
    %c16_134 = arith.constant 16 : index
    %c0_135 = arith.constant 0 : index
    %93 = vector.load %arg6[%c16_134, %c0_135] : memref<152x384xf32, #tpu.memory_space<vmem>>, vector<16x384xf32>
    tpu.vector_store %arg6[%c16_134, %c0_135], %92 {strides = array<i32>} : memref<152x384xf32, #tpu.memory_space<vmem>>, vector<16x384xf32>,
    %c0_136 = arith.constant 0 : index
    %c2_137 = arith.constant 2 : index
    %94 = vector.load %arg5[%c0_136, %c2_137] : memref<16x422xf32, #tpu.memory_space<vmem>>, vector<16x384xf32>
    %c32_138 = arith.constant 32 : index
    %c0_139 = arith.constant 0 : index
    %95 = vector.load %arg6[%c32_138, %c0_139] : memref<152x384xf32, #tpu.memory_space<vmem>>, vector<16x384xf32>
    tpu.vector_store %arg6[%c32_138, %c0_139], %94 {strides = array<i32>} : memref<152x384xf32, #tpu.memory_space<vmem>>, vector<16x384xf32>,
    %c0_140 = arith.constant 0 : index
    %c18_141 = arith.constant 18 : index
    %96 = vector.load %arg5[%c0_140, %c18_141] : memref<16x422xf32, #tpu.memory_space<vmem>>, vector<16x384xf32>
    %c48_142 = arith.constant 48 : index
    %c0_143 = arith.constant 0 : index
    %97 = vector.load %arg6[%c48_142, %c0_143] : memref<152x384xf32, #tpu.memory_space<vmem>>, vector<16x384xf32>
    tpu.vector_store %arg6[%c48_142, %c0_143], %96 {strides = array<i32>} : memref<152x384xf32, #tpu.memory_space<vmem>>, vector<16x384xf32>,
    %c0_144 = arith.constant 0 : index
    %c19_145 = arith.constant 19 : index
    %98 = vector.load %arg5[%c0_144, %c19_145] : memref<16x422xf32, #tpu.memory_space<vmem>>, vector<16x384xf32>
    %c64_146 = arith.constant 64 : index
    %c0_147 = arith.constant 0 : index
    %99 = vector.load %arg6[%c64_146, %c0_147] : memref<152x384xf32, #tpu.memory_space<vmem>>, vector<16x384xf32>
    tpu.vector_store %arg6[%c64_146, %c0_147], %98 {strides = array<i32>} : memref<152x384xf32, #tpu.memory_space<vmem>>, vector<16x384xf32>,
    %c0_148 = arith.constant 0 : index
    %c20_149 = arith.constant 20 : index
    %100 = vector.load %arg5[%c0_148, %c20_149] : memref<16x422xf32, #tpu.memory_space<vmem>>, vector<16x384xf32>
    %c80_150 = arith.constant 80 : index
    %c0_151 = arith.constant 0 : index
    %101 = vector.load %arg6[%c80_150, %c0_151] : memref<152x384xf32, #tpu.memory_space<vmem>>, vector<16x384xf32>
    tpu.vector_store %arg6[%c80_150, %c0_151], %100 {strides = array<i32>} : memref<152x384xf32, #tpu.memory_space<vmem>>, vector<16x384xf32>,
    %c0_152 = arith.constant 0 : index
    %c36_153 = arith.constant 36 : index
    %102 = vector.load %arg5[%c0_152, %c36_153] : memref<16x422xf32, #tpu.memory_space<vmem>>, vector<16x384xf32>
    %c96_154 = arith.constant 96 : index
    %c0_155 = arith.constant 0 : index
    %103 = vector.load %arg6[%c96_154, %c0_155] : memref<152x384xf32, #tpu.memory_space<vmem>>, vector<16x384xf32>
    tpu.vector_store %arg6[%c96_154, %c0_155], %102 {strides = array<i32>} : memref<152x384xf32, #tpu.memory_space<vmem>>, vector<16x384xf32>,
    %c0_156 = arith.constant 0 : index
    %c37_157 = arith.constant 37 : index
    %104 = vector.load %arg5[%c0_156, %c37_157] : memref<16x422xf32, #tpu.memory_space<vmem>>, vector<16x384xf32>
    %c112_158 = arith.constant 112 : index
    %c0_159 = arith.constant 0 : index
    %105 = vector.load %arg6[%c112_158, %c0_159] : memref<152x384xf32, #tpu.memory_space<vmem>>, vector<16x384xf32>
    tpu.vector_store %arg6[%c112_158, %c0_159], %104 {strides = array<i32>} : memref<152x384xf32, #tpu.memory_space<vmem>>, vector<16x384xf32>,
    %c0_160 = arith.constant 0 : index
    %c38_161 = arith.constant 38 : index
    %106 = vector.load %arg5[%c0_160, %c38_161] : memref<16x422xf32, #tpu.memory_space<vmem>>, vector<16x384xf32>
    %c128_162 = arith.constant 128 : index
    %c0_163 = arith.constant 0 : index
    %107 = vector.load %arg6[%c128_162, %c0_163] : memref<152x384xf32, #tpu.memory_space<vmem>>, vector<16x384xf32>
    tpu.vector_store %arg6[%c128_162, %c0_163], %106 {strides = array<i32>} : memref<152x384xf32, #tpu.memory_space<vmem>>, vector<16x384xf32>,
    %c3 = arith.constant 3 : index
    %c0_164 = arith.constant 0 : index
    %c0_165 = arith.constant 0 : index
    %108 = vector.load %arg2[%c3, %c0_164, %c0_165] : memref<5x16x152xf32, #tpu.memory_space<vmem>>, vector<1x16x152xf32>
    %109 = vector.shape_cast %108 : vector<1x16x152xf32> to vector<16x152xf32>
    %c0_166 = arith.constant 0 : index
    %c0_167 = arith.constant 0 : index
    %110 = vector.load %arg6[%c0_166, %c0_167] : memref<152x384xf32, #tpu.memory_space<vmem>>, vector<152x384xf32>
    %cst_168 = arith.constant dense<0.000000e+00> : vector<16x384xf32>
    %111 = tpu.matmul %109, %110, %cst_168 {dimension_numbers = #tpu.dot_dimension_numbers<[1], [0], [0], [1], [0, 0, 1, 1], [], []>} : vector<16x152xf32>, vector<152x384xf32>, vector<16x384xf32> -> vector<16x384xf32>
    %cst_169 = arith.constant 0.000000e+00 : f32
    %112 = vector.broadcast %cst_169 : f32 to vector<16x384xf32>
    %113 = arith.select %14, %111, %112 : vector<16x384xi1>, vector<16x384xf32>
    %c0_170 = arith.constant 0 : index
    %c19_171 = arith.constant 19 : index
    %114 = vector.load %arg5[%c0_170, %c19_171] : memref<16x422xf32, #tpu.memory_space<vmem>>, vector<16x384xf32>
    tpu.vector_store %arg5[%c0_170, %c19_171], %113 {strides = array<i32>} : memref<16x422xf32, #tpu.memory_space<vmem>>, vector<16x384xf32>,
    %c0_172 = arith.constant 0 : index
    %c0_173 = arith.constant 0 : index
    %115 = vector.load %arg5[%c0_172, %c0_173] : memref<16x422xf32, #tpu.memory_space<vmem>>, vector<16x384xf32>
    %c0_174 = arith.constant 0 : index
    %c0_175 = arith.constant 0 : index
    %116 = vector.load %arg6[%c0_174, %c0_175] : memref<152x384xf32, #tpu.memory_space<vmem>>, vector<16x384xf32>
    tpu.vector_store %arg6[%c0_174, %c0_175], %115 {strides = array<i32>} : memref<152x384xf32, #tpu.memory_space<vmem>>, vector<16x384xf32>,
    %c0_176 = arith.constant 0 : index
    %c1_177 = arith.constant 1 : index
    %117 = vector.load %arg5[%c0_176, %c1_177] : memref<16x422xf32, #tpu.memory_space<vmem>>, vector<16x384xf32>
    %c16_178 = arith.constant 16 : index
    %c0_179 = arith.constant 0 : index
    %118 = vector.load %arg6[%c16_178, %c0_179] : memref<152x384xf32, #tpu.memory_space<vmem>>, vector<16x384xf32>
    tpu.vector_store %arg6[%c16_178, %c0_179], %117 {strides = array<i32>} : memref<152x384xf32, #tpu.memory_space<vmem>>, vector<16x384xf32>,
    %c0_180 = arith.constant 0 : index
    %c2_181 = arith.constant 2 : index
    %119 = vector.load %arg5[%c0_180, %c2_181] : memref<16x422xf32, #tpu.memory_space<vmem>>, vector<16x384xf32>
    %c32_182 = arith.constant 32 : index
    %c0_183 = arith.constant 0 : index
    %120 = vector.load %arg6[%c32_182, %c0_183] : memref<152x384xf32, #tpu.memory_space<vmem>>, vector<16x384xf32>
    tpu.vector_store %arg6[%c32_182, %c0_183], %119 {strides = array<i32>} : memref<152x384xf32, #tpu.memory_space<vmem>>, vector<16x384xf32>,
    %c0_184 = arith.constant 0 : index
    %c18_185 = arith.constant 18 : index
    %121 = vector.load %arg5[%c0_184, %c18_185] : memref<16x422xf32, #tpu.memory_space<vmem>>, vector<16x384xf32>
    %c48_186 = arith.constant 48 : index
    %c0_187 = arith.constant 0 : index
    %122 = vector.load %arg6[%c48_186, %c0_187] : memref<152x384xf32, #tpu.memory_space<vmem>>, vector<16x384xf32>
    tpu.vector_store %arg6[%c48_186, %c0_187], %121 {strides = array<i32>} : memref<152x384xf32, #tpu.memory_space<vmem>>, vector<16x384xf32>,
    %c0_188 = arith.constant 0 : index
    %c19_189 = arith.constant 19 : index
    %123 = vector.load %arg5[%c0_188, %c19_189] : memref<16x422xf32, #tpu.memory_space<vmem>>, vector<16x384xf32>
    %c64_190 = arith.constant 64 : index
    %c0_191 = arith.constant 0 : index
    %124 = vector.load %arg6[%c64_190, %c0_191] : memref<152x384xf32, #tpu.memory_space<vmem>>, vector<16x384xf32>
    tpu.vector_store %arg6[%c64_190, %c0_191], %123 {strides = array<i32>} : memref<152x384xf32, #tpu.memory_space<vmem>>, vector<16x384xf32>,
    %c0_192 = arith.constant 0 : index
    %c20_193 = arith.constant 20 : index
    %125 = vector.load %arg5[%c0_192, %c20_193] : memref<16x422xf32, #tpu.memory_space<vmem>>, vector<16x384xf32>
    %c80_194 = arith.constant 80 : index
    %c0_195 = arith.constant 0 : index
    %126 = vector.load %arg6[%c80_194, %c0_195] : memref<152x384xf32, #tpu.memory_space<vmem>>, vector<16x384xf32>
    tpu.vector_store %arg6[%c80_194, %c0_195], %125 {strides = array<i32>} : memref<152x384xf32, #tpu.memory_space<vmem>>, vector<16x384xf32>,
    %c0_196 = arith.constant 0 : index
    %c36_197 = arith.constant 36 : index
    %127 = vector.load %arg5[%c0_196, %c36_197] : memref<16x422xf32, #tpu.memory_space<vmem>>, vector<16x384xf32>
    %c96_198 = arith.constant 96 : index
    %c0_199 = arith.constant 0 : index
    %128 = vector.load %arg6[%c96_198, %c0_199] : memref<152x384xf32, #tpu.memory_space<vmem>>, vector<16x384xf32>
    tpu.vector_store %arg6[%c96_198, %c0_199], %127 {strides = array<i32>} : memref<152x384xf32, #tpu.memory_space<vmem>>, vector<16x384xf32>,
    %c0_200 = arith.constant 0 : index
    %c37_201 = arith.constant 37 : index
    %129 = vector.load %arg5[%c0_200, %c37_201] : memref<16x422xf32, #tpu.memory_space<vmem>>, vector<16x384xf32>
    %c112_202 = arith.constant 112 : index
    %c0_203 = arith.constant 0 : index
    %130 = vector.load %arg6[%c112_202, %c0_203] : memref<152x384xf32, #tpu.memory_space<vmem>>, vector<16x384xf32>
    tpu.vector_store %arg6[%c112_202, %c0_203], %129 {strides = array<i32>} : memref<152x384xf32, #tpu.memory_space<vmem>>, vector<16x384xf32>,
    %c0_204 = arith.constant 0 : index
    %c38_205 = arith.constant 38 : index
    %131 = vector.load %arg5[%c0_204, %c38_205] : memref<16x422xf32, #tpu.memory_space<vmem>>, vector<16x384xf32>
    %c128_206 = arith.constant 128 : index
    %c0_207 = arith.constant 0 : index
    %132 = vector.load %arg6[%c128_206, %c0_207] : memref<152x384xf32, #tpu.memory_space<vmem>>, vector<16x384xf32>
    tpu.vector_store %arg6[%c128_206, %c0_207], %131 {strides = array<i32>} : memref<152x384xf32, #tpu.memory_space<vmem>>, vector<16x384xf32>,
    %c4 = arith.constant 4 : index
    %c0_208 = arith.constant 0 : index
    %c0_209 = arith.constant 0 : index
    %133 = vector.load %arg2[%c4, %c0_208, %c0_209] : memref<5x16x152xf32, #tpu.memory_space<vmem>>, vector<1x16x152xf32>
    %134 = vector.shape_cast %133 : vector<1x16x152xf32> to vector<16x152xf32>
    %c0_210 = arith.constant 0 : index
    %c0_211 = arith.constant 0 : index
    %135 = vector.load %arg6[%c0_210, %c0_211] : memref<152x384xf32, #tpu.memory_space<vmem>>, vector<152x384xf32>
    %cst_212 = arith.constant dense<0.000000e+00> : vector<16x384xf32>
    %136 = tpu.matmul %134, %135, %cst_212 {dimension_numbers = #tpu.dot_dimension_numbers<[1], [0], [0], [1], [0, 0, 1, 1], [], []>} : vector<16x152xf32>, vector<152x384xf32>, vector<16x384xf32> -> vector<16x384xf32>
    %cst_213 = arith.constant 0.000000e+00 : f32
    %137 = vector.broadcast %cst_213 : f32 to vector<16x384xf32>
    %138 = arith.select %14, %136, %137 : vector<16x384xi1>, vector<16x384xf32>
    %c0_214 = arith.constant 0 : index
    %c0_215 = arith.constant 0 : index
    %c0_216 = arith.constant 0 : index
    %139 = vector.load %arg1[%c0_214, %c0_215, %c0_216] : memref<1x16x384xf32, #tpu.memory_space<vmem>>, vector<1x16x384xf32>
    %140 = vector.shape_cast %139 : vector<1x16x384xf32> to vector<16x384xf32>
    %141 = arith.addf %138, %140 : vector<16x384xf32>
    %cst_217 = arith.constant 0.000000e+00 : f32
    %142 = vector.broadcast %cst_217 : f32 to vector<16x384xf32>
    %143 = arith.maximumf %141, %142 : vector<16x384xf32>
    %144 = vector.shape_cast %143 : vector<16x384xf32> to vector<1x16x384xf32>
    %c0_218 = arith.constant 0 : index
    %c0_219 = arith.constant 0 : index
    %c0_220 = arith.constant 0 : index
    %145 = vector.load %arg4[%c0_218, %c0_219, %c0_220] : memref<1x16x384xf32, #tpu.memory_space<vmem>>, vector<1x16x384xf32>
    tpu.vector_store %arg4[%c0_218, %c0_219, %c0_220], %144 {strides = array<i32>} : memref<1x16x384xf32, #tpu.memory_space<vmem>>, vector<1x16x384xf32>,
    return
  }
  func.func @transform_0(%arg0: i32) -> (i32, i32, i32) {
    %c0_i32 = arith.constant 0 : i32
    %c0_i32_0 = arith.constant 0 : i32
    %c0_i32_1 = arith.constant 0 : i32
    return %arg0, %c0_i32, %c0_i32_0 : i32, i32, i32
  }
  func.func @transform_1(%arg0: i32) -> (i32, i32, i32) {
    %c0_i32 = arith.constant 0 : i32
    %c0_i32_0 = arith.constant 0 : i32
    %c0_i32_1 = arith.constant 0 : i32
    %c0_i32_2 = arith.constant 0 : i32
    return %c0_i32, %c0_i32_0, %c0_i32_1 : i32, i32, i32
  }
  func.func @transform_2(%arg0: i32) -> (i32, i32) {
    %c0_i32 = arith.constant 0 : i32
    %c0_i32_0 = arith.constant 0 : i32
    %c0_i32_1 = arith.constant 0 : i32
    return %c0_i32, %c0_i32_0 : i32, i32
  }
  func.func @transform_3(%arg0: i32) -> (i32, i32, i32) {
    %c0_i32 = arith.constant 0 : i32
    %c0_i32_0 = arith.constant 0 : i32
    %c0_i32_1 = arith.constant 0 : i32
    return %arg0, %c0_i32, %c0_i32_0 : i32, i32, i32
  }
}

</mosaic_0001>

<llo_original>
// kernel: model_forward.1
$region0: #{model_forward.1}
  #allocation0 [shape = 'u32[]', space=smem, size = 0x4, offset = 0x4, fixed_abs, tag = 'smem constant byte address 0x4 - core index']
  #allocation1 [shape = 'u32[144,128]{1,0:T(1,128)}', space=vmem, size = 0x12000, scoped, tag = 'internal scratch']
  #allocation2 [shape = 'f32[16,422]{1,0:T(8,128)}', space=vmem, size = 0x8000, scoped, tag = 'scratch operand']
  #allocation3 [shape = 'f32[152,384]{1,0:T(8,128)}', space=vmem, size = 0x39000, scoped, tag = 'scratch operand']
  %s0 = inlined_call_operand.vmem [shape: f32[2,16,384], index: 0, kind: input, shape index: {}]
  %s1 = inlined_call_operand.vmem [shape: f32[5,16,152], index: 1, kind: input, shape index: {}]
  %s2 = inlined_call_operand.vmem [shape: f32[1,384], index: 2, kind: input, shape index: {}]
  %s3 = inlined_call_operand.vmem [shape: f32[2,16,384], index: 3, kind: output, shape index: {}]
  %s4 = sld [smem:[#allocation0]]
  $region45: #{model_forward.1} parent=0
    _
  %s6 = ssub.s32 1, %s4
  %s7 = scalar_select 0, %s6, %s4
  loop: start=0, step=1, limit=4
  $region2: #{model_forward.1} parent=0 // loop_pre_header
    _
  $region3: #{model_forward.1} parent=0 // loop_header
    %s9 = sphi 0, %s13
    %p10 = scmp.ge.s32.totalorder %s9, 4
    %s19 = sphi 0, %s21
    %s22 = sphi 0, %s19
    %s23 = sphi 0, %s22
    %s39 = sphi 0, %s23
    %s43 = sphi 0, %s43
    %s45 = sphi 0, %s43
    %s46 = sphi 0, %s45
    %s60 = sphi 0, %s46
    %s64 = sphi 0, %s64
    %s66 = sphi 0, %s64
    %s67 = sphi 0, %s66
    %s81 = sphi 0, %s67
    %s87 = sphi 0, %s89
    %s90 = sphi 0, %s87
    %s91 = sphi 0, %s90
    %s107 = sphi 0, %s91
  $region4: #{model_forward.1} parent=0 // loop_header_branch
    %12 = sbr.rel (%p10) target = $region8
  $region5: #{model_forward.1} parent=0 // loop_body
    %s14 = ssub.s32 %s9, 1
    %s15 = ssub.s32 %s9, 2
    %s16 = sadd.s32 %s9, 1
    %s17 = ssub.s32 %s9, %s16
    %p18 = scmp.eq.s32.totalorder %s17, 0
    %s20 = sadd.s32 %s19, 1
    %s21 = scalar_select %p18, %s19, %s20
    %p24 = pneg %p18
    %p25 = scmp.eq.s32.totalorder %s9, 1
    %p26 = por %p24, %p25
    %p27 = scmp.ne.s32.totalorder %s19, %s22
    %p28 = scmp.eq.s32.totalorder %s9, 0
    %p29 = por %p27, %p28
    %p30 = scmp.ne.s32.totalorder %s19, %s22
    %p31 = scmp.eq.s32.totalorder %s14, 1
    %p32 = por %p30, %p31
    %p33 = scmp.ne.s32.totalorder %s22, %s23
    %p34 = scmp.eq.s32.totalorder %s14, 0
    %p35 = por %p33, %p34
    %p36 = scmp.ne.s32.totalorder %s22, %s23
    %p37 = scmp.eq.s32.totalorder %s15, 1
    %p38 = por %p36, %p37
    %p40 = scmp.ne.s32.totalorder %s23, %s39
    %p41 = scmp.eq.s32.totalorder %s15, 0
    %p42 = por %p40, %p41
    %s44 = sadd.s32 %s43, 1
    %p47 = scmp.eq.s32.totalorder %s9, 1
    %p48 = scmp.ne.s32.totalorder %s43, %s45
    %p49 = scmp.eq.s32.totalorder %s9, 0
    %p50 = por %p48, %p49
    %p51 = scmp.ne.s32.totalorder %s43, %s45
    %p52 = scmp.eq.s32.totalorder %s14, 1
    %p53 = por %p51, %p52
    %p54 = scmp.ne.s32.totalorder %s45, %s46
    %p55 = scmp.eq.s32.totalorder %s14, 0
    %p56 = por %p54, %p55
    %p57 = scmp.ne.s32.totalorder %s45, %s46
    %p58 = scmp.eq.s32.totalorder %s15, 1
    %p59 = por %p57, %p58
    %p61 = scmp.ne.s32.totalorder %s46, %s60
    %p62 = scmp.eq.s32.totalorder %s15, 0
    %p63 = por %p61, %p62
    %s65 = sadd.s32 %s64, 1
    %p68 = scmp.eq.s32.totalorder %s9, 1
    %p69 = scmp.ne.s32.totalorder %s64, %s66
    %p70 = scmp.eq.s32.totalorder %s9, 0
    %p71 = por %p69, %p70
    %p72 = scmp.ne.s32.totalorder %s64, %s66
    %p73 = scmp.eq.s32.totalorder %s14, 1
    %p74 = por %p72, %p73
    %p75 = scmp.ne.s32.totalorder %s66, %s67
    %p76 = scmp.eq.s32.totalorder %s14, 0
    %p77 = por %p75, %p76
    %p78 = scmp.ne.s32.totalorder %s66, %s67
    %p79 = scmp.eq.s32.totalorder %s15, 1
    %p80 = por %p78, %p79
    %p82 = scmp.ne.s32.totalorder %s67, %s81
    %p83 = scmp.eq.s32.totalorder %s15, 0
    %p84 = por %p82, %p83
    %s85 = ssub.s32 %s9, %s16
    %p86 = scmp.eq.s32.totalorder %s85, 0
    %s88 = sadd.s32 %s87, 1
    %s89 = scalar_select %p86, %s87, %s88
    %p92 = pneg %p86
    %p93 = scmp.eq.s32.totalorder %s9, 1
    %p94 = por %p92, %p93
    %p95 = scmp.ne.s32.totalorder %s87, %s90
    %p96 = scmp.eq.s32.totalorder %s9, 0
    %p97 = por %p95, %p96
    %p98 = scmp.ne.s32.totalorder %s87, %s90
    %p99 = scmp.eq.s32.totalorder %s14, 1
    %p100 = por %p98, %p99
    %p101 = scmp.ne.s32.totalorder %s90, %s91
    %p102 = scmp.eq.s32.totalorder %s14, 0
    %p103 = por %p101, %p102
    %p104 = scmp.ne.s32.totalorder %s90, %s91
    %p105 = scmp.eq.s32.totalorder %s15, 1
    %p106 = por %p104, %p105
    %p108 = scmp.ne.s32.totalorder %s91, %s107
    %p109 = scmp.eq.s32.totalorder %s15, 0
    %p110 = por %p108, %p109
    %p111 = scmp.le.s32.totalorder 1, %s9
    %p112 = scmp.lt.s32.totalorder %s9, 3
    %p113 = pnand %p111, %p112
    %p114 = pneg %p113
    // Predicated region
    $region9: #{model_forward.1} parent=5 // pred_check
      _
    $region10: #{model_forward.1} parent=5 // pred_check_branch
      %116 = sbr.rel (%p113) target = $region12
    $region11: #{model_forward.1} parent=5 // pred_region
      %s117 = ssub.s32 %s9, 1
      // Predicated region
      $region13: #{model_forward.1} parent=11 // pred_check
        %p118 = pneg %p56
      $region14: #{model_forward.1} parent=11 // pred_check_branch
        %120 = sbr.rel (%p118) target = $region16
      $region15: #{model_forward.1} parent=11 // pred_region
        _
      $region16: #{model_forward.1} parent=11 // pred_fallthru
        _
      // Predicated region
      $region17: #{model_forward.1} parent=11 // pred_check
        %p121 = pneg %p77
      $region18: #{model_forward.1} parent=11 // pred_check_branch
        %123 = sbr.rel (%p121) target = $region20
      $region19: #{model_forward.1} parent=11 // pred_region
        _
      $region20: #{model_forward.1} parent=11 // pred_fallthru
        _
    $region12: #{model_forward.1} parent=5 // pred_fallthru
      _
    %p124 = scmp.lt.s32.totalorder %s9, 2
    // Predicated region
    $region21: #{model_forward.1} parent=5 // pred_check
      %p125 = pneg %p124
    $region22: #{model_forward.1} parent=5 // pred_check_branch
      %127 = sbr.rel (%p125) target = $region24
    $region23: #{model_forward.1} parent=5 // pred_region
      // Predicated region
      $region25: #{model_forward.1} parent=23 // pred_check
        %p128 = pneg %p29
      $region26: #{model_forward.1} parent=23 // pred_check_branch
        %130 = sbr.rel (%p128) target = $region28
      $region27: #{model_forward.1} parent=23 // pred_region
        %p131 = scmp.lt.s32.totalorder %s9, 1
        %s132 = scalar_select %p131, %s9, 1
        %s133 = smul.addr %s132, 6
        %s134 = smul.addr %s133, 8
        %s135 = scalar_lea.vmem %s0, %s134
      $region28: #{model_forward.1} parent=23 // pred_fallthru
        _
    $region24: #{model_forward.1} parent=5 // pred_fallthru
      _
    %p136 = scmp.le.s32.totalorder 1, %s9
    %p137 = scmp.lt.s32.totalorder %s9, 3
    %p138 = pnand %p136, %p137
    %p139 = pneg %p138
    // Predicated region
    $region29: #{model_forward.1} parent=5 // pred_check
      _
    $region30: #{model_forward.1} parent=5 // pred_check_branch
      %141 = sbr.rel (%p138) target = $region32
    $region31: #{model_forward.1} parent=5 // pred_region
      %s142 = ssub.s32 %s9, 1
      %p143 = scmp.lt.s32.totalorder %s14, 1
      %s144 = scalar_select %p143, %s14, 1
      %s145 = smul.addr %s144, 6
      %s146 = smul.addr %s145, 8
      %s147 = scalar_lea.vmem %s0, %s146
      %p148 = pneg %p35
      %p149 = pneg %p32
      %p150 = pneg %p56
      %p151 = pneg %p53
      %p152 = pneg %p77
      %p153 = pneg %p74
      %p154 = pneg %p103
      %p155 = pneg %p100
      %p156 = scmp.lt.s32.totalorder %s14, 1
      %s157 = scalar_select %p156, %s14, 1
      %s158 = smul.addr %s157, 6
      %s159 = smul.addr %s158, 8
      %s160 = scalar_lea.vmem %s3, %s159
      %p161 = scmp.lt.s32.totalorder %s14, 1
      %s162 = scalar_select %p161, %s14, 1
      %s163 = smul.addr %s162, 6
      %s164 = smul.addr %s163, 8
      %s165 = scalar_lea.vmem %s0, %s164
      %p166 = scmp.lt.s32.totalorder %s14, 1
      %s167 = scalar_select %p166, %s14, 1
      %s168 = smul.addr %s167, 6
      %s169 = smul.addr %s168, 8
      %s170 = scalar_lea.vmem %s3, %s169
      %v171 = vlaneseq
      %v172 = vshrl.u32 %v171, 7
      %vm173 = vcmp.eq.s32.totalorder %v172, 0
      %v174 = vsel %vm173, 1.0, 0.0
      %175 = vst [vmem:[#allocation3 + $0x1b0] sm:$0xff] %v174
      %176 = vst [vmem:[#allocation3 + $0x1b8] sm:$0xff] %v174
      %177 = vst [vmem:[#allocation3 + $0x1c0] sm:$0xff] %v174
      %v178 = vld [vmem:[%s165] sm:$0xff]
      %v179 = vld [vmem:[%s165 + $0x8] sm:$0xff]
      %v180 = vld [vmem:[%s165 + $0x10] sm:$0xff]
      %v181 = vld [vmem:[%s165 + $0x18] sm:$0xff]
      %v182 = vld [vmem:[%s165 + $0x20] sm:$0xff]
      %v183 = vld [vmem:[%s165 + $0x28] sm:$0xff]
      %190 = vrot.lane.b32.xlu0 %v178, 19
      %v191 = vpop.permute.xlu0 %190
      %192 = vrot.lane.b32.xlu0 %v179, 19
      %v193 = vpop.permute.xlu0 %192
      %194 = vrot.lane.b32.xlu0 %v180, 19
      %v195 = vpop.permute.xlu0 %194
      %196 = vrot.lane.b32.xlu0 %v181, 19
      %v197 = vpop.permute.xlu0 %196
      %198 = vrot.lane.b32.xlu0 %v182, 19
      %v199 = vpop.permute.xlu0 %198
      %200 = vrot.lane.b32.xlu0 %v183, 19
      %v201 = vpop.permute.xlu0 %200
      %vm202 = vcmask 154624
      %v203 = vsel %vm202, %v191, %v193
      %v204 = vsel %vm202, %v193, %v195
      %v205 = vsel %vm202, %v197, %v199
      %v206 = vsel %vm202, %v199, %v201
      %vm215 = vcmask 1047704
      %216 = vst.msk [vmem:[#allocation2] sm:$0xff] %vm215, %v191
      %217 = vst [vmem:[#allocation2 + $0x8] sm:$0xff] %v203
      %218 = vst [vmem:[#allocation2 + $0x10] sm:$0xff] %v204
      %219 = vst.msk [vmem:[#allocation2 + $0x18] sm:$0xff] %vm202, %v195
      %220 = vst.msk [vmem:[#allocation2 + $0x20] sm:$0xff] %vm215, %v197
      %221 = vst [vmem:[#allocation2 + $0x28] sm:$0xff] %v205
      %222 = vst [vmem:[#allocation2 + $0x30] sm:$0xff] %v206
      %223 = vst.msk [vmem:[#allocation2 + $0x38] sm:$0xff] %vm202, %v201
      %v224 = vld [vmem:[%s2] sm:$0x7]
      %vm225 = vcmp.gt.f32.partialorder %v224, 0.5
      %v226 = vsel %vm225, 1, 0
      %v227 = vlaneseq
      %v228 = vshrl.u32 %v227, 7
      %v229 = vsub.s32 0, %v228
      %v230 = vrot.slane %v226, %v229
      %v231 = vlaneseq
      %v232 = vshrl.u32 %v231, 7
      %v233 = vsub.s32 1, %v232
      %v234 = vrot.slane %v226, %v233
      %v235 = vlaneseq
      %v236 = vshrl.u32 %v235, 7
      %v237 = vsub.s32 2, %v236
      %v238 = vrot.slane %v226, %v237
      %vm239 = vcmp.eq.s32.totalorder %v230, 1
      %vm240 = vcmp.eq.s32.totalorder %v234, 1
      %vm241 = vcmp.eq.s32.totalorder %v238, 1
      %v242 = vld [vmem:[#allocation2] sm:$0xff]
      %v243 = vld [vmem:[#allocation2 + $0x8] sm:$0xff]
      %v244 = vld [vmem:[#allocation2 + $0x10] sm:$0xff]
      %v245 = vld [vmem:[#allocation2 + $0x20] sm:$0xff]
      %v246 = vld [vmem:[#allocation2 + $0x28] sm:$0xff]
      %v247 = vld [vmem:[#allocation2 + $0x30] sm:$0xff]
      %248 = vst [vmem:[#allocation3] sm:$0xff] %v242
      %249 = vst [vmem:[#allocation3 + $0x8] sm:$0xff] %v243
      %250 = vst [vmem:[#allocation3 + $0x10] sm:$0xff] %v244
      %251 = vst [vmem:[#allocation3 + $0x18] sm:$0xff] %v245
      %252 = vst [vmem:[#allocation3 + $0x20] sm:$0xff] %v246
      %253 = vst [vmem:[#allocation3 + $0x28] sm:$0xff] %v247
      %v254 = vld [vmem:[#allocation2] sm:$0xff]
      %v255 = vld [vmem:[#allocation2 + $0x8] sm:$0xff]
      %v256 = vld [vmem:[#allocation2 + $0x10] sm:$0xff]
      %v257 = vld [vmem:[#allocation2 + $0x18] sm:$0xff]
      %v258 = vld [vmem:[#allocation2 + $0x20] sm:$0xff]
      %v259 = vld [vmem:[#allocation2 + $0x28] sm:$0xff]
      %v260 = vld [vmem:[#allocation2 + $0x30] sm:$0xff]
      %v261 = vld [vmem:[#allocation2 + $0x38] sm:$0xff]
      %270 = vrot.lane.b32.xlu0 %v254, 127
      %v271 = vpop.permute.xlu0 %270
      %272 = vrot.lane.b32.xlu0 %v255, 127
      %v273 = vpop.permute.xlu0 %272
      %274 = vrot.lane.b32.xlu0 %v256, 127
      %v275 = vpop.permute.xlu0 %274
      %276 = vrot.lane.b32.xlu0 %v257, 127
      %v277 = vpop.permute.xlu0 %276
      %278 = vrot.lane.b32.xlu0 %v258, 127
      %v279 = vpop.permute.xlu0 %278
      %280 = vrot.lane.b32.xlu0 %v259, 127
      %v281 = vpop.permute.xlu0 %280
      %282 = vrot.lane.b32.xlu0 %v260, 127
      %v283 = vpop.permute.xlu0 %282
      %284 = vrot.lane.b32.xlu0 %v261, 127
      %v285 = vpop.permute.xlu0 %284
      %vm286 = vcmask 1039360
      %v287 = vsel %vm286, %v271, %v273
      %v288 = vsel %vm286, %v273, %v275
      %v289 = vsel %vm286, %v275, %v277
      %v290 = vsel %vm286, %v279, %v281
      %v291 = vsel %vm286, %v281, %v283
      %v292 = vsel %vm286, %v283, %v285
      %299 = vst [vmem:[#allocation3 + $0x30] sm:$0xff] %v287
      %300 = vst [vmem:[#allocation3 + $0x38] sm:$0xff] %v288
      %301 = vst [vmem:[#allocation3 + $0x40] sm:$0xff] %v289
      %302 = vst [vmem:[#allocation3 + $0x48] sm:$0xff] %v290
      %303 = vst [vmem:[#allocation3 + $0x50] sm:$0xff] %v291
      %304 = vst [vmem:[#allocation3 + $0x58] sm:$0xff] %v292
      %v305 = vld [vmem:[#allocation2] sm:$0xff]
      %v306 = vld [vmem:[#allocation2 + $0x8] sm:$0xff]
      %v307 = vld [vmem:[#allocation2 + $0x10] sm:$0xff]
      %v308 = vld [vmem:[#allocation2 + $0x18] sm:$0xff]
      %v309 = vld [vmem:[#allocation2 + $0x20] sm:$0xff]
      %v310 = vld [vmem:[#allocation2 + $0x28] sm:$0xff]
      %v311 = vld [vmem:[#allocation2 + $0x30] sm:$0xff]
      %v312 = vld [vmem:[#allocation2 + $0x38] sm:$0xff]
      %321 = vrot.lane.b32.xlu0 %v305, 126
      %v322 = vpop.permute.xlu0 %321
      %323 = vrot.lane.b32.xlu0 %v306, 126
      %v324 = vpop.permute.xlu0 %323
      %325 = vrot.lane.b32.xlu0 %v307, 126
      %v326 = vpop.permute.xlu0 %325
      %327 = vrot.lane.b32.xlu0 %v308, 126
      %v328 = vpop.permute.xlu0 %327
      %329 = vrot.lane.b32.xlu0 %v309, 126
      %v330 = vpop.permute.xlu0 %329
      %331 = vrot.lane.b32.xlu0 %v310, 126
      %v332 = vpop.permute.xlu0 %331
      %333 = vrot.lane.b32.xlu0 %v311, 126
      %v334 = vpop.permute.xlu0 %333
      %335 = vrot.lane.b32.xlu0 %v312, 126
      %v336 = vpop.permute.xlu0 %335
      %vm337 = vcmask 1031168
      %v338 = vsel %vm337, %v322, %v324
      %v339 = vsel %vm337, %v324, %v326
      %v340 = vsel %vm337, %v326, %v328
      %v341 = vsel %vm337, %v330, %v332
      %v342 = vsel %vm337, %v332, %v334
      %v343 = vsel %vm337, %v334, %v336
      %350 = vst [vmem:[#allocation3 + $0x60] sm:$0xff] %v338
      %351 = vst [vmem:[#allocation3 + $0x68] sm:$0xff] %v339
      %352 = vst [vmem:[#allocation3 + $0x70] sm:$0xff] %v340
      %353 = vst [vmem:[#allocation3 + $0x78] sm:$0xff] %v341
      %354 = vst [vmem:[#allocation3 + $0x80] sm:$0xff] %v342
      %355 = vst [vmem:[#allocation3 + $0x88] sm:$0xff] %v343
      %v356 = vld [vmem:[#allocation2] sm:$0xff]
      %v357 = vld [vmem:[#allocation2 + $0x8] sm:$0xff]
      %v358 = vld [vmem:[#allocation2 + $0x10] sm:$0xff]
      %v359 = vld [vmem:[#allocation2 + $0x18] sm:$0xff]
      %v360 = vld [vmem:[#allocation2 + $0x20] sm:$0xff]
      %v361 = vld [vmem:[#allocation2 + $0x28] sm:$0xff]
      %v362 = vld [vmem:[#allocation2 + $0x30] sm:$0xff]
      %v363 = vld [vmem:[#allocation2 + $0x38] sm:$0xff]
      %372 = vrot.lane.b32.xlu0 %v356, 110
      %v373 = vpop.permute.xlu0 %372
      %374 = vrot.lane.b32.xlu0 %v357, 110
      %v375 = vpop.permute.xlu0 %374
      %376 = vrot.lane.b32.xlu0 %v358, 110
      %v377 = vpop.permute.xlu0 %376
      %378 = vrot.lane.b32.xlu0 %v359, 110
      %v379 = vpop.permute.xlu0 %378
      %380 = vrot.lane.b32.xlu0 %v360, 110
      %v381 = vpop.permute.xlu0 %380
      %382 = vrot.lane.b32.xlu0 %v361, 110
      %v383 = vpop.permute.xlu0 %382
      %384 = vrot.lane.b32.xlu0 %v362, 110
      %v385 = vpop.permute.xlu0 %384
      %386 = vrot.lane.b32.xlu0 %v363, 110
      %v387 = vpop.permute.xlu0 %386
      %vm388 = vcmask 900096
      %v389 = vsel %vm388, %v373, %v375
      %v390 = vsel %vm388, %v375, %v377
      %v391 = vsel %vm388, %v377, %v379
      %v392 = vsel %vm388, %v381, %v383
      %v393 = vsel %vm388, %v383, %v385
      %v394 = vsel %vm388, %v385, %v387
      %401 = vst [vmem:[#allocation3 + $0x90] sm:$0xff] %v389
      %402 = vst [vmem:[#allocation3 + $0x98] sm:$0xff] %v390
      %403 = vst [vmem:[#allocation3 + $0xa0] sm:$0xff] %v391
      %404 = vst [vmem:[#allocation3 + $0xa8] sm:$0xff] %v392
      %405 = vst [vmem:[#allocation3 + $0xb0] sm:$0xff] %v393
      %406 = vst [vmem:[#allocation3 + $0xb8] sm:$0xff] %v394
      %v407 = vld [vmem:[#allocation2] sm:$0xff]
      %v408 = vld [vmem:[#allocation2 + $0x8] sm:$0xff]
      %v409 = vld [vmem:[#allocation2 + $0x10] sm:$0xff]
      %v410 = vld [vmem:[#allocation2 + $0x18] sm:$0xff]
      %v411 = vld [vmem:[#allocation2 + $0x20] sm:$0xff]
      %v412 = vld [vmem:[#allocation2 + $0x28] sm:$0xff]
      %v413 = vld [vmem:[#allocation2 + $0x30] sm:$0xff]
      %v414 = vld [vmem:[#allocation2 + $0x38] sm:$0xff]
      %423 = vrot.lane.b32.xlu0 %v407, 109
      %v424 = vpop.permute.xlu0 %423
      %425 = vrot.lane.b32.xlu0 %v408, 109
      %v426 = vpop.permute.xlu0 %425
      %427 = vrot.lane.b32.xlu0 %v409, 109
      %v428 = vpop.permute.xlu0 %427
      %429 = vrot.lane.b32.xlu0 %v410, 109
      %v430 = vpop.permute.xlu0 %429
      %431 = vrot.lane.b32.xlu0 %v411, 109
      %v432 = vpop.permute.xlu0 %431
      %433 = vrot.lane.b32.xlu0 %v412, 109
      %v434 = vpop.permute.xlu0 %433
      %435 = vrot.lane.b32.xlu0 %v413, 109
      %v436 = vpop.permute.xlu0 %435
      %437 = vrot.lane.b32.xlu0 %v414, 109
      %v438 = vpop.permute.xlu0 %437
      %vm439 = vcmask 891904
      %v440 = vsel %vm439, %v424, %v426
      %v441 = vsel %vm439, %v426, %v428
      %v442 = vsel %vm439, %v428, %v430
      %v443 = vsel %vm439, %v432, %v434
      %v444 = vsel %vm439, %v434, %v436
      %v445 = vsel %vm439, %v436, %v438
      %452 = vst [vmem:[#allocation3 + $0xc0] sm:$0xff] %v440
      %453 = vst [vmem:[#allocation3 + $0xc8] sm:$0xff] %v441
      %454 = vst [vmem:[#allocation3 + $0xd0] sm:$0xff] %v442
      %455 = vst [vmem:[#allocation3 + $0xd8] sm:$0xff] %v443
      %456 = vst [vmem:[#allocation3 + $0xe0] sm:$0xff] %v444
      %457 = vst [vmem:[#allocation3 + $0xe8] sm:$0xff] %v445
      %v458 = vld [vmem:[#allocation2] sm:$0xff]
      %v459 = vld [vmem:[#allocation2 + $0x8] sm:$0xff]
      %v460 = vld [vmem:[#allocation2 + $0x10] sm:$0xff]
      %v461 = vld [vmem:[#allocation2 + $0x18] sm:$0xff]
      %v462 = vld [vmem:[#allocation2 + $0x20] sm:$0xff]
      %v463 = vld [vmem:[#allocation2 + $0x28] sm:$0xff]
      %v464 = vld [vmem:[#allocation2 + $0x30] sm:$0xff]
      %v465 = vld [vmem:[#allocation2 + $0x38] sm:$0xff]
      %474 = vrot.lane.b32.xlu0 %v458, 108
      %v475 = vpop.permute.xlu0 %474
      %476 = vrot.lane.b32.xlu0 %v459, 108
      %v477 = vpop.permute.xlu0 %476
      %478 = vrot.lane.b32.xlu0 %v460, 108
      %v479 = vpop.permute.xlu0 %478
      %480 = vrot.lane.b32.xlu0 %v461, 108
      %v481 = vpop.permute.xlu0 %480
      %482 = vrot.lane.b32.xlu0 %v462, 108
      %v483 = vpop.permute.xlu0 %482
      %484 = vrot.lane.b32.xlu0 %v463, 108
      %v485 = vpop.permute.xlu0 %484
      %486 = vrot.lane.b32.xlu0 %v464, 108
      %v487 = vpop.permute.xlu0 %486
      %488 = vrot.lane.b32.xlu0 %v465, 108
      %v489 = vpop.permute.xlu0 %488
      %vm490 = vcmask 883712
      %v491 = vsel %vm490, %v475, %v477
      %v492 = vsel %vm490, %v477, %v479
      %v493 = vsel %vm490, %v479, %v481
      %v494 = vsel %vm490, %v483, %v485
      %v495 = vsel %vm490, %v485, %v487
      %v496 = vsel %vm490, %v487, %v489
      %503 = vst [vmem:[#allocation3 + $0xf0] sm:$0xff] %v491
      %504 = vst [vmem:[#allocation3 + $0xf8] sm:$0xff] %v492
      %505 = vst [vmem:[#allocation3 + $0x100] sm:$0xff] %v493
      %506 = vst [vmem:[#allocation3 + $0x108] sm:$0xff] %v494
      %507 = vst [vmem:[#allocation3 + $0x110] sm:$0xff] %v495
      %508 = vst [vmem:[#allocation3 + $0x118] sm:$0xff] %v496
      %v509 = vld [vmem:[#allocation2] sm:$0xff]
      %v510 = vld [vmem:[#allocation2 + $0x8] sm:$0xff]
      %v511 = vld [vmem:[#allocation2 + $0x10] sm:$0xff]
      %v512 = vld [vmem:[#allocation2 + $0x18] sm:$0xff]
      %v513 = vld [vmem:[#allocation2 + $0x20] sm:$0xff]
      %v514 = vld [vmem:[#allocation2 + $0x28] sm:$0xff]
      %v515 = vld [vmem:[#allocation2 + $0x30] sm:$0xff]
      %v516 = vld [vmem:[#allocation2 + $0x38] sm:$0xff]
      %525 = vrot.lane.b32.xlu0 %v509, 92
      %v526 = vpop.permute.xlu0 %525
      %527 = vrot.lane.b32.xlu0 %v510, 92
      %v528 = vpop.permute.xlu0 %527
      %529 = vrot.lane.b32.xlu0 %v511, 92
      %v530 = vpop.permute.xlu0 %529
      %531 = vrot.lane.b32.xlu0 %v512, 92
      %v532 = vpop.permute.xlu0 %531
      %533 = vrot.lane.b32.xlu0 %v513, 92
      %v534 = vpop.permute.xlu0 %533
      %535 = vrot.lane.b32.xlu0 %v514, 92
      %v536 = vpop.permute.xlu0 %535
      %537 = vrot.lane.b32.xlu0 %v515, 92
      %v538 = vpop.permute.xlu0 %537
      %539 = vrot.lane.b32.xlu0 %v516, 92
      %v540 = vpop.permute.xlu0 %539
      %vm541 = vcmask 752640
      %v542 = vsel %vm541, %v526, %v528
      %v543 = vsel %vm541, %v528, %v530
      %v544 = vsel %vm541, %v530, %v532
      %v545 = vsel %vm541, %v534, %v536
      %v546 = vsel %vm541, %v536, %v538
      %v547 = vsel %vm541, %v538, %v540
      %554 = vst [vmem:[#allocation3 + $0x120] sm:$0xff] %v542
      %555 = vst [vmem:[#allocation3 + $0x128] sm:$0xff] %v543
      %556 = vst [vmem:[#allocation3 + $0x130] sm:$0xff] %v544
      %557 = vst [vmem:[#allocation3 + $0x138] sm:$0xff] %v545
      %558 = vst [vmem:[#allocation3 + $0x140] sm:$0xff] %v546
      %559 = vst [vmem:[#allocation3 + $0x148] sm:$0xff] %v547
      %v560 = vld [vmem:[#allocation2] sm:$0xff]
      %v561 = vld [vmem:[#allocation2 + $0x8] sm:$0xff]
      %v562 = vld [vmem:[#allocation2 + $0x10] sm:$0xff]
      %v563 = vld [vmem:[#allocation2 + $0x18] sm:$0xff]
      %v564 = vld [vmem:[#allocation2 + $0x20] sm:$0xff]
      %v565 = vld [vmem:[#allocation2 + $0x28] sm:$0xff]
      %v566 = vld [vmem:[#allocation2 + $0x30] sm:$0xff]
      %v567 = vld [vmem:[#allocation2 + $0x38] sm:$0xff]
      %576 = vrot.lane.b32.xlu0 %v560, 91
      %v577 = vpop.permute.xlu0 %576
      %578 = vrot.lane.b32.xlu0 %v561, 91
      %v579 = vpop.permute.xlu0 %578
      %580 = vrot.lane.b32.xlu0 %v562, 91
      %v581 = vpop.permute.xlu0 %580
      %582 = vrot.lane.b32.xlu0 %v563, 91
      %v583 = vpop.permute.xlu0 %582
      %584 = vrot.lane.b32.xlu0 %v564, 91
      %v585 = vpop.permute.xlu0 %584
      %586 = vrot.lane.b32.xlu0 %v565, 91
      %v587 = vpop.permute.xlu0 %586
      %588 = vrot.lane.b32.xlu0 %v566, 91
      %v589 = vpop.permute.xlu0 %588
      %590 = vrot.lane.b32.xlu0 %v567, 91
      %v591 = vpop.permute.xlu0 %590
      %vm592 = vcmask 744448
      %v593 = vsel %vm592, %v577, %v579
      %v594 = vsel %vm592, %v579, %v581
      %v595 = vsel %vm592, %v581, %v583
      %v596 = vsel %vm592, %v585, %v587
      %v597 = vsel %vm592, %v587, %v589
      %v598 = vsel %vm592, %v589, %v591
      %605 = vst [vmem:[#allocation3 + $0x150] sm:$0xff] %v593
      %606 = vst [vmem:[#allocation3 + $0x158] sm:$0xff] %v594
      %607 = vst [vmem:[#allocation3 + $0x160] sm:$0xff] %v595
      %608 = vst [vmem:[#allocation3 + $0x168] sm:$0xff] %v596
      %609 = vst [vmem:[#allocation3 + $0x170] sm:$0xff] %v597
      %610 = vst [vmem:[#allocation3 + $0x178] sm:$0xff] %v598
      %v611 = vld [vmem:[#allocation2] sm:$0xff]
      %v612 = vld [vmem:[#allocation2 + $0x8] sm:$0xff]
      %v613 = vld [vmem:[#allocation2 + $0x10] sm:$0xff]
      %v614 = vld [vmem:[#allocation2 + $0x18] sm:$0xff]
      %v615 = vld [vmem:[#allocation2 + $0x20] sm:$0xff]
      %v616 = vld [vmem:[#allocation2 + $0x28] sm:$0xff]
      %v617 = vld [vmem:[#allocation2 + $0x30] sm:$0xff]
      %v618 = vld [vmem:[#allocation2 + $0x38] sm:$0xff]
      %627 = vrot.lane.b32.xlu0 %v611, 90
      %v628 = vpop.permute.xlu0 %627
      %629 = vrot.lane.b32.xlu0 %v612, 90
      %v630 = vpop.permute.xlu0 %629
      %631 = vrot.lane.b32.xlu0 %v613, 90
      %v632 = vpop.permute.xlu0 %631
      %633 = vrot.lane.b32.xlu0 %v614, 90
      %v634 = vpop.permute.xlu0 %633
      %635 = vrot.lane.b32.xlu0 %v615, 90
      %v636 = vpop.permute.xlu0 %635
      %637 = vrot.lane.b32.xlu0 %v616, 90
      %v638 = vpop.permute.xlu0 %637
      %639 = vrot.lane.b32.xlu0 %v617, 90
      %v640 = vpop.permute.xlu0 %639
      %641 = vrot.lane.b32.xlu0 %v618, 90
      %v642 = vpop.permute.xlu0 %641
      %vm643 = vcmask 736256
      %v644 = vsel %vm643, %v628, %v630
      %v645 = vsel %vm643, %v630, %v632
      %v646 = vsel %vm643, %v632, %v634
      %v647 = vsel %vm643, %v636, %v638
      %v648 = vsel %vm643, %v638, %v640
      %v649 = vsel %vm643, %v640, %v642
      %656 = vst [vmem:[#allocation3 + $0x180] sm:$0xff] %v644
      %657 = vst [vmem:[#allocation3 + $0x188] sm:$0xff] %v645
      %658 = vst [vmem:[#allocation3 + $0x190] sm:$0xff] %v646
      %659 = vst [vmem:[#allocation3 + $0x198] sm:$0xff] %v647
      %660 = vst [vmem:[#allocation3 + $0x1a0] sm:$0xff] %v648
      %661 = vst [vmem:[#allocation3 + $0x1a8] sm:$0xff] %v649
      %v662 = vld [vmem:[%s1] sm:$0xff]
      %v663 = vld [vmem:[%s1 + $0x8] sm:$0xff]
      %v664 = vld [vmem:[%s1 + $0x10] sm:$0xff]
      %v665 = vld [vmem:[%s1 + $0x18] sm:$0xff]
      %v666 = vld [vmem:[#allocation3] sm:$0xff]
      %v667 = vld [vmem:[#allocation3 + $0x8] sm:$0xff]
      %v668 = vld [vmem:[#allocation3 + $0x10] sm:$0xff]
      %v669 = vld [vmem:[#allocation3 + $0x18] sm:$0xff]
      %v670 = vld [vmem:[#allocation3 + $0x20] sm:$0xff]
      %v671 = vld [vmem:[#allocation3 + $0x28] sm:$0xff]
      %v672 = vld [vmem:[#allocation3 + $0x30] sm:$0xff]
      %v673 = vld [vmem:[#allocation3 + $0x38] sm:$0xff]
      %v674 = vld [vmem:[#allocation3 + $0x40] sm:$0xff]
      %v675 = vld [vmem:[#allocation3 + $0x48] sm:$0xff]
      %v676 = vld [vmem:[#allocation3 + $0x50] sm:$0xff]
      %v677 = vld [vmem:[#allocation3 + $0x58] sm:$0xff]
      %v678 = vld [vmem:[#allocation3 + $0x60] sm:$0xff]
      %v679 = vld [vmem:[#allocation3 + $0x68] sm:$0xff]
      %v680 = vld [vmem:[#allocation3 + $0x70] sm:$0xff]
      %v681 = vld [vmem:[#allocation3 + $0x78] sm:$0xff]
      %v682 = vld [vmem:[#allocation3 + $0x80] sm:$0xff]
      %v683 = vld [vmem:[#allocation3 + $0x88] sm:$0xff]
      %v684 = vld [vmem:[#allocation3 + $0x90] sm:$0xff]
      %v685 = vld [vmem:[#allocation3 + $0x98] sm:$0xff]
      %v686 = vld [vmem:[#allocation3 + $0xa0] sm:$0xff]
      %v687 = vld [vmem:[#allocation3 + $0xa8] sm:$0xff]
      %v688 = vld [vmem:[#allocation3 + $0xb0] sm:$0xff]
      %v689 = vld [vmem:[#allocation3 + $0xb8] sm:$0xff]
      %v690 = vld [vmem:[#allocation3 + $0xc0] sm:$0xff]
      %v691 = vld [vmem:[#allocation3 + $0xc8] sm:$0xff]
      %v692 = vld [vmem:[#allocation3 + $0xd0] sm:$0xff]
      %v693 = vld [vmem:[#allocation3 + $0xd8] sm:$0xff]
      %v694 = vld [vmem:[#allocation3 + $0xe0] sm:$0xff]
      %v695 = vld [vmem:[#allocation3 + $0xe8] sm:$0xff]
      %v696 = vld [vmem:[#allocation3 + $0xf0] sm:$0xff]
      %v697 = vld [vmem:[#allocation3 + $0xf8] sm:$0xff]
      %v698 = vld [vmem:[#allocation3 + $0x100] sm:$0xff]
      %v699 = vld [vmem:[#allocation3 + $0x108] sm:$0xff]
      %v700 = vld [vmem:[#allocation3 + $0x110] sm:$0xff]
      %v701 = vld [vmem:[#allocation3 + $0x118] sm:$0xff]
      %v702 = vld [vmem:[#allocation3 + $0x120] sm:$0xff]
      %v703 = vld [vmem:[#allocation3 + $0x128] sm:$0xff]
      %v704 = vld [vmem:[#allocation3 + $0x130] sm:$0xff]
      %v705 = vld [vmem:[#allocation3 + $0x138] sm:$0xff]
      %v706 = vld [vmem:[#allocation3 + $0x140] sm:$0xff]
      %v707 = vld [vmem:[#allocation3 + $0x148] sm:$0xff]
      %v708 = vld [vmem:[#allocation3 + $0x150] sm:$0xff]
      %v709 = vld [vmem:[#allocation3 + $0x158] sm:$0xff]
      %v710 = vld [vmem:[#allocation3 + $0x160] sm:$0xff]
      %v711 = vld [vmem:[#allocation3 + $0x168] sm:$0xff]
      %v712 = vld [vmem:[#allocation3 + $0x170] sm:$0xff]
      %v713 = vld [vmem:[#allocation3 + $0x178] sm:$0xff]
      %v714 = vld [vmem:[#allocation3 + $0x180] sm:$0xff]
      %v715 = vld [vmem:[#allocation3 + $0x188] sm:$0xff]
      %v716 = vld [vmem:[#allocation3 + $0x190] sm:$0xff]
      %v717 = vld [vmem:[#allocation3 + $0x198] sm:$0xff]
      %v718 = vld [vmem:[#allocation3 + $0x1a0] sm:$0xff]
      %v719 = vld [vmem:[#allocation3 + $0x1a8] sm:$0xff]
      %v720 = vld [vmem:[#allocation3 + $0x1b0] sm:$0xff]
      %v721 = vld [vmem:[#allocation3 + $0x1b8] sm:$0xff]
      %v722 = vld [vmem:[#allocation3 + $0x1c0] sm:$0xff]
      %vm723 = vcmask 195584
      %v725 = vsel %vm723, %v663, 0
      %v728 = vsel %vm723, %v665, 0
      %730 = vmatprep.subr.mxu0 %v667
      %731 = vmatpush1.msra.mxu0 %v666
      %732 = vmatprep.subr.mxu0 %v670
      %733 = vmatpush1.msra.mxu0 %v669
      %734 = vmatprep.subr.mxu0 %v673
      %735 = vmatpush1.msra.mxu0 %v672
      %736 = vmatprep.subr.mxu0 %v676
      %737 = vmatpush1.msra.mxu0 %v675
      %738 = vmatprep.subr.mxu0 %v679
      %739 = vmatpush1.msra.mxu0 %v678
      %740 = vmatprep.subr.mxu0 %v682
      %741 = vmatpush1.msra.mxu0 %v681
      %742 = vmatprep.subr.mxu0 %v685
      %743 = vmatpush1.msra.mxu0 %v684
      %744 = vmatprep.subr.mxu0 %v688
      %745 = vmatpush1.msra.mxu0 %v687
      %746 = vmatprep.subr.mxu0 %v691
      %747 = vmatpush1.msra.mxu0 %v690
      %748 = vmatprep.subr.mxu0 %v694
      %749 = vmatpush1.msra.mxu0 %v693
      %750 = vmatprep.subr.mxu0 %v697
      %751 = vmatpush1.msra.mxu0 %v696
      %752 = vmatprep.subr.mxu0 %v700
      %753 = vmatpush1.msra.mxu0 %v699
      %754 = vmatprep.subr.mxu0 %v703
      %755 = vmatpush1.msra.mxu0 %v702
      %756 = vmatprep.subr.mxu0 %v706
      %757 = vmatpush1.msra.mxu0 %v705
      %758 = vmatprep.subr.mxu0 %v709
      %759 = vmatpush1.msra.mxu0 %v708
      %760 = vmatprep.subr.mxu0 %v712
      %761 = vmatpush1.msra.mxu0 %v711
      %762 = vmatprep.subr.mxu0 %v715
      %763 = vmatpush1.msra.mxu0 %v714
      %764 = vmatprep.subr.mxu0 %v718
      %765 = vmatpush1.msra.mxu0 %v717
      %766 = vmatprep.subr.mxu0 %v721
      %767 = vmatpush1.msra.mxu0 %v720
      %768 = vmatprep.subr.mxu0 0.0
      %769 = vmatpush1.msra.mxu0 0.0
      %770 = vmatprep.subr.mxu0 0.0
      %771 = vmatpush1.msra.mxu0 0.0
      %772 = vmatprep.subr.mxu0 0.0
      %773 = vmatpush1.msra.mxu0 0.0
      %774 = vmatprep.subr.mxu0 0.0
      %775 = vmatpush1.msra.mxu0 0.0
      %776 = vmatprep.subr.mxu0 0.0
      %777 = vmatpush1.msra.mxu0 0.0
      %778 = vmatprep.subr.mxu0 0.0
      %779 = vmatpush1.msra.mxu0 0.0
      %780 = vmatprep.subr.mxu0 0.0
      %781 = vmatpush1.msra.mxu0 0.0
      %782 = vmatprep.subr.mxu0 0.0
      %783 = vmatpush1.msra.mxu0 0.0
      %784 = vmatprep.subr.mxu0 0.0
      %785 = vmatpush1.msra.mxu0 0.0
      %786 = vmatprep.subr.mxu0 0.0
      %787 = vmatpush1.msra.mxu0 0.0
      %788 = vmatprep.subr.mxu0 0.0
      %789 = vmatpush1.msra.mxu0 0.0
      %790 = vmatprep.subr.mxu0 0.0
      %791 = vmatpush1.msra.mxu0 0.0
      %792 = vmatprep.subr.mxu0 0.0
      %793 = vmatpush1.msra.mxu0 0.0
      %794 = vmatprep.mubr.f32.mxu0 %v725
      %795 = vmatmul.mubr.f32.gmra.mrb[0].mxu0 %v662
      %v796 = vpop.f32.mrb[0].mxu0
      %v797 = vadd.f32 0.0, %v796
      %v798 = vpop.f32.mrb[0].mxu0
      %v799 = vadd.f32 0.0, %v798
      %800 = vmatprep.mubr.f32.mxu0 %v728
      %801 = vmatmul.mubr.f32.gmra.mrb[0].mxu0 %v664
      %v802 = vpop.f32.mrb[0].mxu0
      %v803 = vadd.f32 0.0, %v802
      %v804 = vpop.f32.mrb[0].mxu0
      %v805 = vadd.f32 0.0, %v804
      %806 = vdwg.mxu0
      %807 = vmatprep.subr.mxu0 0.0
      %808 = vmatpush1.msra.mxu0 %v668
      %809 = vmatprep.subr.mxu0 0.0
      %810 = vmatpush1.msra.mxu0 %v671
      %811 = vmatprep.subr.mxu0 0.0
      %812 = vmatpush1.msra.mxu0 %v674
      %813 = vmatprep.subr.mxu0 0.0
      %814 = vmatpush1.msra.mxu0 %v677
      %815 = vmatprep.subr.mxu0 0.0
      %816 = vmatpush1.msra.mxu0 %v680
      %817 = vmatprep.subr.mxu0 0.0
      %818 = vmatpush1.msra.mxu0 %v683
      %819 = vmatprep.subr.mxu0 0.0
      %820 = vmatpush1.msra.mxu0 %v686
      %821 = vmatprep.subr.mxu0 0.0
      %822 = vmatpush1.msra.mxu0 %v689
      %823 = vmatprep.subr.mxu0 0.0
      %824 = vmatpush1.msra.mxu0 %v692
      %825 = vmatprep.subr.mxu0 0.0
      %826 = vmatpush1.msra.mxu0 %v695
      %827 = vmatprep.subr.mxu0 0.0
      %828 = vmatpush1.msra.mxu0 %v698
      %829 = vmatprep.subr.mxu0 0.0
      %830 = vmatpush1.msra.mxu0 %v701
      %831 = vmatprep.subr.mxu0 0.0
      %832 = vmatpush1.msra.mxu0 %v704
      %833 = vmatprep.subr.mxu0 0.0
      %834 = vmatpush1.msra.mxu0 %v707
      %835 = vmatprep.subr.mxu0 0.0
      %836 = vmatpush1.msra.mxu0 %v710
      %837 = vmatprep.subr.mxu0 0.0
      %838 = vmatpush1.msra.mxu0 %v713
      %839 = vmatprep.subr.mxu0 0.0
      %840 = vmatpush1.msra.mxu0 %v716
      %841 = vmatprep.subr.mxu0 0.0
      %842 = vmatpush1.msra.mxu0 %v719
      %843 = vmatprep.subr.mxu0 0.0
      %844 = vmatpush1.msra.mxu0 %v722
      %845 = vmatprep.subr.mxu0 0.0
      %846 = vmatpush1.msra.mxu0 0.0
      %847 = vmatprep.subr.mxu0 0.0
      %848 = vmatpush1.msra.mxu0 0.0
      %849 = vmatprep.subr.mxu0 0.0
      %850 = vmatpush1.msra.mxu0 0.0
      %851 = vmatprep.subr.mxu0 0.0
      %852 = vmatpush1.msra.mxu0 0.0
      %853 = vmatprep.subr.mxu0 0.0
      %854 = vmatpush1.msra.mxu0 0.0
      %855 = vmatprep.subr.mxu0 0.0
      %856 = vmatpush1.msra.mxu0 0.0
      %857 = vmatprep.subr.mxu0 0.0
      %858 = vmatpush1.msra.mxu0 0.0
      %859 = vmatprep.subr.mxu0 0.0
      %860 = vmatpush1.msra.mxu0 0.0
      %861 = vmatprep.subr.mxu0 0.0
      %862 = vmatpush1.msra.mxu0 0.0
      %863 = vmatprep.subr.mxu0 0.0
      %864 = vmatpush1.msra.mxu0 0.0
      %865 = vmatprep.subr.mxu0 0.0
      %866 = vmatpush1.msra.mxu0 0.0
      %867 = vmatprep.subr.mxu0 0.0
      %868 = vmatpush1.msra.mxu0 0.0
      %869 = vmatprep.subr.mxu0 0.0
      %870 = vmatpush1.msra.mxu0 0.0
      %871 = vmatprep.mubr.f32.mxu0 %v725
      %872 = vmatmul.mubr.f32.gmra.mrb[0].mxu0 %v662
      %v873 = vpop.f32.mrb[0].mxu0
      %v874 = vadd.f32 0.0, %v873
      %v875 = vpop.f32.mrb[0].mxu0
      %876 = vmatprep.mubr.f32.mxu0 %v728
      %877 = vmatmul.mubr.f32.gmra.mrb[0].mxu0 %v664
      %v878 = vpop.f32.mrb[0].mxu0
      %v879 = vadd.f32 0.0, %v878
      %v880 = vpop.f32.mrb[0].mxu0
      %881 = vdwg.mxu0
      %v882 = vsel %vm239, %v797, 0.0
      %v883 = vsel %vm240, %v799, 0.0
      %v884 = vsel %vm241, %v874, 0.0
      %v885 = vsel %vm239, %v803, 0.0
      %v886 = vsel %vm240, %v805, 0.0
      %v887 = vsel %vm241, %v879, 0.0
      %894 = vrot.lane.b32.xlu0 %v882, 19
      %v895 = vpop.permute.xlu0 %894
      %896 = vrot.lane.b32.xlu0 %v883, 19
      %v897 = vpop.permute.xlu0 %896
      %898 = vrot.lane.b32.xlu0 %v884, 19
      %v899 = vpop.permute.xlu0 %898
      %900 = vrot.lane.b32.xlu0 %v885, 19
      %v901 = vpop.permute.xlu0 %900
      %902 = vrot.lane.b32.xlu0 %v886, 19
      %v903 = vpop.permute.xlu0 %902
      %904 = vrot.lane.b32.xlu0 %v887, 19
      %v905 = vpop.permute.xlu0 %904
      %v906 = vsel %vm202, %v895, %v897
      %v907 = vsel %vm202, %v897, %v899
      %v908 = vsel %vm202, %v901, %v903
      %v909 = vsel %vm202, %v903, %v905
      %918 = vst.msk [vmem:[#allocation2] sm:$0xff] %vm215, %v895
      %919 = vst [vmem:[#allocation2 + $0x8] sm:$0xff] %v906
      %920 = vst [vmem:[#allocation2 + $0x10] sm:$0xff] %v907
      %921 = vst.msk [vmem:[#allocation2 + $0x18] sm:$0xff] %vm202, %v899
      %922 = vst.msk [vmem:[#allocation2 + $0x20] sm:$0xff] %vm215, %v901
      %923 = vst [vmem:[#allocation2 + $0x28] sm:$0xff] %v908
      %924 = vst [vmem:[#allocation2 + $0x30] sm:$0xff] %v909
      %925 = vst.msk [vmem:[#allocation2 + $0x38] sm:$0xff] %vm202, %v905
      %v926 = vld [vmem:[#allocation2] sm:$0xff]
      %v927 = vld [vmem:[#allocation2 + $0x8] sm:$0xff]
      %v928 = vld [vmem:[#allocation2 + $0x10] sm:$0xff]
      %v929 = vld [vmem:[#allocation2 + $0x20] sm:$0xff]
      %v930 = vld [vmem:[#allocation2 + $0x28] sm:$0xff]
      %v931 = vld [vmem:[#allocation2 + $0x30] sm:$0xff]
      %932 = vst [vmem:[#allocation3] sm:$0xff] %v926
      %933 = vst [vmem:[#allocation3 + $0x8] sm:$0xff] %v927
      %934 = vst [vmem:[#allocation3 + $0x10] sm:$0xff] %v928
      %935 = vst [vmem:[#allocation3 + $0x18] sm:$0xff] %v929
      %936 = vst [vmem:[#allocation3 + $0x20] sm:$0xff] %v930
      %937 = vst [vmem:[#allocation3 + $0x28] sm:$0xff] %v931
      %v938 = vld [vmem:[#allocation2] sm:$0xff]
      %v939 = vld [vmem:[#allocation2 + $0x8] sm:$0xff]
      %v940 = vld [vmem:[#allocation2 + $0x10] sm:$0xff]
      %v941 = vld [vmem:[#allocation2 + $0x18] sm:$0xff]
      %v942 = vld [vmem:[#allocation2 + $0x20] sm:$0xff]
      %v943 = vld [vmem:[#allocation2 + $0x28] sm:$0xff]
      %v944 = vld [vmem:[#allocation2 + $0x30] sm:$0xff]
      %v945 = vld [vmem:[#allocation2 + $0x38] sm:$0xff]
      %954 = vrot.lane.b32.xlu0 %v938, 127
      %v955 = vpop.permute.xlu0 %954
      %956 = vrot.lane.b32.xlu0 %v939, 127
      %v957 = vpop.permute.xlu0 %956
      %958 = vrot.lane.b32.xlu0 %v940, 127
      %v959 = vpop.permute.xlu0 %958
      %960 = vrot.lane.b32.xlu0 %v941, 127
      %v961 = vpop.permute.xlu0 %960
      %962 = vrot.lane.b32.xlu0 %v942, 127
      %v963 = vpop.permute.xlu0 %962
      %964 = vrot.lane.b32.xlu0 %v943, 127
      %v965 = vpop.permute.xlu0 %964
      %966 = vrot.lane.b32.xlu0 %v944, 127
      %v967 = vpop.permute.xlu0 %966
      %968 = vrot.lane.b32.xlu0 %v945, 127
      %v969 = vpop.permute.xlu0 %968
      %v970 = vsel %vm286, %v955, %v957
      %v971 = vsel %vm286, %v957, %v959
      %v972 = vsel %vm286, %v959, %v961
      %v973 = vsel %vm286, %v963, %v965
      %v974 = vsel %vm286, %v965, %v967
      %v975 = vsel %vm286, %v967, %v969
      %982 = vst [vmem:[#allocation3 + $0x30] sm:$0xff] %v970
      %983 = vst [vmem:[#allocation3 + $0x38] sm:$0xff] %v971
      %984 = vst [vmem:[#allocation3 + $0x40] sm:$0xff] %v972
      %985 = vst [vmem:[#allocation3 + $0x48] sm:$0xff] %v973
      %986 = vst [vmem:[#allocation3 + $0x50] sm:$0xff] %v974
      %987 = vst [vmem:[#allocation3 + $0x58] sm:$0xff] %v975
      %v988 = vld [vmem:[#allocation2] sm:$0xff]
      %v989 = vld [vmem:[#allocation2 + $0x8] sm:$0xff]
      %v990 = vld [vmem:[#allocation2 + $0x10] sm:$0xff]
      %v991 = vld [vmem:[#allocation2 + $0x18] sm:$0xff]
      %v992 = vld [vmem:[#allocation2 + $0x20] sm:$0xff]
      %v993 = vld [vmem:[#allocation2 + $0x28] sm:$0xff]
      %v994 = vld [vmem:[#allocation2 + $0x30] sm:$0xff]
      %v995 = vld [vmem:[#allocation2 + $0x38] sm:$0xff]
      %1004 = vrot.lane.b32.xlu0 %v988, 126
      %v1005 = vpop.permute.xlu0 %1004
      %1006 = vrot.lane.b32.xlu0 %v989, 126
      %v1007 = vpop.permute.xlu0 %1006
      %1008 = vrot.lane.b32.xlu0 %v990, 126
      %v1009 = vpop.permute.xlu0 %1008
      %1010 = vrot.lane.b32.xlu0 %v991, 126
      %v1011 = vpop.permute.xlu0 %1010
      %1012 = vrot.lane.b32.xlu0 %v992, 126
      %v1013 = vpop.permute.xlu0 %1012
      %1014 = vrot.lane.b32.xlu0 %v993, 126
      %v1015 = vpop.permute.xlu0 %1014
      %1016 = vrot.lane.b32.xlu0 %v994, 126
      %v1017 = vpop.permute.xlu0 %1016
      %1018 = vrot.lane.b32.xlu0 %v995, 126
      %v1019 = vpop.permute.xlu0 %1018
      %v1020 = vsel %vm337, %v1005, %v1007
      %v1021 = vsel %vm337, %v1007, %v1009
      %v1022 = vsel %vm337, %v1009, %v1011
      %v1023 = vsel %vm337, %v1013, %v1015
      %v1024 = vsel %vm337, %v1015, %v1017
      %v1025 = vsel %vm337, %v1017, %v1019
      %1032 = vst [vmem:[#allocation3 + $0x60] sm:$0xff] %v1020
      %1033 = vst [vmem:[#allocation3 + $0x68] sm:$0xff] %v1021
      %1034 = vst [vmem:[#allocation3 + $0x70] sm:$0xff] %v1022
      %1035 = vst [vmem:[#allocation3 + $0x78] sm:$0xff] %v1023
      %1036 = vst [vmem:[#allocation3 + $0x80] sm:$0xff] %v1024
      %1037 = vst [vmem:[#allocation3 + $0x88] sm:$0xff] %v1025
      %v1038 = vld [vmem:[#allocation2] sm:$0xff]
      %v1039 = vld [vmem:[#allocation2 + $0x8] sm:$0xff]
      %v1040 = vld [vmem:[#allocation2 + $0x10] sm:$0xff]
      %v1041 = vld [vmem:[#allocation2 + $0x18] sm:$0xff]
      %v1042 = vld [vmem:[#allocation2 + $0x20] sm:$0xff]
      %v1043 = vld [vmem:[#allocation2 + $0x28] sm:$0xff]
      %v1044 = vld [vmem:[#allocation2 + $0x30] sm:$0xff]
      %v1045 = vld [vmem:[#allocation2 + $0x38] sm:$0xff]
      %1054 = vrot.lane.b32.xlu0 %v1038, 110
      %v1055 = vpop.permute.xlu0 %1054
      %1056 = vrot.lane.b32.xlu0 %v1039, 110
      %v1057 = vpop.permute.xlu0 %1056
      %1058 = vrot.lane.b32.xlu0 %v1040, 110
      %v1059 = vpop.permute.xlu0 %1058
      %1060 = vrot.lane.b32.xlu0 %v1041, 110
      %v1061 = vpop.permute.xlu0 %1060
      %1062 = vrot.lane.b32.xlu0 %v1042, 110
      %v1063 = vpop.permute.xlu0 %1062
      %1064 = vrot.lane.b32.xlu0 %v1043, 110
      %v1065 = vpop.permute.xlu0 %1064
      %1066 = vrot.lane.b32.xlu0 %v1044, 110
      %v1067 = vpop.permute.xlu0 %1066
      %1068 = vrot.lane.b32.xlu0 %v1045, 110
      %v1069 = vpop.permute.xlu0 %1068
      %v1070 = vsel %vm388, %v1055, %v1057
      %v1071 = vsel %vm388, %v1057, %v1059
      %v1072 = vsel %vm388, %v1059, %v1061
      %v1073 = vsel %vm388, %v1063, %v1065
      %v1074 = vsel %vm388, %v1065, %v1067
      %v1075 = vsel %vm388, %v1067, %v1069
      %1082 = vst [vmem:[#allocation3 + $0x90] sm:$0xff] %v1070
      %1083 = vst [vmem:[#allocation3 + $0x98] sm:$0xff] %v1071
      %1084 = vst [vmem:[#allocation3 + $0xa0] sm:$0xff] %v1072
      %1085 = vst [vmem:[#allocation3 + $0xa8] sm:$0xff] %v1073
      %1086 = vst [vmem:[#allocation3 + $0xb0] sm:$0xff] %v1074
      %1087 = vst [vmem:[#allocation3 + $0xb8] sm:$0xff] %v1075
      %v1088 = vld [vmem:[#allocation2] sm:$0xff]
      %v1089 = vld [vmem:[#allocation2 + $0x8] sm:$0xff]
      %v1090 = vld [vmem:[#allocation2 + $0x10] sm:$0xff]
      %v1091 = vld [vmem:[#allocation2 + $0x18] sm:$0xff]
      %v1092 = vld [vmem:[#allocation2 + $0x20] sm:$0xff]
      %v1093 = vld [vmem:[#allocation2 + $0x28] sm:$0xff]
      %v1094 = vld [vmem:[#allocation2 + $0x30] sm:$0xff]
      %v1095 = vld [vmem:[#allocation2 + $0x38] sm:$0xff]
      %1104 = vrot.lane.b32.xlu0 %v1088, 109
      %v1105 = vpop.permute.xlu0 %1104
      %1106 = vrot.lane.b32.xlu0 %v1089, 109
      %v1107 = vpop.permute.xlu0 %1106
      %1108 = vrot.lane.b32.xlu0 %v1090, 109
      %v1109 = vpop.permute.xlu0 %1108
      %1110 = vrot.lane.b32.xlu0 %v1091, 109
      %v1111 = vpop.permute.xlu0 %1110
      %1112 = vrot.lane.b32.xlu0 %v1092, 109
      %v1113 = vpop.permute.xlu0 %1112
      %1114 = vrot.lane.b32.xlu0 %v1093, 109
      %v1115 = vpop.permute.xlu0 %1114
      %1116 = vrot.lane.b32.xlu0 %v1094, 109
      %v1117 = vpop.permute.xlu0 %1116
      %1118 = vrot.lane.b32.xlu0 %v1095, 109
      %v1119 = vpop.permute.xlu0 %1118
      %v1120 = vsel %vm439, %v1105, %v1107
      %v1121 = vsel %vm439, %v1107, %v1109
      %v1122 = vsel %vm439, %v1109, %v1111
      %v1123 = vsel %vm439, %v1113, %v1115
      %v1124 = vsel %vm439, %v1115, %v1117
      %v1125 = vsel %vm439, %v1117, %v1119
      %1132 = vst [vmem:[#allocation3 + $0xc0] sm:$0xff] %v1120
      %1133 = vst [vmem:[#allocation3 + $0xc8] sm:$0xff] %v1121
      %1134 = vst [vmem:[#allocation3 + $0xd0] sm:$0xff] %v1122
      %1135 = vst [vmem:[#allocation3 + $0xd8] sm:$0xff] %v1123
      %1136 = vst [vmem:[#allocation3 + $0xe0] sm:$0xff] %v1124
      %1137 = vst [vmem:[#allocation3 + $0xe8] sm:$0xff] %v1125
      %v1138 = vld [vmem:[#allocation2] sm:$0xff]
      %v1139 = vld [vmem:[#allocation2 + $0x8] sm:$0xff]
      %v1140 = vld [vmem:[#allocation2 + $0x10] sm:$0xff]
      %v1141 = vld [vmem:[#allocation2 + $0x18] sm:$0xff]
      %v1142 = vld [vmem:[#allocation2 + $0x20] sm:$0xff]
      %v1143 = vld [vmem:[#allocation2 + $0x28] sm:$0xff]
      %v1144 = vld [vmem:[#allocation2 + $0x30] sm:$0xff]
      %v1145 = vld [vmem:[#allocation2 + $0x38] sm:$0xff]
      %1154 = vrot.lane.b32.xlu0 %v1138, 108
      %v1155 = vpop.permute.xlu0 %1154
      %1156 = vrot.lane.b32.xlu0 %v1139, 108
      %v1157 = vpop.permute.xlu0 %1156
      %1158 = vrot.lane.b32.xlu0 %v1140, 108
      %v1159 = vpop.permute.xlu0 %1158
      %1160 = vrot.lane.b32.xlu0 %v1141, 108
      %v1161 = vpop.permute.xlu0 %1160
      %1162 = vrot.lane.b32.xlu0 %v1142, 108
      %v1163 = vpop.permute.xlu0 %1162
      %1164 = vrot.lane.b32.xlu0 %v1143, 108
      %v1165 = vpop.permute.xlu0 %1164
      %1166 = vrot.lane.b32.xlu0 %v1144, 108
      %v1167 = vpop.permute.xlu0 %1166
      %1168 = vrot.lane.b32.xlu0 %v1145, 108
      %v1169 = vpop.permute.xlu0 %1168
      %v1170 = vsel %vm490, %v1155, %v1157
      %v1171 = vsel %vm490, %v1157, %v1159
      %v1172 = vsel %vm490, %v1159, %v1161
      %v1173 = vsel %vm490, %v1163, %v1165
      %v1174 = vsel %vm490, %v1165, %v1167
      %v1175 = vsel %vm490, %v1167, %v1169
      %1182 = vst [vmem:[#allocation3 + $0xf0] sm:$0xff] %v1170
      %1183 = vst [vmem:[#allocation3 + $0xf8] sm:$0xff] %v1171
      %1184 = vst [vmem:[#allocation3 + $0x100] sm:$0xff] %v1172
      %1185 = vst [vmem:[#allocation3 + $0x108] sm:$0xff] %v1173
      %1186 = vst [vmem:[#allocation3 + $0x110] sm:$0xff] %v1174
      %1187 = vst [vmem:[#allocation3 + $0x118] sm:$0xff] %v1175
      %v1188 = vld [vmem:[#allocation2] sm:$0xff]
      %v1189 = vld [vmem:[#allocation2 + $0x8] sm:$0xff]
      %v1190 = vld [vmem:[#allocation2 + $0x10] sm:$0xff]
      %v1191 = vld [vmem:[#allocation2 + $0x18] sm:$0xff]
      %v1192 = vld [vmem:[#allocation2 + $0x20] sm:$0xff]
      %v1193 = vld [vmem:[#allocation2 + $0x28] sm:$0xff]
      %v1194 = vld [vmem:[#allocation2 + $0x30] sm:$0xff]
      %v1195 = vld [vmem:[#allocation2 + $0x38] sm:$0xff]
      %1204 = vrot.lane.b32.xlu0 %v1188, 92
      %v1205 = vpop.permute.xlu0 %1204
      %1206 = vrot.lane.b32.xlu0 %v1189, 92
      %v1207 = vpop.permute.xlu0 %1206
      %1208 = vrot.lane.b32.xlu0 %v1190, 92
      %v1209 = vpop.permute.xlu0 %1208
      %1210 = vrot.lane.b32.xlu0 %v1191, 92
      %v1211 = vpop.permute.xlu0 %1210
      %1212 = vrot.lane.b32.xlu0 %v1192, 92
      %v1213 = vpop.permute.xlu0 %1212
      %1214 = vrot.lane.b32.xlu0 %v1193, 92
      %v1215 = vpop.permute.xlu0 %1214
      %1216 = vrot.lane.b32.xlu0 %v1194, 92
      %v1217 = vpop.permute.xlu0 %1216
      %1218 = vrot.lane.b32.xlu0 %v1195, 92
      %v1219 = vpop.permute.xlu0 %1218
      %v1220 = vsel %vm541, %v1205, %v1207
      %v1221 = vsel %vm541, %v1207, %v1209
      %v1222 = vsel %vm541, %v1209, %v1211
      %v1223 = vsel %vm541, %v1213, %v1215
      %v1224 = vsel %vm541, %v1215, %v1217
      %v1225 = vsel %vm541, %v1217, %v1219
      %1232 = vst [vmem:[#allocation3 + $0x120] sm:$0xff] %v1220
      %1233 = vst [vmem:[#allocation3 + $0x128] sm:$0xff] %v1221
      %1234 = vst [vmem:[#allocation3 + $0x130] sm:$0xff] %v1222
      %1235 = vst [vmem:[#allocation3 + $0x138] sm:$0xff] %v1223
      %1236 = vst [vmem:[#allocation3 + $0x140] sm:$0xff] %v1224
      %1237 = vst [vmem:[#allocation3 + $0x148] sm:$0xff] %v1225
      %v1238 = vld [vmem:[#allocation2] sm:$0xff]
      %v1239 = vld [vmem:[#allocation2 + $0x8] sm:$0xff]
      %v1240 = vld [vmem:[#allocation2 + $0x10] sm:$0xff]
      %v1241 = vld [vmem:[#allocation2 + $0x18] sm:$0xff]
      %v1242 = vld [vmem:[#allocation2 + $0x20] sm:$0xff]
      %v1243 = vld [vmem:[#allocation2 + $0x28] sm:$0xff]
      %v1244 = vld [vmem:[#allocation2 + $0x30] sm:$0xff]
      %v1245 = vld [vmem:[#allocation2 + $0x38] sm:$0xff]
      %1254 = vrot.lane.b32.xlu0 %v1238, 91
      %v1255 = vpop.permute.xlu0 %1254
      %1256 = vrot.lane.b32.xlu0 %v1239, 91
      %v1257 = vpop.permute.xlu0 %1256
      %1258 = vrot.lane.b32.xlu0 %v1240, 91
      %v1259 = vpop.permute.xlu0 %1258
      %1260 = vrot.lane.b32.xlu0 %v1241, 91
      %v1261 = vpop.permute.xlu0 %1260
      %1262 = vrot.lane.b32.xlu0 %v1242, 91
      %v1263 = vpop.permute.xlu0 %1262
      %1264 = vrot.lane.b32.xlu0 %v1243, 91
      %v1265 = vpop.permute.xlu0 %1264
      %1266 = vrot.lane.b32.xlu0 %v1244, 91
      %v1267 = vpop.permute.xlu0 %1266
      %1268 = vrot.lane.b32.xlu0 %v1245, 91
      %v1269 = vpop.permute.xlu0 %1268
      %v1270 = vsel %vm592, %v1255, %v1257
      %v1271 = vsel %vm592, %v1257, %v1259
      %v1272 = vsel %vm592, %v1259, %v1261
      %v1273 = vsel %vm592, %v1263, %v1265
      %v1274 = vsel %vm592, %v1265, %v1267
      %v1275 = vsel %vm592, %v1267, %v1269
      %1282 = vst [vmem:[#allocation3 + $0x150] sm:$0xff] %v1270
      %1283 = vst [vmem:[#allocation3 + $0x158] sm:$0xff] %v1271
      %1284 = vst [vmem:[#allocation3 + $0x160] sm:$0xff] %v1272
      %1285 = vst [vmem:[#allocation3 + $0x168] sm:$0xff] %v1273
      %1286 = vst [vmem:[#allocation3 + $0x170] sm:$0xff] %v1274
      %1287 = vst [vmem:[#allocation3 + $0x178] sm:$0xff] %v1275
      %v1288 = vld [vmem:[#allocation2] sm:$0xff]
      %v1289 = vld [vmem:[#allocation2 + $0x8] sm:$0xff]
      %v1290 = vld [vmem:[#allocation2 + $0x10] sm:$0xff]
      %v1291 = vld [vmem:[#allocation2 + $0x18] sm:$0xff]
      %v1292 = vld [vmem:[#allocation2 + $0x20] sm:$0xff]
      %v1293 = vld [vmem:[#allocation2 + $0x28] sm:$0xff]
      %v1294 = vld [vmem:[#allocation2 + $0x30] sm:$0xff]
      %v1295 = vld [vmem:[#allocation2 + $0x38] sm:$0xff]
      %1304 = vrot.lane.b32.xlu0 %v1288, 90
      %v1305 = vpop.permute.xlu0 %1304
      %1306 = vrot.lane.b32.xlu0 %v1289, 90
      %v1307 = vpop.permute.xlu0 %1306
      %1308 = vrot.lane.b32.xlu0 %v1290, 90
      %v1309 = vpop.permute.xlu0 %1308
      %1310 = vrot.lane.b32.xlu0 %v1291, 90
      %v1311 = vpop.permute.xlu0 %1310
      %1312 = vrot.lane.b32.xlu0 %v1292, 90
      %v1313 = vpop.permute.xlu0 %1312
      %1314 = vrot.lane.b32.xlu0 %v1293, 90
      %v1315 = vpop.permute.xlu0 %1314
      %1316 = vrot.lane.b32.xlu0 %v1294, 90
      %v1317 = vpop.permute.xlu0 %1316
      %1318 = vrot.lane.b32.xlu0 %v1295, 90
      %v1319 = vpop.permute.xlu0 %1318
      %v1320 = vsel %vm643, %v1305, %v1307
      %v1321 = vsel %vm643, %v1307, %v1309
      %v1322 = vsel %vm643, %v1309, %v1311
      %v1323 = vsel %vm643, %v1313, %v1315
      %v1324 = vsel %vm643, %v1315, %v1317
      %v1325 = vsel %vm643, %v1317, %v1319
      %1332 = vst [vmem:[#allocation3 + $0x180] sm:$0xff] %v1320
      %1333 = vst [vmem:[#allocation3 + $0x188] sm:$0xff] %v1321
      %1334 = vst [vmem:[#allocation3 + $0x190] sm:$0xff] %v1322
      %1335 = vst [vmem:[#allocation3 + $0x198] sm:$0xff] %v1323
      %1336 = vst [vmem:[#allocation3 + $0x1a0] sm:$0xff] %v1324
      %1337 = vst [vmem:[#allocation3 + $0x1a8] sm:$0xff] %v1325
      %s1338 = scalar_lea.vmem %s1, 32
      %v1339 = vld [vmem:[%s1338] sm:$0xff]
      %v1340 = vld [vmem:[%s1338 + $0x8] sm:$0xff]
      %v1341 = vld [vmem:[%s1338 + $0x10] sm:$0xff]
      %v1342 = vld [vmem:[%s1338 + $0x18] sm:$0xff]
      %v1343 = vld [vmem:[#allocation3] sm:$0xff]
      %v1344 = vld [vmem:[#allocation3 + $0x8] sm:$0xff]
      %v1345 = vld [vmem:[#allocation3 + $0x10] sm:$0xff]
      %v1346 = vld [vmem:[#allocation3 + $0x18] sm:$0xff]
      %v1347 = vld [vmem:[#allocation3 + $0x20] sm:$0xff]
      %v1348 = vld [vmem:[#allocation3 + $0x28] sm:$0xff]
      %v1349 = vld [vmem:[#allocation3 + $0x30] sm:$0xff]
      %v1350 = vld [vmem:[#allocation3 + $0x38] sm:$0xff]
      %v1351 = vld [vmem:[#allocation3 + $0x40] sm:$0xff]
      %v1352 = vld [vmem:[#allocation3 + $0x48] sm:$0xff]
      %v1353 = vld [vmem:[#allocation3 + $0x50] sm:$0xff]
      %v1354 = vld [vmem:[#allocation3 + $0x58] sm:$0xff]
      %v1355 = vld [vmem:[#allocation3 + $0x60] sm:$0xff]
      %v1356 = vld [vmem:[#allocation3 + $0x68] sm:$0xff]
      %v1357 = vld [vmem:[#allocation3 + $0x70] sm:$0xff]
      %v1358 = vld [vmem:[#allocation3 + $0x78] sm:$0xff]
      %v1359 = vld [vmem:[#allocation3 + $0x80] sm:$0xff]
      %v1360 = vld [vmem:[#allocation3 + $0x88] sm:$0xff]
      %v1361 = vld [vmem:[#allocation3 + $0x90] sm:$0xff]
      %v1362 = vld [vmem:[#allocation3 + $0x98] sm:$0xff]
      %v1363 = vld [vmem:[#allocation3 + $0xa0] sm:$0xff]
      %v1364 = vld [vmem:[#allocation3 + $0xa8] sm:$0xff]
      %v1365 = vld [vmem:[#allocation3 + $0xb0] sm:$0xff]
      %v1366 = vld [vmem:[#allocation3 + $0xb8] sm:$0xff]
      %v1367 = vld [vmem:[#allocation3 + $0xc0] sm:$0xff]
      %v1368 = vld [vmem:[#allocation3 + $0xc8] sm:$0xff]
      %v1369 = vld [vmem:[#allocation3 + $0xd0] sm:$0xff]
      %v1370 = vld [vmem:[#allocation3 + $0xd8] sm:$0xff]
      %v1371 = vld [vmem:[#allocation3 + $0xe0] sm:$0xff]
      %v1372 = vld [vmem:[#allocation3 + $0xe8] sm:$0xff]
      %v1373 = vld [vmem:[#allocation3 + $0xf0] sm:$0xff]
      %v1374 = vld [vmem:[#allocation3 + $0xf8] sm:$0xff]
      %v1375 = vld [vmem:[#allocation3 + $0x100] sm:$0xff]
      %v1376 = vld [vmem:[#allocation3 + $0x108] sm:$0xff]
      %v1377 = vld [vmem:[#allocation3 + $0x110] sm:$0xff]
      %v1378 = vld [vmem:[#allocation3 + $0x118] sm:$0xff]
      %v1379 = vld [vmem:[#allocation3 + $0x120] sm:$0xff]
      %v1380 = vld [vmem:[#allocation3 + $0x128] sm:$0xff]
      %v1381 = vld [vmem:[#allocation3 + $0x130] sm:$0xff]
      %v1382 = vld [vmem:[#allocation3 + $0x138] sm:$0xff]
      %v1383 = vld [vmem:[#allocation3 + $0x140] sm:$0xff]
      %v1384 = vld [vmem:[#allocation3 + $0x148] sm:$0xff]
      %v1385 = vld [vmem:[#allocation3 + $0x150] sm:$0xff]
      %v1386 = vld [vmem:[#allocation3 + $0x158] sm:$0xff]
      %v1387 = vld [vmem:[#allocation3 + $0x160] sm:$0xff]
      %v1388 = vld [vmem:[#allocation3 + $0x168] sm:$0xff]
      %v1389 = vld [vmem:[#allocation3 + $0x170] sm:$0xff]
      %v1390 = vld [vmem:[#allocation3 + $0x178] sm:$0xff]
      %v1391 = vld [vmem:[#allocation3 + $0x180] sm:$0xff]
      %v1392 = vld [vmem:[#allocation3 + $0x188] sm:$0xff]
      %v1393 = vld [vmem:[#allocation3 + $0x190] sm:$0xff]
      %v1394 = vld [vmem:[#allocation3 + $0x198] sm:$0xff]
      %v1395 = vld [vmem:[#allocation3 + $0x1a0] sm:$0xff]
      %v1396 = vld [vmem:[#allocation3 + $0x1a8] sm:$0xff]
      %v1397 = vld [vmem:[#allocation3 + $0x1b0] sm:$0xff]
      %v1398 = vld [vmem:[#allocation3 + $0x1b8] sm:$0xff]
      %v1399 = vld [vmem:[#allocation3 + $0x1c0] sm:$0xff]
      %v1401 = vsel %vm723, %v1340, 0
      %v1404 = vsel %vm723, %v1342, 0
      %1406 = vmatprep.subr.mxu0 %v1344
      %1407 = vmatpush1.msra.mxu0 %v1343
      %1408 = vmatprep.subr.mxu0 %v1347
      %1409 = vmatpush1.msra.mxu0 %v1346
      %1410 = vmatprep.subr.mxu0 %v1350
      %1411 = vmatpush1.msra.mxu0 %v1349
      %1412 = vmatprep.subr.mxu0 %v1353
      %1413 = vmatpush1.msra.mxu0 %v1352
      %1414 = vmatprep.subr.mxu0 %v1356
      %1415 = vmatpush1.msra.mxu0 %v1355
      %1416 = vmatprep.subr.mxu0 %v1359
      %1417 = vmatpush1.msra.mxu0 %v1358
      %1418 = vmatprep.subr.mxu0 %v1362
      %1419 = vmatpush1.msra.mxu0 %v1361
      %1420 = vmatprep.subr.mxu0 %v1365
      %1421 = vmatpush1.msra.mxu0 %v1364
      %1422 = vmatprep.subr.mxu0 %v1368
      %1423 = vmatpush1.msra.mxu0 %v1367
      %1424 = vmatprep.subr.mxu0 %v1371
      %1425 = vmatpush1.msra.mxu0 %v1370
      %1426 = vmatprep.subr.mxu0 %v1374
      %1427 = vmatpush1.msra.mxu0 %v1373
      %1428 = vmatprep.subr.mxu0 %v1377
      %1429 = vmatpush1.msra.mxu0 %v1376
      %1430 = vmatprep.subr.mxu0 %v1380
      %1431 = vmatpush1.msra.mxu0 %v1379
      %1432 = vmatprep.subr.mxu0 %v1383
      %1433 = vmatpush1.msra.mxu0 %v1382
      %1434 = vmatprep.subr.mxu0 %v1386
      %1435 = vmatpush1.msra.mxu0 %v1385
      %1436 = vmatprep.subr.mxu0 %v1389
      %1437 = vmatpush1.msra.mxu0 %v1388
      %1438 = vmatprep.subr.mxu0 %v1392
      %1439 = vmatpush1.msra.mxu0 %v1391
      %1440 = vmatprep.subr.mxu0 %v1395
      %1441 = vmatpush1.msra.mxu0 %v1394
      %1442 = vmatprep.subr.mxu0 %v1398
      %1443 = vmatpush1.msra.mxu0 %v1397
      %1444 = vmatprep.subr.mxu0 0.0
      %1445 = vmatpush1.msra.mxu0 0.0
      %1446 = vmatprep.subr.mxu0 0.0
      %1447 = vmatpush1.msra.mxu0 0.0
      %1448 = vmatprep.subr.mxu0 0.0
      %1449 = vmatpush1.msra.mxu0 0.0
      %1450 = vmatprep.subr.mxu0 0.0
      %1451 = vmatpush1.msra.mxu0 0.0
      %1452 = vmatprep.subr.mxu0 0.0
      %1453 = vmatpush1.msra.mxu0 0.0
      %1454 = vmatprep.subr.mxu0 0.0
      %1455 = vmatpush1.msra.mxu0 0.0
      %1456 = vmatprep.subr.mxu0 0.0
      %1457 = vmatpush1.msra.mxu0 0.0
      %1458 = vmatprep.subr.mxu0 0.0
      %1459 = vmatpush1.msra.mxu0 0.0
      %1460 = vmatprep.subr.mxu0 0.0
      %1461 = vmatpush1.msra.mxu0 0.0
      %1462 = vmatprep.subr.mxu0 0.0
      %1463 = vmatpush1.msra.mxu0 0.0
      %1464 = vmatprep.subr.mxu0 0.0
      %1465 = vmatpush1.msra.mxu0 0.0
      %1466 = vmatprep.subr.mxu0 0.0
      %1467 = vmatpush1.msra.mxu0 0.0
      %1468 = vmatprep.subr.mxu0 0.0
      %1469 = vmatpush1.msra.mxu0 0.0
      %1470 = vmatprep.mubr.f32.mxu0 %v1401
      %1471 = vmatmul.mubr.f32.gmra.mrb[0].mxu0 %v1339
      %v1472 = vpop.f32.mrb[0].mxu0
      %v1473 = vadd.f32 0.0, %v1472
      %v1474 = vpop.f32.mrb[0].mxu0
      %v1475 = vadd.f32 0.0, %v1474
      %1476 = vmatprep.mubr.f32.mxu0 %v1404
      %1477 = vmatmul.mubr.f32.gmra.mrb[0].mxu0 %v1341
      %v1478 = vpop.f32.mrb[0].mxu0
      %v1479 = vadd.f32 0.0, %v1478
      %v1480 = vpop.f32.mrb[0].mxu0
      %v1481 = vadd.f32 0.0, %v1480
      %1482 = vdwg.mxu0
      %1483 = vmatprep.subr.mxu0 0.0
      %1484 = vmatpush1.msra.mxu0 %v1345
      %1485 = vmatprep.subr.mxu0 0.0
      %1486 = vmatpush1.msra.mxu0 %v1348
      %1487 = vmatprep.subr.mxu0 0.0
      %1488 = vmatpush1.msra.mxu0 %v1351
      %1489 = vmatprep.subr.mxu0 0.0
      %1490 = vmatpush1.msra.mxu0 %v1354
      %1491 = vmatprep.subr.mxu0 0.0
      %1492 = vmatpush1.msra.mxu0 %v1357
      %1493 = vmatprep.subr.mxu0 0.0
      %1494 = vmatpush1.msra.mxu0 %v1360
      %1495 = vmatprep.subr.mxu0 0.0
      %1496 = vmatpush1.msra.mxu0 %v1363
      %1497 = vmatprep.subr.mxu0 0.0
      %1498 = vmatpush1.msra.mxu0 %v1366
      %1499 = vmatprep.subr.mxu0 0.0
      %1500 = vmatpush1.msra.mxu0 %v1369
      %1501 = vmatprep.subr.mxu0 0.0
      %1502 = vmatpush1.msra.mxu0 %v1372
      %1503 = vmatprep.subr.mxu0 0.0
      %1504 = vmatpush1.msra.mxu0 %v1375
      %1505 = vmatprep.subr.mxu0 0.0
      %1506 = vmatpush1.msra.mxu0 %v1378
      %1507 = vmatprep.subr.mxu0 0.0
      %1508 = vmatpush1.msra.mxu0 %v1381
      %1509 = vmatprep.subr.mxu0 0.0
      %1510 = vmatpush1.msra.mxu0 %v1384
      %1511 = vmatprep.subr.mxu0 0.0
      %1512 = vmatpush1.msra.mxu0 %v1387
      %1513 = vmatprep.subr.mxu0 0.0
      %1514 = vmatpush1.msra.mxu0 %v1390
      %1515 = vmatprep.subr.mxu0 0.0
      %1516 = vmatpush1.msra.mxu0 %v1393
      %1517 = vmatprep.subr.mxu0 0.0
      %1518 = vmatpush1.msra.mxu0 %v1396
      %1519 = vmatprep.subr.mxu0 0.0
      %1520 = vmatpush1.msra.mxu0 %v1399
      %1521 = vmatprep.subr.mxu0 0.0
      %1522 = vmatpush1.msra.mxu0 0.0
      %1523 = vmatprep.subr.mxu0 0.0
      %1524 = vmatpush1.msra.mxu0 0.0
      %1525 = vmatprep.subr.mxu0 0.0
      %1526 = vmatpush1.msra.mxu0 0.0
      %1527 = vmatprep.subr.mxu0 0.0
      %1528 = vmatpush1.msra.mxu0 0.0
      %1529 = vmatprep.subr.mxu0 0.0
      %1530 = vmatpush1.msra.mxu0 0.0
      %1531 = vmatprep.subr.mxu0 0.0
      %1532 = vmatpush1.msra.mxu0 0.0
      %1533 = vmatprep.subr.mxu0 0.0
      %1534 = vmatpush1.msra.mxu0 0.0
      %1535 = vmatprep.subr.mxu0 0.0
      %1536 = vmatpush1.msra.mxu0 0.0
      %1537 = vmatprep.subr.mxu0 0.0
      %1538 = vmatpush1.msra.mxu0 0.0
      %1539 = vmatprep.subr.mxu0 0.0
      %1540 = vmatpush1.msra.mxu0 0.0
      %1541 = vmatprep.subr.mxu0 0.0
      %1542 = vmatpush1.msra.mxu0 0.0
      %1543 = vmatprep.subr.mxu0 0.0
      %1544 = vmatpush1.msra.mxu0 0.0
      %1545 = vmatprep.subr.mxu0 0.0
      %1546 = vmatpush1.msra.mxu0 0.0
      %1547 = vmatprep.mubr.f32.mxu0 %v1401
      %1548 = vmatmul.mubr.f32.gmra.mrb[0].mxu0 %v1339
      %v1549 = vpop.f32.mrb[0].mxu0
      %v1550 = vadd.f32 0.0, %v1549
      %v1551 = vpop.f32.mrb[0].mxu0
      %1552 = vmatprep.mubr.f32.mxu0 %v1404
      %1553 = vmatmul.mubr.f32.gmra.mrb[0].mxu0 %v1341
      %v1554 = vpop.f32.mrb[0].mxu0
      %v1555 = vadd.f32 0.0, %v1554
      %v1556 = vpop.f32.mrb[0].mxu0
      %1557 = vdwg.mxu0
      %v1558 = vsel %vm239, %v1473, 0.0
      %v1559 = vsel %vm240, %v1475, 0.0
      %v1560 = vsel %vm241, %v1550, 0.0
      %v1561 = vsel %vm239, %v1479, 0.0
      %v1562 = vsel %vm240, %v1481, 0.0
      %v1563 = vsel %vm241, %v1555, 0.0
      %1570 = vrot.lane.b32.xlu0 %v1558, 19
      %v1571 = vpop.permute.xlu0 %1570
      %1572 = vrot.lane.b32.xlu0 %v1559, 19
      %v1573 = vpop.permute.xlu0 %1572
      %1574 = vrot.lane.b32.xlu0 %v1560, 19
      %v1575 = vpop.permute.xlu0 %1574
      %1576 = vrot.lane.b32.xlu0 %v1561, 19
      %v1577 = vpop.permute.xlu0 %1576
      %1578 = vrot.lane.b32.xlu0 %v1562, 19
      %v1579 = vpop.permute.xlu0 %1578
      %1580 = vrot.lane.b32.xlu0 %v1563, 19
      %v1581 = vpop.permute.xlu0 %1580
      %v1582 = vsel %vm202, %v1571, %v1573
      %v1583 = vsel %vm202, %v1573, %v1575
      %v1584 = vsel %vm202, %v1577, %v1579
      %v1585 = vsel %vm202, %v1579, %v1581
      %1594 = vst.msk [vmem:[#allocation2] sm:$0xff] %vm215, %v1571
      %1595 = vst [vmem:[#allocation2 + $0x8] sm:$0xff] %v1582
      %1596 = vst [vmem:[#allocation2 + $0x10] sm:$0xff] %v1583
      %1597 = vst.msk [vmem:[#allocation2 + $0x18] sm:$0xff] %vm202, %v1575
      %1598 = vst.msk [vmem:[#allocation2 + $0x20] sm:$0xff] %vm215, %v1577
      %1599 = vst [vmem:[#allocation2 + $0x28] sm:$0xff] %v1584
      %1600 = vst [vmem:[#allocation2 + $0x30] sm:$0xff] %v1585
      %1601 = vst.msk [vmem:[#allocation2 + $0x38] sm:$0xff] %vm202, %v1581
      %v1602 = vld [vmem:[#allocation2] sm:$0xff]
      %v1603 = vld [vmem:[#allocation2 + $0x8] sm:$0xff]
      %v1604 = vld [vmem:[#allocation2 + $0x10] sm:$0xff]
      %v1605 = vld [vmem:[#allocation2 + $0x20] sm:$0xff]
      %v1606 = vld [vmem:[#allocation2 + $0x28] sm:$0xff]
      %v1607 = vld [vmem:[#allocation2 + $0x30] sm:$0xff]
      %1608 = vst [vmem:[#allocation3] sm:$0xff] %v1602
      %1609 = vst [vmem:[#allocation3 + $0x8] sm:$0xff] %v1603
      %1610 = vst [vmem:[#allocation3 + $0x10] sm:$0xff] %v1604
      %1611 = vst [vmem:[#allocation3 + $0x18] sm:$0xff] %v1605
      %1612 = vst [vmem:[#allocation3 + $0x20] sm:$0xff] %v1606
      %1613 = vst [vmem:[#allocation3 + $0x28] sm:$0xff] %v1607
      %v1614 = vld [vmem:[#allocation2] sm:$0xff]
      %v1615 = vld [vmem:[#allocation2 + $0x8] sm:$0xff]
      %v1616 = vld [vmem:[#allocation2 + $0x10] sm:$0xff]
      %v1617 = vld [vmem:[#allocation2 + $0x18] sm:$0xff]
      %v1618 = vld [vmem:[#allocation2 + $0x20] sm:$0xff]
      %v1619 = vld [vmem:[#allocation2 + $0x28] sm:$0xff]
      %v1620 = vld [vmem:[#allocation2 + $0x30] sm:$0xff]
      %v1621 = vld [vmem:[#allocation2 + $0x38] sm:$0xff]
      %1630 = vrot.lane.b32.xlu0 %v1614, 127
      %v1631 = vpop.permute.xlu0 %1630
      %1632 = vrot.lane.b32.xlu0 %v1615, 127
      %v1633 = vpop.permute.xlu0 %1632
      %1634 = vrot.lane.b32.xlu0 %v1616, 127
      %v1635 = vpop.permute.xlu0 %1634
      %1636 = vrot.lane.b32.xlu0 %v1617, 127
      %v1637 = vpop.permute.xlu0 %1636
      %1638 = vrot.lane.b32.xlu0 %v1618, 127
      %v1639 = vpop.permute.xlu0 %1638
      %1640 = vrot.lane.b32.xlu0 %v1619, 127
      %v1641 = vpop.permute.xlu0 %1640
      %1642 = vrot.lane.b32.xlu0 %v1620, 127
      %v1643 = vpop.permute.xlu0 %1642
      %1644 = vrot.lane.b32.xlu0 %v1621, 127
      %v1645 = vpop.permute.xlu0 %1644
      %v1646 = vsel %vm286, %v1631, %v1633
      %v1647 = vsel %vm286, %v1633, %v1635
      %v1648 = vsel %vm286, %v1635, %v1637
      %v1649 = vsel %vm286, %v1639, %v1641
      %v1650 = vsel %vm286, %v1641, %v1643
      %v1651 = vsel %vm286, %v1643, %v1645
      %1658 = vst [vmem:[#allocation3 + $0x30] sm:$0xff] %v1646
      %1659 = vst [vmem:[#allocation3 + $0x38] sm:$0xff] %v1647
      %1660 = vst [vmem:[#allocation3 + $0x40] sm:$0xff] %v1648
      %1661 = vst [vmem:[#allocation3 + $0x48] sm:$0xff] %v1649
      %1662 = vst [vmem:[#allocation3 + $0x50] sm:$0xff] %v1650
      %1663 = vst [vmem:[#allocation3 + $0x58] sm:$0xff] %v1651
      %v1664 = vld [vmem:[#allocation2] sm:$0xff]
      %v1665 = vld [vmem:[#allocation2 + $0x8] sm:$0xff]
      %v1666 = vld [vmem:[#allocation2 + $0x10] sm:$0xff]
      %v1667 = vld [vmem:[#allocation2 + $0x18] sm:$0xff]
      %v1668 = vld [vmem:[#allocation2 + $0x20] sm:$0xff]
      %v1669 = vld [vmem:[#allocation2 + $0x28] sm:$0xff]
      %v1670 = vld [vmem:[#allocation2 + $0x30] sm:$0xff]
      %v1671 = vld [vmem:[#allocation2 + $0x38] sm:$0xff]
      %1680 = vrot.lane.b32.xlu0 %v1664, 126
      %v1681 = vpop.permute.xlu0 %1680
      %1682 = vrot.lane.b32.xlu0 %v1665, 126
      %v1683 = vpop.permute.xlu0 %1682
      %1684 = vrot.lane.b32.xlu0 %v1666, 126
      %v1685 = vpop.permute.xlu0 %1684
      %1686 = vrot.lane.b32.xlu0 %v1667, 126
      %v1687 = vpop.permute.xlu0 %1686
      %1688 = vrot.lane.b32.xlu0 %v1668, 126
      %v1689 = vpop.permute.xlu0 %1688
      %1690 = vrot.lane.b32.xlu0 %v1669, 126
      %v1691 = vpop.permute.xlu0 %1690
      %1692 = vrot.lane.b32.xlu0 %v1670, 126
      %v1693 = vpop.permute.xlu0 %1692
      %1694 = vrot.lane.b32.xlu0 %v1671, 126
      %v1695 = vpop.permute.xlu0 %1694
      %v1696 = vsel %vm337, %v1681, %v1683
      %v1697 = vsel %vm337, %v1683, %v1685
      %v1698 = vsel %vm337, %v1685, %v1687
      %v1699 = vsel %vm337, %v1689, %v1691
      %v1700 = vsel %vm337, %v1691, %v1693
      %v1701 = vsel %vm337, %v1693, %v1695
      %1708 = vst [vmem:[#allocation3 + $0x60] sm:$0xff] %v1696
      %1709 = vst [vmem:[#allocation3 + $0x68] sm:$0xff] %v1697
      %1710 = vst [vmem:[#allocation3 + $0x70] sm:$0xff] %v1698
      %1711 = vst [vmem:[#allocation3 + $0x78] sm:$0xff] %v1699
      %1712 = vst [vmem:[#allocation3 + $0x80] sm:$0xff] %v1700
      %1713 = vst [vmem:[#allocation3 + $0x88] sm:$0xff] %v1701
      %v1714 = vld [vmem:[#allocation2] sm:$0xff]
      %v1715 = vld [vmem:[#allocation2 + $0x8] sm:$0xff]
      %v1716 = vld [vmem:[#allocation2 + $0x10] sm:$0xff]
      %v1717 = vld [vmem:[#allocation2 + $0x18] sm:$0xff]
      %v1718 = vld [vmem:[#allocation2 + $0x20] sm:$0xff]
      %v1719 = vld [vmem:[#allocation2 + $0x28] sm:$0xff]
      %v1720 = vld [vmem:[#allocation2 + $0x30] sm:$0xff]
      %v1721 = vld [vmem:[#allocation2 + $0x38] sm:$0xff]
      %1730 = vrot.lane.b32.xlu0 %v1714, 110
      %v1731 = vpop.permute.xlu0 %1730
      %1732 = vrot.lane.b32.xlu0 %v1715, 110
      %v1733 = vpop.permute.xlu0 %1732
      %1734 = vrot.lane.b32.xlu0 %v1716, 110
      %v1735 = vpop.permute.xlu0 %1734
      %1736 = vrot.lane.b32.xlu0 %v1717, 110
      %v1737 = vpop.permute.xlu0 %1736
      %1738 = vrot.lane.b32.xlu0 %v1718, 110
      %v1739 = vpop.permute.xlu0 %1738
      %1740 = vrot.lane.b32.xlu0 %v1719, 110
      %v1741 = vpop.permute.xlu0 %1740
      %1742 = vrot.lane.b32.xlu0 %v1720, 110
      %v1743 = vpop.permute.xlu0 %1742
      %1744 = vrot.lane.b32.xlu0 %v1721, 110
      %v1745 = vpop.permute.xlu0 %1744
      %v1746 = vsel %vm388, %v1731, %v1733
      %v1747 = vsel %vm388, %v1733, %v1735
      %v1748 = vsel %vm388, %v1735, %v1737
      %v1749 = vsel %vm388, %v1739, %v1741
      %v1750 = vsel %vm388, %v1741, %v1743
      %v1751 = vsel %vm388, %v1743, %v1745
      %1758 = vst [vmem:[#allocation3 + $0x90] sm:$0xff] %v1746
      %1759 = vst [vmem:[#allocation3 + $0x98] sm:$0xff] %v1747
      %1760 = vst [vmem:[#allocation3 + $0xa0] sm:$0xff] %v1748
      %1761 = vst [vmem:[#allocation3 + $0xa8] sm:$0xff] %v1749
      %1762 = vst [vmem:[#allocation3 + $0xb0] sm:$0xff] %v1750
      %1763 = vst [vmem:[#allocation3 + $0xb8] sm:$0xff] %v1751
      %v1764 = vld [vmem:[#allocation2] sm:$0xff]
      %v1765 = vld [vmem:[#allocation2 + $0x8] sm:$0xff]
      %v1766 = vld [vmem:[#allocation2 + $0x10] sm:$0xff]
      %v1767 = vld [vmem:[#allocation2 + $0x18] sm:$0xff]
      %v1768 = vld [vmem:[#allocation2 + $0x20] sm:$0xff]
      %v1769 = vld [vmem:[#allocation2 + $0x28] sm:$0xff]
      %v1770 = vld [vmem:[#allocation2 + $0x30] sm:$0xff]
      %v1771 = vld [vmem:[#allocation2 + $0x38] sm:$0xff]
      %1780 = vrot.lane.b32.xlu0 %v1764, 109
      %v1781 = vpop.permute.xlu0 %1780
      %1782 = vrot.lane.b32.xlu0 %v1765, 109
      %v1783 = vpop.permute.xlu0 %1782
      %1784 = vrot.lane.b32.xlu0 %v1766, 109
      %v1785 = vpop.permute.xlu0 %1784
      %1786 = vrot.lane.b32.xlu0 %v1767, 109
      %v1787 = vpop.permute.xlu0 %1786
      %1788 = vrot.lane.b32.xlu0 %v1768, 109
      %v1789 = vpop.permute.xlu0 %1788
      %1790 = vrot.lane.b32.xlu0 %v1769, 109
      %v1791 = vpop.permute.xlu0 %1790
      %1792 = vrot.lane.b32.xlu0 %v1770, 109
      %v1793 = vpop.permute.xlu0 %1792
      %1794 = vrot.lane.b32.xlu0 %v1771, 109
      %v1795 = vpop.permute.xlu0 %1794
      %v1796 = vsel %vm439, %v1781, %v1783
      %v1797 = vsel %vm439, %v1783, %v1785
      %v1798 = vsel %vm439, %v1785, %v1787
      %v1799 = vsel %vm439, %v1789, %v1791
      %v1800 = vsel %vm439, %v1791, %v1793
      %v1801 = vsel %vm439, %v1793, %v1795
      %1808 = vst [vmem:[#allocation3 + $0xc0] sm:$0xff] %v1796
      %1809 = vst [vmem:[#allocation3 + $0xc8] sm:$0xff] %v1797
      %1810 = vst [vmem:[#allocation3 + $0xd0] sm:$0xff] %v1798
      %1811 = vst [vmem:[#allocation3 + $0xd8] sm:$0xff] %v1799
      %1812 = vst [vmem:[#allocation3 + $0xe0] sm:$0xff] %v1800
      %1813 = vst [vmem:[#allocation3 + $0xe8] sm:$0xff] %v1801
      %v1814 = vld [vmem:[#allocation2] sm:$0xff]
      %v1815 = vld [vmem:[#allocation2 + $0x8] sm:$0xff]
      %v1816 = vld [vmem:[#allocation2 + $0x10] sm:$0xff]
      %v1817 = vld [vmem:[#allocation2 + $0x18] sm:$0xff]
      %v1818 = vld [vmem:[#allocation2 + $0x20] sm:$0xff]
      %v1819 = vld [vmem:[#allocation2 + $0x28] sm:$0xff]
      %v1820 = vld [vmem:[#allocation2 + $0x30] sm:$0xff]
      %v1821 = vld [vmem:[#allocation2 + $0x38] sm:$0xff]
      %1830 = vrot.lane.b32.xlu0 %v1814, 108
      %v1831 = vpop.permute.xlu0 %1830
      %1832 = vrot.lane.b32.xlu0 %v1815, 108
      %v1833 = vpop.permute.xlu0 %1832
      %1834 = vrot.lane.b32.xlu0 %v1816, 108
      %v1835 = vpop.permute.xlu0 %1834
      %1836 = vrot.lane.b32.xlu0 %v1817, 108
      %v1837 = vpop.permute.xlu0 %1836
      %1838 = vrot.lane.b32.xlu0 %v1818, 108
      %v1839 = vpop.permute.xlu0 %1838
      %1840 = vrot.lane.b32.xlu0 %v1819, 108
      %v1841 = vpop.permute.xlu0 %1840
      %1842 = vrot.lane.b32.xlu0 %v1820, 108
      %v1843 = vpop.permute.xlu0 %1842
      %1844 = vrot.lane.b32.xlu0 %v1821, 108
      %v1845 = vpop.permute.xlu0 %1844
      %v1846 = vsel %vm490, %v1831, %v1833
      %v1847 = vsel %vm490, %v1833, %v1835
      %v1848 = vsel %vm490, %v1835, %v1837
      %v1849 = vsel %vm490, %v1839, %v1841
      %v1850 = vsel %vm490, %v1841, %v1843
      %v1851 = vsel %vm490, %v1843, %v1845
      %1858 = vst [vmem:[#allocation3 + $0xf0] sm:$0xff] %v1846
      %1859 = vst [vmem:[#allocation3 + $0xf8] sm:$0xff] %v1847
      %1860 = vst [vmem:[#allocation3 + $0x100] sm:$0xff] %v1848
      %1861 = vst [vmem:[#allocation3 + $0x108] sm:$0xff] %v1849
      %1862 = vst [vmem:[#allocation3 + $0x110] sm:$0xff] %v1850
      %1863 = vst [vmem:[#allocation3 + $0x118] sm:$0xff] %v1851
      %v1864 = vld [vmem:[#allocation2] sm:$0xff]
      %v1865 = vld [vmem:[#allocation2 + $0x8] sm:$0xff]
      %v1866 = vld [vmem:[#allocation2 + $0x10] sm:$0xff]
      %v1867 = vld [vmem:[#allocation2 + $0x18] sm:$0xff]
      %v1868 = vld [vmem:[#allocation2 + $0x20] sm:$0xff]
      %v1869 = vld [vmem:[#allocation2 + $0x28] sm:$0xff]
      %v1870 = vld [vmem:[#allocation2 + $0x30] sm:$0xff]
      %v1871 = vld [vmem:[#allocation2 + $0x38] sm:$0xff]
      %1880 = vrot.lane.b32.xlu0 %v1864, 92
      %v1881 = vpop.permute.xlu0 %1880
      %1882 = vrot.lane.b32.xlu0 %v1865, 92
      %v1883 = vpop.permute.xlu0 %1882
      %1884 = vrot.lane.b32.xlu0 %v1866, 92
      %v1885 = vpop.permute.xlu0 %1884
      %1886 = vrot.lane.b32.xlu0 %v1867, 92
      %v1887 = vpop.permute.xlu0 %1886
      %1888 = vrot.lane.b32.xlu0 %v1868, 92
      %v1889 = vpop.permute.xlu0 %1888
      %1890 = vrot.lane.b32.xlu0 %v1869, 92
      %v1891 = vpop.permute.xlu0 %1890
      %1892 = vrot.lane.b32.xlu0 %v1870, 92
      %v1893 = vpop.permute.xlu0 %1892
      %1894 = vrot.lane.b32.xlu0 %v1871, 92
      %v1895 = vpop.permute.xlu0 %1894
      %v1896 = vsel %vm541, %v1881, %v1883
      %v1897 = vsel %vm541, %v1883, %v1885
      %v1898 = vsel %vm541, %v1885, %v1887
      %v1899 = vsel %vm541, %v1889, %v1891
      %v1900 = vsel %vm541, %v1891, %v1893
      %v1901 = vsel %vm541, %v1893, %v1895
      %1908 = vst [vmem:[#allocation3 + $0x120] sm:$0xff] %v1896
      %1909 = vst [vmem:[#allocation3 + $0x128] sm:$0xff] %v1897
      %1910 = vst [vmem:[#allocation3 + $0x130] sm:$0xff] %v1898
      %1911 = vst [vmem:[#allocation3 + $0x138] sm:$0xff] %v1899
      %1912 = vst [vmem:[#allocation3 + $0x140] sm:$0xff] %v1900
      %1913 = vst [vmem:[#allocation3 + $0x148] sm:$0xff] %v1901
      %v1914 = vld [vmem:[#allocation2] sm:$0xff]
      %v1915 = vld [vmem:[#allocation2 + $0x8] sm:$0xff]
      %v1916 = vld [vmem:[#allocation2 + $0x10] sm:$0xff]
      %v1917 = vld [vmem:[#allocation2 + $0x18] sm:$0xff]
      %v1918 = vld [vmem:[#allocation2 + $0x20] sm:$0xff]
      %v1919 = vld [vmem:[#allocation2 + $0x28] sm:$0xff]
      %v1920 = vld [vmem:[#allocation2 + $0x30] sm:$0xff]
      %v1921 = vld [vmem:[#allocation2 + $0x38] sm:$0xff]
      %1930 = vrot.lane.b32.xlu0 %v1914, 91
      %v1931 = vpop.permute.xlu0 %1930
      %1932 = vrot.lane.b32.xlu0 %v1915, 91
      %v1933 = vpop.permute.xlu0 %1932
      %1934 = vrot.lane.b32.xlu0 %v1916, 91
      %v1935 = vpop.permute.xlu0 %1934
      %1936 = vrot.lane.b32.xlu0 %v1917, 91
      %v1937 = vpop.permute.xlu0 %1936
      %1938 = vrot.lane.b32.xlu0 %v1918, 91
      %v1939 = vpop.permute.xlu0 %1938
      %1940 = vrot.lane.b32.xlu0 %v1919, 91
      %v1941 = vpop.permute.xlu0 %1940
      %1942 = vrot.lane.b32.xlu0 %v1920, 91
      %v1943 = vpop.permute.xlu0 %1942
      %1944 = vrot.lane.b32.xlu0 %v1921, 91
      %v1945 = vpop.permute.xlu0 %1944
      %v1946 = vsel %vm592, %v1931, %v1933
      %v1947 = vsel %vm592, %v1933, %v1935
      %v1948 = vsel %vm592, %v1935, %v1937
      %v1949 = vsel %vm592, %v1939, %v1941
      %v1950 = vsel %vm592, %v1941, %v1943
      %v1951 = vsel %vm592, %v1943, %v1945
      %1958 = vst [vmem:[#allocation3 + $0x150] sm:$0xff] %v1946
      %1959 = vst [vmem:[#allocation3 + $0x158] sm:$0xff] %v1947
      %1960 = vst [vmem:[#allocation3 + $0x160] sm:$0xff] %v1948
      %1961 = vst [vmem:[#allocation3 + $0x168] sm:$0xff] %v1949
      %1962 = vst [vmem:[#allocation3 + $0x170] sm:$0xff] %v1950
      %1963 = vst [vmem:[#allocation3 + $0x178] sm:$0xff] %v1951
      %v1964 = vld [vmem:[#allocation2] sm:$0xff]
      %v1965 = vld [vmem:[#allocation2 + $0x8] sm:$0xff]
      %v1966 = vld [vmem:[#allocation2 + $0x10] sm:$0xff]
      %v1967 = vld [vmem:[#allocation2 + $0x18] sm:$0xff]
      %v1968 = vld [vmem:[#allocation2 + $0x20] sm:$0xff]
      %v1969 = vld [vmem:[#allocation2 + $0x28] sm:$0xff]
      %v1970 = vld [vmem:[#allocation2 + $0x30] sm:$0xff]
      %v1971 = vld [vmem:[#allocation2 + $0x38] sm:$0xff]
      %1980 = vrot.lane.b32.xlu0 %v1964, 90
      %v1981 = vpop.permute.xlu0 %1980
      %1982 = vrot.lane.b32.xlu0 %v1965, 90
      %v1983 = vpop.permute.xlu0 %1982
      %1984 = vrot.lane.b32.xlu0 %v1966, 90
      %v1985 = vpop.permute.xlu0 %1984
      %1986 = vrot.lane.b32.xlu0 %v1967, 90
      %v1987 = vpop.permute.xlu0 %1986
      %1988 = vrot.lane.b32.xlu0 %v1968, 90
      %v1989 = vpop.permute.xlu0 %1988
      %1990 = vrot.lane.b32.xlu0 %v1969, 90
      %v1991 = vpop.permute.xlu0 %1990
      %1992 = vrot.lane.b32.xlu0 %v1970, 90
      %v1993 = vpop.permute.xlu0 %1992
      %1994 = vrot.lane.b32.xlu0 %v1971, 90
      %v1995 = vpop.permute.xlu0 %1994
      %v1996 = vsel %vm643, %v1981, %v1983
      %v1997 = vsel %vm643, %v1983, %v1985
      %v1998 = vsel %vm643, %v1985, %v1987
      %v1999 = vsel %vm643, %v1989, %v1991
      %v2000 = vsel %vm643, %v1991, %v1993
      %v2001 = vsel %vm643, %v1993, %v1995
      %2008 = vst [vmem:[#allocation3 + $0x180] sm:$0xff] %v1996
      %2009 = vst [vmem:[#allocation3 + $0x188] sm:$0xff] %v1997
      %2010 = vst [vmem:[#allocation3 + $0x190] sm:$0xff] %v1998
      %2011 = vst [vmem:[#allocation3 + $0x198] sm:$0xff] %v1999
      %2012 = vst [vmem:[#allocation3 + $0x1a0] sm:$0xff] %v2000
      %2013 = vst [vmem:[#allocation3 + $0x1a8] sm:$0xff] %v2001
      %s2014 = scalar_lea.vmem %s1, 64
      %v2015 = vld [vmem:[%s2014] sm:$0xff]
      %v2016 = vld [vmem:[%s2014 + $0x8] sm:$0xff]
      %v2017 = vld [vmem:[%s2014 + $0x10] sm:$0xff]
      %v2018 = vld [vmem:[%s2014 + $0x18] sm:$0xff]
      %v2019 = vld [vmem:[#allocation3] sm:$0xff]
      %v2020 = vld [vmem:[#allocation3 + $0x8] sm:$0xff]
      %v2021 = vld [vmem:[#allocation3 + $0x10] sm:$0xff]
      %v2022 = vld [vmem:[#allocation3 + $0x18] sm:$0xff]
      %v2023 = vld [vmem:[#allocation3 + $0x20] sm:$0xff]
      %v2024 = vld [vmem:[#allocation3 + $0x28] sm:$0xff]
      %v2025 = vld [vmem:[#allocation3 + $0x30] sm:$0xff]
      %v2026 = vld [vmem:[#allocation3 + $0x38] sm:$0xff]
      %v2027 = vld [vmem:[#allocation3 + $0x40] sm:$0xff]
      %v2028 = vld [vmem:[#allocation3 + $0x48] sm:$0xff]
      %v2029 = vld [vmem:[#allocation3 + $0x50] sm:$0xff]
      %v2030 = vld [vmem:[#allocation3 + $0x58] sm:$0xff]
      %v2031 = vld [vmem:[#allocation3 + $0x60] sm:$0xff]
      %v2032 = vld [vmem:[#allocation3 + $0x68] sm:$0xff]
      %v2033 = vld [vmem:[#allocation3 + $0x70] sm:$0xff]
      %v2034 = vld [vmem:[#allocation3 + $0x78] sm:$0xff]
      %v2035 = vld [vmem:[#allocation3 + $0x80] sm:$0xff]
      %v2036 = vld [vmem:[#allocation3 + $0x88] sm:$0xff]
      %v2037 = vld [vmem:[#allocation3 + $0x90] sm:$0xff]
      %v2038 = vld [vmem:[#allocation3 + $0x98] sm:$0xff]
      %v2039 = vld [vmem:[#allocation3 + $0xa0] sm:$0xff]
      %v2040 = vld [vmem:[#allocation3 + $0xa8] sm:$0xff]
      %v2041 = vld [vmem:[#allocation3 + $0xb0] sm:$0xff]
      %v2042 = vld [vmem:[#allocation3 + $0xb8] sm:$0xff]
      %v2043 = vld [vmem:[#allocation3 + $0xc0] sm:$0xff]
      %v2044 = vld [vmem:[#allocation3 + $0xc8] sm:$0xff]
      %v2045 = vld [vmem:[#allocation3 + $0xd0] sm:$0xff]
      %v2046 = vld [vmem:[#allocation3 + $0xd8] sm:$0xff]
      %v2047 = vld [vmem:[#allocation3 + $0xe0] sm:$0xff]
      %v2048 = vld [vmem:[#allocation3 + $0xe8] sm:$0xff]
      %v2049 = vld [vmem:[#allocation3 + $0xf0] sm:$0xff]
      %v2050 = vld [vmem:[#allocation3 + $0xf8] sm:$0xff]
      %v2051 = vld [vmem:[#allocation3 + $0x100] sm:$0xff]
      %v2052 = vld [vmem:[#allocation3 + $0x108] sm:$0xff]
      %v2053 = vld [vmem:[#allocation3 + $0x110] sm:$0xff]
      %v2054 = vld [vmem:[#allocation3 + $0x118] sm:$0xff]
      %v2055 = vld [vmem:[#allocation3 + $0x120] sm:$0xff]
      %v2056 = vld [vmem:[#allocation3 + $0x128] sm:$0xff]
      %v2057 = vld [vmem:[#allocation3 + $0x130] sm:$0xff]
      %v2058 = vld [vmem:[#allocation3 + $0x138] sm:$0xff]
      %v2059 = vld [vmem:[#allocation3 + $0x140] sm:$0xff]
      %v2060 = vld [vmem:[#allocation3 + $0x148] sm:$0xff]
      %v2061 = vld [vmem:[#allocation3 + $0x150] sm:$0xff]
      %v2062 = vld [vmem:[#allocation3 + $0x158] sm:$0xff]
      %v2063 = vld [vmem:[#allocation3 + $0x160] sm:$0xff]
      %v2064 = vld [vmem:[#allocation3 + $0x168] sm:$0xff]
      %v2065 = vld [vmem:[#allocation3 + $0x170] sm:$0xff]
      %v2066 = vld [vmem:[#allocation3 + $0x178] sm:$0xff]
      %v2067 = vld [vmem:[#allocation3 + $0x180] sm:$0xff]
      %v2068 = vld [vmem:[#allocation3 + $0x188] sm:$0xff]
      %v2069 = vld [vmem:[#allocation3 + $0x190] sm:$0xff]
      %v2070 = vld [vmem:[#allocation3 + $0x198] sm:$0xff]
      %v2071 = vld [vmem:[#allocation3 + $0x1a0] sm:$0xff]
      %v2072 = vld [vmem:[#allocation3 + $0x1a8] sm:$0xff]
      %v2073 = vld [vmem:[#allocation3 + $0x1b0] sm:$0xff]
      %v2074 = vld [vmem:[#allocation3 + $0x1b8] sm:$0xff]
      %v2075 = vld [vmem:[#allocation3 + $0x1c0] sm:$0xff]
      %v2077 = vsel %vm723, %v2016, 0
      %v2080 = vsel %vm723, %v2018, 0
      %2082 = vmatprep.subr.mxu0 %v2020
      %2083 = vmatpush1.msra.mxu0 %v2019
      %2084 = vmatprep.subr.mxu0 %v2023
      %2085 = vmatpush1.msra.mxu0 %v2022
      %2086 = vmatprep.subr.mxu0 %v2026
      %2087 = vmatpush1.msra.mxu0 %v2025
      %2088 = vmatprep.subr.mxu0 %v2029
      %2089 = vmatpush1.msra.mxu0 %v2028
      %2090 = vmatprep.subr.mxu0 %v2032
      %2091 = vmatpush1.msra.mxu0 %v2031
      %2092 = vmatprep.subr.mxu0 %v2035
      %2093 = vmatpush1.msra.mxu0 %v2034
      %2094 = vmatprep.subr.mxu0 %v2038
      %2095 = vmatpush1.msra.mxu0 %v2037
      %2096 = vmatprep.subr.mxu0 %v2041
      %2097 = vmatpush1.msra.mxu0 %v2040
      %2098 = vmatprep.subr.mxu0 %v2044
      %2099 = vmatpush1.msra.mxu0 %v2043
      %2100 = vmatprep.subr.mxu0 %v2047
      %2101 = vmatpush1.msra.mxu0 %v2046
      %2102 = vmatprep.subr.mxu0 %v2050
      %2103 = vmatpush1.msra.mxu0 %v2049
      %2104 = vmatprep.subr.mxu0 %v2053
      %2105 = vmatpush1.msra.mxu0 %v2052
      %2106 = vmatprep.subr.mxu0 %v2056
      %2107 = vmatpush1.msra.mxu0 %v2055
      %2108 = vmatprep.subr.mxu0 %v2059
      %2109 = vmatpush1.msra.mxu0 %v2058
      %2110 = vmatprep.subr.mxu0 %v2062
      %2111 = vmatpush1.msra.mxu0 %v2061
      %2112 = vmatprep.subr.mxu0 %v2065
      %2113 = vmatpush1.msra.mxu0 %v2064
      %2114 = vmatprep.subr.mxu0 %v2068
      %2115 = vmatpush1.msra.mxu0 %v2067
      %2116 = vmatprep.subr.mxu0 %v2071
      %2117 = vmatpush1.msra.mxu0 %v2070
      %2118 = vmatprep.subr.mxu0 %v2074
      %2119 = vmatpush1.msra.mxu0 %v2073
      %2120 = vmatprep.subr.mxu0 0.0
      %2121 = vmatpush1.msra.mxu0 0.0
      %2122 = vmatprep.subr.mxu0 0.0
      %2123 = vmatpush1.msra.mxu0 0.0
      %2124 = vmatprep.subr.mxu0 0.0
      %2125 = vmatpush1.msra.mxu0 0.0
      %2126 = vmatprep.subr.mxu0 0.0
      %2127 = vmatpush1.msra.mxu0 0.0
      %2128 = vmatprep.subr.mxu0 0.0
      %2129 = vmatpush1.msra.mxu0 0.0
      %2130 = vmatprep.subr.mxu0 0.0
      %2131 = vmatpush1.msra.mxu0 0.0
      %2132 = vmatprep.subr.mxu0 0.0
      %2133 = vmatpush1.msra.mxu0 0.0
      %2134 = vmatprep.subr.mxu0 0.0
      %2135 = vmatpush1.msra.mxu0 0.0
      %2136 = vmatprep.subr.mxu0 0.0
      %2137 = vmatpush1.msra.mxu0 0.0
      %2138 = vmatprep.subr.mxu0 0.0
      %2139 = vmatpush1.msra.mxu0 0.0
      %2140 = vmatprep.subr.mxu0 0.0
      %2141 = vmatpush1.msra.mxu0 0.0
      %2142 = vmatprep.subr.mxu0 0.0
      %2143 = vmatpush1.msra.mxu0 0.0
      %2144 = vmatprep.subr.mxu0 0.0
      %2145 = vmatpush1.msra.mxu0 0.0
      %2146 = vmatprep.mubr.f32.mxu0 %v2077
      %2147 = vmatmul.mubr.f32.gmra.mrb[0].mxu0 %v2015
      %v2148 = vpop.f32.mrb[0].mxu0
      %v2149 = vadd.f32 0.0, %v2148
      %v2150 = vpop.f32.mrb[0].mxu0
      %v2151 = vadd.f32 0.0, %v2150
      %2152 = vmatprep.mubr.f32.mxu0 %v2080
      %2153 = vmatmul.mubr.f32.gmra.mrb[0].mxu0 %v2017
      %v2154 = vpop.f32.mrb[0].mxu0
      %v2155 = vadd.f32 0.0, %v2154
      %v2156 = vpop.f32.mrb[0].mxu0
      %v2157 = vadd.f32 0.0, %v2156
      %2158 = vdwg.mxu0
      %2159 = vmatprep.subr.mxu0 0.0
      %2160 = vmatpush1.msra.mxu0 %v2021
      %2161 = vmatprep.subr.mxu0 0.0
      %2162 = vmatpush1.msra.mxu0 %v2024
      %2163 = vmatprep.subr.mxu0 0.0
      %2164 = vmatpush1.msra.mxu0 %v2027
      %2165 = vmatprep.subr.mxu0 0.0
      %2166 = vmatpush1.msra.mxu0 %v2030
      %2167 = vmatprep.subr.mxu0 0.0
      %2168 = vmatpush1.msra.mxu0 %v2033
      %2169 = vmatprep.subr.mxu0 0.0
      %2170 = vmatpush1.msra.mxu0 %v2036
      %2171 = vmatprep.subr.mxu0 0.0
      %2172 = vmatpush1.msra.mxu0 %v2039
      %2173 = vmatprep.subr.mxu0 0.0
      %2174 = vmatpush1.msra.mxu0 %v2042
      %2175 = vmatprep.subr.mxu0 0.0
      %2176 = vmatpush1.msra.mxu0 %v2045
      %2177 = vmatprep.subr.mxu0 0.0
      %2178 = vmatpush1.msra.mxu0 %v2048
      %2179 = vmatprep.subr.mxu0 0.0
      %2180 = vmatpush1.msra.mxu0 %v2051
      %2181 = vmatprep.subr.mxu0 0.0
      %2182 = vmatpush1.msra.mxu0 %v2054
      %2183 = vmatprep.subr.mxu0 0.0
      %2184 = vmatpush1.msra.mxu0 %v2057
      %2185 = vmatprep.subr.mxu0 0.0
      %2186 = vmatpush1.msra.mxu0 %v2060
      %2187 = vmatprep.subr.mxu0 0.0
      %2188 = vmatpush1.msra.mxu0 %v2063
      %2189 = vmatprep.subr.mxu0 0.0
      %2190 = vmatpush1.msra.mxu0 %v2066
      %2191 = vmatprep.subr.mxu0 0.0
      %2192 = vmatpush1.msra.mxu0 %v2069
      %2193 = vmatprep.subr.mxu0 0.0
      %2194 = vmatpush1.msra.mxu0 %v2072
      %2195 = vmatprep.subr.mxu0 0.0
      %2196 = vmatpush1.msra.mxu0 %v2075
      %2197 = vmatprep.subr.mxu0 0.0
      %2198 = vmatpush1.msra.mxu0 0.0
      %2199 = vmatprep.subr.mxu0 0.0
      %2200 = vmatpush1.msra.mxu0 0.0
      %2201 = vmatprep.subr.mxu0 0.0
      %2202 = vmatpush1.msra.mxu0 0.0
      %2203 = vmatprep.subr.mxu0 0.0
      %2204 = vmatpush1.msra.mxu0 0.0
      %2205 = vmatprep.subr.mxu0 0.0
      %2206 = vmatpush1.msra.mxu0 0.0
      %2207 = vmatprep.subr.mxu0 0.0
      %2208 = vmatpush1.msra.mxu0 0.0
      %2209 = vmatprep.subr.mxu0 0.0
      %2210 = vmatpush1.msra.mxu0 0.0
      %2211 = vmatprep.subr.mxu0 0.0
      %2212 = vmatpush1.msra.mxu0 0.0
      %2213 = vmatprep.subr.mxu0 0.0
      %2214 = vmatpush1.msra.mxu0 0.0
      %2215 = vmatprep.subr.mxu0 0.0
      %2216 = vmatpush1.msra.mxu0 0.0
      %2217 = vmatprep.subr.mxu0 0.0
      %2218 = vmatpush1.msra.mxu0 0.0
      %2219 = vmatprep.subr.mxu0 0.0
      %2220 = vmatpush1.msra.mxu0 0.0
      %2221 = vmatprep.subr.mxu0 0.0
      %2222 = vmatpush1.msra.mxu0 0.0
      %2223 = vmatprep.mubr.f32.mxu0 %v2077
      %2224 = vmatmul.mubr.f32.gmra.mrb[0].mxu0 %v2015
      %v2225 = vpop.f32.mrb[0].mxu0
      %v2226 = vadd.f32 0.0, %v2225
      %v2227 = vpop.f32.mrb[0].mxu0
      %2228 = vmatprep.mubr.f32.mxu0 %v2080
      %2229 = vmatmul.mubr.f32.gmra.mrb[0].mxu0 %v2017
      %v2230 = vpop.f32.mrb[0].mxu0
      %v2231 = vadd.f32 0.0, %v2230
      %v2232 = vpop.f32.mrb[0].mxu0
      %2233 = vdwg.mxu0
      %v2234 = vsel %vm239, %v2149, 0.0
      %v2235 = vsel %vm240, %v2151, 0.0
      %v2236 = vsel %vm241, %v2226, 0.0
      %v2237 = vsel %vm239, %v2155, 0.0
      %v2238 = vsel %vm240, %v2157, 0.0
      %v2239 = vsel %vm241, %v2231, 0.0
      %2246 = vrot.lane.b32.xlu0 %v2234, 19
      %v2247 = vpop.permute.xlu0 %2246
      %2248 = vrot.lane.b32.xlu0 %v2235, 19
      %v2249 = vpop.permute.xlu0 %2248
      %2250 = vrot.lane.b32.xlu0 %v2236, 19
      %v2251 = vpop.permute.xlu0 %2250
      %2252 = vrot.lane.b32.xlu0 %v2237, 19
      %v2253 = vpop.permute.xlu0 %2252
      %2254 = vrot.lane.b32.xlu0 %v2238, 19
      %v2255 = vpop.permute.xlu0 %2254
      %2256 = vrot.lane.b32.xlu0 %v2239, 19
      %v2257 = vpop.permute.xlu0 %2256
      %v2258 = vsel %vm202, %v2247, %v2249
      %v2259 = vsel %vm202, %v2249, %v2251
      %v2260 = vsel %vm202, %v2253, %v2255
      %v2261 = vsel %vm202, %v2255, %v2257
      %2270 = vst.msk [vmem:[#allocation2] sm:$0xff] %vm215, %v2247
      %2271 = vst [vmem:[#allocation2 + $0x8] sm:$0xff] %v2258
      %2272 = vst [vmem:[#allocation2 + $0x10] sm:$0xff] %v2259
      %2273 = vst.msk [vmem:[#allocation2 + $0x18] sm:$0xff] %vm202, %v2251
      %2274 = vst.msk [vmem:[#allocation2 + $0x20] sm:$0xff] %vm215, %v2253
      %2275 = vst [vmem:[#allocation2 + $0x28] sm:$0xff] %v2260
      %2276 = vst [vmem:[#allocation2 + $0x30] sm:$0xff] %v2261
      %2277 = vst.msk [vmem:[#allocation2 + $0x38] sm:$0xff] %vm202, %v2257
      %v2278 = vld [vmem:[#allocation2] sm:$0xff]
      %v2279 = vld [vmem:[#allocation2 + $0x8] sm:$0xff]
      %v2280 = vld [vmem:[#allocation2 + $0x10] sm:$0xff]
      %v2281 = vld [vmem:[#allocation2 + $0x20] sm:$0xff]
      %v2282 = vld [vmem:[#allocation2 + $0x28] sm:$0xff]
      %v2283 = vld [vmem:[#allocation2 + $0x30] sm:$0xff]
      %2284 = vst [vmem:[#allocation3] sm:$0xff] %v2278
      %2285 = vst [vmem:[#allocation3 + $0x8] sm:$0xff] %v2279
      %2286 = vst [vmem:[#allocation3 + $0x10] sm:$0xff] %v2280
      %2287 = vst [vmem:[#allocation3 + $0x18] sm:$0xff] %v2281
      %2288 = vst [vmem:[#allocation3 + $0x20] sm:$0xff] %v2282
      %2289 = vst [vmem:[#allocation3 + $0x28] sm:$0xff] %v2283
      %v2290 = vld [vmem:[#allocation2] sm:$0xff]
      %v2291 = vld [vmem:[#allocation2 + $0x8] sm:$0xff]
      %v2292 = vld [vmem:[#allocation2 + $0x10] sm:$0xff]
      %v2293 = vld [vmem:[#allocation2 + $0x18] sm:$0xff]
      %v2294 = vld [vmem:[#allocation2 + $0x20] sm:$0xff]
      %v2295 = vld [vmem:[#allocation2 + $0x28] sm:$0xff]
      %v2296 = vld [vmem:[#allocation2 + $0x30] sm:$0xff]
      %v2297 = vld [vmem:[#allocation2 + $0x38] sm:$0xff]
      %2306 = vrot.lane.b32.xlu0 %v2290, 127
      %v2307 = vpop.permute.xlu0 %2306
      %2308 = vrot.lane.b32.xlu0 %v2291, 127
      %v2309 = vpop.permute.xlu0 %2308
      %2310 = vrot.lane.b32.xlu0 %v2292, 127
      %v2311 = vpop.permute.xlu0 %2310
      %2312 = vrot.lane.b32.xlu0 %v2293, 127
      %v2313 = vpop.permute.xlu0 %2312
      %2314 = vrot.lane.b32.xlu0 %v2294, 127
      %v2315 = vpop.permute.xlu0 %2314
      %2316 = vrot.lane.b32.xlu0 %v2295, 127
      %v2317 = vpop.permute.xlu0 %2316
      %2318 = vrot.lane.b32.xlu0 %v2296, 127
      %v2319 = vpop.permute.xlu0 %2318
      %2320 = vrot.lane.b32.xlu0 %v2297, 127
      %v2321 = vpop.permute.xlu0 %2320
      %v2322 = vsel %vm286, %v2307, %v2309
      %v2323 = vsel %vm286, %v2309, %v2311
      %v2324 = vsel %vm286, %v2311, %v2313
      %v2325 = vsel %vm286, %v2315, %v2317
      %v2326 = vsel %vm286, %v2317, %v2319
      %v2327 = vsel %vm286, %v2319, %v2321
      %2334 = vst [vmem:[#allocation3 + $0x30] sm:$0xff] %v2322
      %2335 = vst [vmem:[#allocation3 + $0x38] sm:$0xff] %v2323
      %2336 = vst [vmem:[#allocation3 + $0x40] sm:$0xff] %v2324
      %2337 = vst [vmem:[#allocation3 + $0x48] sm:$0xff] %v2325
      %2338 = vst [vmem:[#allocation3 + $0x50] sm:$0xff] %v2326
      %2339 = vst [vmem:[#allocation3 + $0x58] sm:$0xff] %v2327
      %v2340 = vld [vmem:[#allocation2] sm:$0xff]
      %v2341 = vld [vmem:[#allocation2 + $0x8] sm:$0xff]
      %v2342 = vld [vmem:[#allocation2 + $0x10] sm:$0xff]
      %v2343 = vld [vmem:[#allocation2 + $0x18] sm:$0xff]
      %v2344 = vld [vmem:[#allocation2 + $0x20] sm:$0xff]
      %v2345 = vld [vmem:[#allocation2 + $0x28] sm:$0xff]
      %v2346 = vld [vmem:[#allocation2 + $0x30] sm:$0xff]
      %v2347 = vld [vmem:[#allocation2 + $0x38] sm:$0xff]
      %2356 = vrot.lane.b32.xlu0 %v2340, 126
      %v2357 = vpop.permute.xlu0 %2356
      %2358 = vrot.lane.b32.xlu0 %v2341, 126
      %v2359 = vpop.permute.xlu0 %2358
      %2360 = vrot.lane.b32.xlu0 %v2342, 126
      %v2361 = vpop.permute.xlu0 %2360
      %2362 = vrot.lane.b32.xlu0 %v2343, 126
      %v2363 = vpop.permute.xlu0 %2362
      %2364 = vrot.lane.b32.xlu0 %v2344, 126
      %v2365 = vpop.permute.xlu0 %2364
      %2366 = vrot.lane.b32.xlu0 %v2345, 126
      %v2367 = vpop.permute.xlu0 %2366
      %2368 = vrot.lane.b32.xlu0 %v2346, 126
      %v2369 = vpop.permute.xlu0 %2368
      %2370 = vrot.lane.b32.xlu0 %v2347, 126
      %v2371 = vpop.permute.xlu0 %2370
      %v2372 = vsel %vm337, %v2357, %v2359
      %v2373 = vsel %vm337, %v2359, %v2361
      %v2374 = vsel %vm337, %v2361, %v2363
      %v2375 = vsel %vm337, %v2365, %v2367
      %v2376 = vsel %vm337, %v2367, %v2369
      %v2377 = vsel %vm337, %v2369, %v2371
      %2384 = vst [vmem:[#allocation3 + $0x60] sm:$0xff] %v2372
      %2385 = vst [vmem:[#allocation3 + $0x68] sm:$0xff] %v2373
      %2386 = vst [vmem:[#allocation3 + $0x70] sm:$0xff] %v2374
      %2387 = vst [vmem:[#allocation3 + $0x78] sm:$0xff] %v2375
      %2388 = vst [vmem:[#allocation3 + $0x80] sm:$0xff] %v2376
      %2389 = vst [vmem:[#allocation3 + $0x88] sm:$0xff] %v2377
      %v2390 = vld [vmem:[#allocation2] sm:$0xff]
      %v2391 = vld [vmem:[#allocation2 + $0x8] sm:$0xff]
      %v2392 = vld [vmem:[#allocation2 + $0x10] sm:$0xff]
      %v2393 = vld [vmem:[#allocation2 + $0x18] sm:$0xff]
      %v2394 = vld [vmem:[#allocation2 + $0x20] sm:$0xff]
      %v2395 = vld [vmem:[#allocation2 + $0x28] sm:$0xff]
      %v2396 = vld [vmem:[#allocation2 + $0x30] sm:$0xff]
      %v2397 = vld [vmem:[#allocation2 + $0x38] sm:$0xff]
      %2406 = vrot.lane.b32.xlu0 %v2390, 110
      %v2407 = vpop.permute.xlu0 %2406
      %2408 = vrot.lane.b32.xlu0 %v2391, 110
      %v2409 = vpop.permute.xlu0 %2408
      %2410 = vrot.lane.b32.xlu0 %v2392, 110
      %v2411 = vpop.permute.xlu0 %2410
      %2412 = vrot.lane.b32.xlu0 %v2393, 110
      %v2413 = vpop.permute.xlu0 %2412
      %2414 = vrot.lane.b32.xlu0 %v2394, 110
      %v2415 = vpop.permute.xlu0 %2414
      %2416 = vrot.lane.b32.xlu0 %v2395, 110
      %v2417 = vpop.permute.xlu0 %2416
      %2418 = vrot.lane.b32.xlu0 %v2396, 110
      %v2419 = vpop.permute.xlu0 %2418
      %2420 = vrot.lane.b32.xlu0 %v2397, 110
      %v2421 = vpop.permute.xlu0 %2420
      %v2422 = vsel %vm388, %v2407, %v2409
      %v2423 = vsel %vm388, %v2409, %v2411
      %v2424 = vsel %vm388, %v2411, %v2413
      %v2425 = vsel %vm388, %v2415, %v2417
      %v2426 = vsel %vm388, %v2417, %v2419
      %v2427 = vsel %vm388, %v2419, %v2421
      %2434 = vst [vmem:[#allocation3 + $0x90] sm:$0xff] %v2422
      %2435 = vst [vmem:[#allocation3 + $0x98] sm:$0xff] %v2423
      %2436 = vst [vmem:[#allocation3 + $0xa0] sm:$0xff] %v2424
      %2437 = vst [vmem:[#allocation3 + $0xa8] sm:$0xff] %v2425
      %2438 = vst [vmem:[#allocation3 + $0xb0] sm:$0xff] %v2426
      %2439 = vst [vmem:[#allocation3 + $0xb8] sm:$0xff] %v2427
      %v2440 = vld [vmem:[#allocation2] sm:$0xff]
      %v2441 = vld [vmem:[#allocation2 + $0x8] sm:$0xff]
      %v2442 = vld [vmem:[#allocation2 + $0x10] sm:$0xff]
      %v2443 = vld [vmem:[#allocation2 + $0x18] sm:$0xff]
      %v2444 = vld [vmem:[#allocation2 + $0x20] sm:$0xff]
      %v2445 = vld [vmem:[#allocation2 + $0x28] sm:$0xff]
      %v2446 = vld [vmem:[#allocation2 + $0x30] sm:$0xff]
      %v2447 = vld [vmem:[#allocation2 + $0x38] sm:$0xff]
      %2456 = vrot.lane.b32.xlu0 %v2440, 109
      %v2457 = vpop.permute.xlu0 %2456
      %2458 = vrot.lane.b32.xlu0 %v2441, 109
      %v2459 = vpop.permute.xlu0 %2458
      %2460 = vrot.lane.b32.xlu0 %v2442, 109
      %v2461 = vpop.permute.xlu0 %2460
      %2462 = vrot.lane.b32.xlu0 %v2443, 109
      %v2463 = vpop.permute.xlu0 %2462
      %2464 = vrot.lane.b32.xlu0 %v2444, 109
      %v2465 = vpop.permute.xlu0 %2464
      %2466 = vrot.lane.b32.xlu0 %v2445, 109
      %v2467 = vpop.permute.xlu0 %2466
      %2468 = vrot.lane.b32.xlu0 %v2446, 109
      %v2469 = vpop.permute.xlu0 %2468
      %2470 = vrot.lane.b32.xlu0 %v2447, 109
      %v2471 = vpop.permute.xlu0 %2470
      %v2472 = vsel %vm439, %v2457, %v2459
      %v2473 = vsel %vm439, %v2459, %v2461
      %v2474 = vsel %vm439, %v2461, %v2463
      %v2475 = vsel %vm439, %v2465, %v2467
      %v2476 = vsel %vm439, %v2467, %v2469
      %v2477 = vsel %vm439, %v2469, %v2471
      %2484 = vst [vmem:[#allocation3 + $0xc0] sm:$0xff] %v2472
      %2485 = vst [vmem:[#allocation3 + $0xc8] sm:$0xff] %v2473
      %2486 = vst [vmem:[#allocation3 + $0xd0] sm:$0xff] %v2474
      %2487 = vst [vmem:[#allocation3 + $0xd8] sm:$0xff] %v2475
      %2488 = vst [vmem:[#allocation3 + $0xe0] sm:$0xff] %v2476
      %2489 = vst [vmem:[#allocation3 + $0xe8] sm:$0xff] %v2477
      %v2490 = vld [vmem:[#allocation2] sm:$0xff]
      %v2491 = vld [vmem:[#allocation2 + $0x8] sm:$0xff]
      %v2492 = vld [vmem:[#allocation2 + $0x10] sm:$0xff]
      %v2493 = vld [vmem:[#allocation2 + $0x18] sm:$0xff]
      %v2494 = vld [vmem:[#allocation2 + $0x20] sm:$0xff]
      %v2495 = vld [vmem:[#allocation2 + $0x28] sm:$0xff]
      %v2496 = vld [vmem:[#allocation2 + $0x30] sm:$0xff]
      %v2497 = vld [vmem:[#allocation2 + $0x38] sm:$0xff]
      %2506 = vrot.lane.b32.xlu0 %v2490, 108
      %v2507 = vpop.permute.xlu0 %2506
      %2508 = vrot.lane.b32.xlu0 %v2491, 108
      %v2509 = vpop.permute.xlu0 %2508
      %2510 = vrot.lane.b32.xlu0 %v2492, 108
      %v2511 = vpop.permute.xlu0 %2510
      %2512 = vrot.lane.b32.xlu0 %v2493, 108
      %v2513 = vpop.permute.xlu0 %2512
      %2514 = vrot.lane.b32.xlu0 %v2494, 108
      %v2515 = vpop.permute.xlu0 %2514
      %2516 = vrot.lane.b32.xlu0 %v2495, 108
      %v2517 = vpop.permute.xlu0 %2516
      %2518 = vrot.lane.b32.xlu0 %v2496, 108
      %v2519 = vpop.permute.xlu0 %2518
      %2520 = vrot.lane.b32.xlu0 %v2497, 108
      %v2521 = vpop.permute.xlu0 %2520
      %v2522 = vsel %vm490, %v2507, %v2509
      %v2523 = vsel %vm490, %v2509, %v2511
      %v2524 = vsel %vm490, %v2511, %v2513
      %v2525 = vsel %vm490, %v2515, %v2517
      %v2526 = vsel %vm490, %v2517, %v2519
      %v2527 = vsel %vm490, %v2519, %v2521
      %2534 = vst [vmem:[#allocation3 + $0xf0] sm:$0xff] %v2522
      %2535 = vst [vmem:[#allocation3 + $0xf8] sm:$0xff] %v2523
      %2536 = vst [vmem:[#allocation3 + $0x100] sm:$0xff] %v2524
      %2537 = vst [vmem:[#allocation3 + $0x108] sm:$0xff] %v2525
      %2538 = vst [vmem:[#allocation3 + $0x110] sm:$0xff] %v2526
      %2539 = vst [vmem:[#allocation3 + $0x118] sm:$0xff] %v2527
      %v2540 = vld [vmem:[#allocation2] sm:$0xff]
      %v2541 = vld [vmem:[#allocation2 + $0x8] sm:$0xff]
      %v2542 = vld [vmem:[#allocation2 + $0x10] sm:$0xff]
      %v2543 = vld [vmem:[#allocation2 + $0x18] sm:$0xff]
      %v2544 = vld [vmem:[#allocation2 + $0x20] sm:$0xff]
      %v2545 = vld [vmem:[#allocation2 + $0x28] sm:$0xff]
      %v2546 = vld [vmem:[#allocation2 + $0x30] sm:$0xff]
      %v2547 = vld [vmem:[#allocation2 + $0x38] sm:$0xff]
      %2556 = vrot.lane.b32.xlu0 %v2540, 92
      %v2557 = vpop.permute.xlu0 %2556
      %2558 = vrot.lane.b32.xlu0 %v2541, 92
      %v2559 = vpop.permute.xlu0 %2558
      %2560 = vrot.lane.b32.xlu0 %v2542, 92
      %v2561 = vpop.permute.xlu0 %2560
      %2562 = vrot.lane.b32.xlu0 %v2543, 92
      %v2563 = vpop.permute.xlu0 %2562
      %2564 = vrot.lane.b32.xlu0 %v2544, 92
      %v2565 = vpop.permute.xlu0 %2564
      %2566 = vrot.lane.b32.xlu0 %v2545, 92
      %v2567 = vpop.permute.xlu0 %2566
      %2568 = vrot.lane.b32.xlu0 %v2546, 92
      %v2569 = vpop.permute.xlu0 %2568
      %2570 = vrot.lane.b32.xlu0 %v2547, 92
      %v2571 = vpop.permute.xlu0 %2570
      %v2572 = vsel %vm541, %v2557, %v2559
      %v2573 = vsel %vm541, %v2559, %v2561
      %v2574 = vsel %vm541, %v2561, %v2563
      %v2575 = vsel %vm541, %v2565, %v2567
      %v2576 = vsel %vm541, %v2567, %v2569
      %v2577 = vsel %vm541, %v2569, %v2571
      %2584 = vst [vmem:[#allocation3 + $0x120] sm:$0xff] %v2572
      %2585 = vst [vmem:[#allocation3 + $0x128] sm:$0xff] %v2573
      %2586 = vst [vmem:[#allocation3 + $0x130] sm:$0xff] %v2574
      %2587 = vst [vmem:[#allocation3 + $0x138] sm:$0xff] %v2575
      %2588 = vst [vmem:[#allocation3 + $0x140] sm:$0xff] %v2576
      %2589 = vst [vmem:[#allocation3 + $0x148] sm:$0xff] %v2577
      %v2590 = vld [vmem:[#allocation2] sm:$0xff]
      %v2591 = vld [vmem:[#allocation2 + $0x8] sm:$0xff]
      %v2592 = vld [vmem:[#allocation2 + $0x10] sm:$0xff]
      %v2593 = vld [vmem:[#allocation2 + $0x18] sm:$0xff]
      %v2594 = vld [vmem:[#allocation2 + $0x20] sm:$0xff]
      %v2595 = vld [vmem:[#allocation2 + $0x28] sm:$0xff]
      %v2596 = vld [vmem:[#allocation2 + $0x30] sm:$0xff]
      %v2597 = vld [vmem:[#allocation2 + $0x38] sm:$0xff]
      %2606 = vrot.lane.b32.xlu0 %v2590, 91
      %v2607 = vpop.permute.xlu0 %2606
      %2608 = vrot.lane.b32.xlu0 %v2591, 91
      %v2609 = vpop.permute.xlu0 %2608
      %2610 = vrot.lane.b32.xlu0 %v2592, 91
      %v2611 = vpop.permute.xlu0 %2610
      %2612 = vrot.lane.b32.xlu0 %v2593, 91
      %v2613 = vpop.permute.xlu0 %2612
      %2614 = vrot.lane.b32.xlu0 %v2594, 91
      %v2615 = vpop.permute.xlu0 %2614
      %2616 = vrot.lane.b32.xlu0 %v2595, 91
      %v2617 = vpop.permute.xlu0 %2616
      %2618 = vrot.lane.b32.xlu0 %v2596, 91
      %v2619 = vpop.permute.xlu0 %2618
      %2620 = vrot.lane.b32.xlu0 %v2597, 91
      %v2621 = vpop.permute.xlu0 %2620
      %v2622 = vsel %vm592, %v2607, %v2609
      %v2623 = vsel %vm592, %v2609, %v2611
      %v2624 = vsel %vm592, %v2611, %v2613
      %v2625 = vsel %vm592, %v2615, %v2617
      %v2626 = vsel %vm592, %v2617, %v2619
      %v2627 = vsel %vm592, %v2619, %v2621
      %2634 = vst [vmem:[#allocation3 + $0x150] sm:$0xff] %v2622
      %2635 = vst [vmem:[#allocation3 + $0x158] sm:$0xff] %v2623
      %2636 = vst [vmem:[#allocation3 + $0x160] sm:$0xff] %v2624
      %2637 = vst [vmem:[#allocation3 + $0x168] sm:$0xff] %v2625
      %2638 = vst [vmem:[#allocation3 + $0x170] sm:$0xff] %v2626
      %2639 = vst [vmem:[#allocation3 + $0x178] sm:$0xff] %v2627
      %v2640 = vld [vmem:[#allocation2] sm:$0xff]
      %v2641 = vld [vmem:[#allocation2 + $0x8] sm:$0xff]
      %v2642 = vld [vmem:[#allocation2 + $0x10] sm:$0xff]
      %v2643 = vld [vmem:[#allocation2 + $0x18] sm:$0xff]
      %v2644 = vld [vmem:[#allocation2 + $0x20] sm:$0xff]
      %v2645 = vld [vmem:[#allocation2 + $0x28] sm:$0xff]
      %v2646 = vld [vmem:[#allocation2 + $0x30] sm:$0xff]
      %v2647 = vld [vmem:[#allocation2 + $0x38] sm:$0xff]
      %2656 = vrot.lane.b32.xlu0 %v2640, 90
      %v2657 = vpop.permute.xlu0 %2656
      %2658 = vrot.lane.b32.xlu0 %v2641, 90
      %v2659 = vpop.permute.xlu0 %2658
      %2660 = vrot.lane.b32.xlu0 %v2642, 90
      %v2661 = vpop.permute.xlu0 %2660
      %2662 = vrot.lane.b32.xlu0 %v2643, 90
      %v2663 = vpop.permute.xlu0 %2662
      %2664 = vrot.lane.b32.xlu0 %v2644, 90
      %v2665 = vpop.permute.xlu0 %2664
      %2666 = vrot.lane.b32.xlu0 %v2645, 90
      %v2667 = vpop.permute.xlu0 %2666
      %2668 = vrot.lane.b32.xlu0 %v2646, 90
      %v2669 = vpop.permute.xlu0 %2668
      %2670 = vrot.lane.b32.xlu0 %v2647, 90
      %v2671 = vpop.permute.xlu0 %2670
      %v2672 = vsel %vm643, %v2657, %v2659
      %v2673 = vsel %vm643, %v2659, %v2661
      %v2674 = vsel %vm643, %v2661, %v2663
      %v2675 = vsel %vm643, %v2665, %v2667
      %v2676 = vsel %vm643, %v2667, %v2669
      %v2677 = vsel %vm643, %v2669, %v2671
      %2684 = vst [vmem:[#allocation3 + $0x180] sm:$0xff] %v2672
      %2685 = vst [vmem:[#allocation3 + $0x188] sm:$0xff] %v2673
      %2686 = vst [vmem:[#allocation3 + $0x190] sm:$0xff] %v2674
      %2687 = vst [vmem:[#allocation3 + $0x198] sm:$0xff] %v2675
      %2688 = vst [vmem:[#allocation3 + $0x1a0] sm:$0xff] %v2676
      %2689 = vst [vmem:[#allocation3 + $0x1a8] sm:$0xff] %v2677
      %s2690 = scalar_lea.vmem %s1, 96
      %v2691 = vld [vmem:[%s2690] sm:$0xff]
      %v2692 = vld [vmem:[%s2690 + $0x8] sm:$0xff]
      %v2693 = vld [vmem:[%s2690 + $0x10] sm:$0xff]
      %v2694 = vld [vmem:[%s2690 + $0x18] sm:$0xff]
      %v2695 = vld [vmem:[#allocation3] sm:$0xff]
      %v2696 = vld [vmem:[#allocation3 + $0x8] sm:$0xff]
      %v2697 = vld [vmem:[#allocation3 + $0x10] sm:$0xff]
      %v2698 = vld [vmem:[#allocation3 + $0x18] sm:$0xff]
      %v2699 = vld [vmem:[#allocation3 + $0x20] sm:$0xff]
      %v2700 = vld [vmem:[#allocation3 + $0x28] sm:$0xff]
      %v2701 = vld [vmem:[#allocation3 + $0x30] sm:$0xff]
      %v2702 = vld [vmem:[#allocation3 + $0x38] sm:$0xff]
      %v2703 = vld [vmem:[#allocation3 + $0x40] sm:$0xff]
      %v2704 = vld [vmem:[#allocation3 + $0x48] sm:$0xff]
      %v2705 = vld [vmem:[#allocation3 + $0x50] sm:$0xff]
      %v2706 = vld [vmem:[#allocation3 + $0x58] sm:$0xff]
      %v2707 = vld [vmem:[#allocation3 + $0x60] sm:$0xff]
      %v2708 = vld [vmem:[#allocation3 + $0x68] sm:$0xff]
      %v2709 = vld [vmem:[#allocation3 + $0x70] sm:$0xff]
      %v2710 = vld [vmem:[#allocation3 + $0x78] sm:$0xff]
      %v2711 = vld [vmem:[#allocation3 + $0x80] sm:$0xff]
      %v2712 = vld [vmem:[#allocation3 + $0x88] sm:$0xff]
      %v2713 = vld [vmem:[#allocation3 + $0x90] sm:$0xff]
      %v2714 = vld [vmem:[#allocation3 + $0x98] sm:$0xff]
      %v2715 = vld [vmem:[#allocation3 + $0xa0] sm:$0xff]
      %v2716 = vld [vmem:[#allocation3 + $0xa8] sm:$0xff]
      %v2717 = vld [vmem:[#allocation3 + $0xb0] sm:$0xff]
      %v2718 = vld [vmem:[#allocation3 + $0xb8] sm:$0xff]
      %v2719 = vld [vmem:[#allocation3 + $0xc0] sm:$0xff]
      %v2720 = vld [vmem:[#allocation3 + $0xc8] sm:$0xff]
      %v2721 = vld [vmem:[#allocation3 + $0xd0] sm:$0xff]
      %v2722 = vld [vmem:[#allocation3 + $0xd8] sm:$0xff]
      %v2723 = vld [vmem:[#allocation3 + $0xe0] sm:$0xff]
      %v2724 = vld [vmem:[#allocation3 + $0xe8] sm:$0xff]
      %v2725 = vld [vmem:[#allocation3 + $0xf0] sm:$0xff]
      %v2726 = vld [vmem:[#allocation3 + $0xf8] sm:$0xff]
      %v2727 = vld [vmem:[#allocation3 + $0x100] sm:$0xff]
      %v2728 = vld [vmem:[#allocation3 + $0x108] sm:$0xff]
      %v2729 = vld [vmem:[#allocation3 + $0x110] sm:$0xff]
      %v2730 = vld [vmem:[#allocation3 + $0x118] sm:$0xff]
      %v2731 = vld [vmem:[#allocation3 + $0x120] sm:$0xff]
      %v2732 = vld [vmem:[#allocation3 + $0x128] sm:$0xff]
      %v2733 = vld [vmem:[#allocation3 + $0x130] sm:$0xff]
      %v2734 = vld [vmem:[#allocation3 + $0x138] sm:$0xff]
      %v2735 = vld [vmem:[#allocation3 + $0x140] sm:$0xff]
      %v2736 = vld [vmem:[#allocation3 + $0x148] sm:$0xff]
      %v2737 = vld [vmem:[#allocation3 + $0x150] sm:$0xff]
      %v2738 = vld [vmem:[#allocation3 + $0x158] sm:$0xff]
      %v2739 = vld [vmem:[#allocation3 + $0x160] sm:$0xff]
      %v2740 = vld [vmem:[#allocation3 + $0x168] sm:$0xff]
      %v2741 = vld [vmem:[#allocation3 + $0x170] sm:$0xff]
      %v2742 = vld [vmem:[#allocation3 + $0x178] sm:$0xff]
      %v2743 = vld [vmem:[#allocation3 + $0x180] sm:$0xff]
      %v2744 = vld [vmem:[#allocation3 + $0x188] sm:$0xff]
      %v2745 = vld [vmem:[#allocation3 + $0x190] sm:$0xff]
      %v2746 = vld [vmem:[#allocation3 + $0x198] sm:$0xff]
      %v2747 = vld [vmem:[#allocation3 + $0x1a0] sm:$0xff]
      %v2748 = vld [vmem:[#allocation3 + $0x1a8] sm:$0xff]
      %v2749 = vld [vmem:[#allocation3 + $0x1b0] sm:$0xff]
      %v2750 = vld [vmem:[#allocation3 + $0x1b8] sm:$0xff]
      %v2751 = vld [vmem:[#allocation3 + $0x1c0] sm:$0xff]
      %v2753 = vsel %vm723, %v2692, 0
      %v2756 = vsel %vm723, %v2694, 0
      %2758 = vmatprep.subr.mxu0 %v2696
      %2759 = vmatpush1.msra.mxu0 %v2695
      %2760 = vmatprep.subr.mxu0 %v2699
      %2761 = vmatpush1.msra.mxu0 %v2698
      %2762 = vmatprep.subr.mxu0 %v2702
      %2763 = vmatpush1.msra.mxu0 %v2701
      %2764 = vmatprep.subr.mxu0 %v2705
      %2765 = vmatpush1.msra.mxu0 %v2704
      %2766 = vmatprep.subr.mxu0 %v2708
      %2767 = vmatpush1.msra.mxu0 %v2707
      %2768 = vmatprep.subr.mxu0 %v2711
      %2769 = vmatpush1.msra.mxu0 %v2710
      %2770 = vmatprep.subr.mxu0 %v2714
      %2771 = vmatpush1.msra.mxu0 %v2713
      %2772 = vmatprep.subr.mxu0 %v2717
      %2773 = vmatpush1.msra.mxu0 %v2716
      %2774 = vmatprep.subr.mxu0 %v2720
      %2775 = vmatpush1.msra.mxu0 %v2719
      %2776 = vmatprep.subr.mxu0 %v2723
      %2777 = vmatpush1.msra.mxu0 %v2722
      %2778 = vmatprep.subr.mxu0 %v2726
      %2779 = vmatpush1.msra.mxu0 %v2725
      %2780 = vmatprep.subr.mxu0 %v2729
      %2781 = vmatpush1.msra.mxu0 %v2728
      %2782 = vmatprep.subr.mxu0 %v2732
      %2783 = vmatpush1.msra.mxu0 %v2731
      %2784 = vmatprep.subr.mxu0 %v2735
      %2785 = vmatpush1.msra.mxu0 %v2734
      %2786 = vmatprep.subr.mxu0 %v2738
      %2787 = vmatpush1.msra.mxu0 %v2737
      %2788 = vmatprep.subr.mxu0 %v2741
      %2789 = vmatpush1.msra.mxu0 %v2740
      %2790 = vmatprep.subr.mxu0 %v2744
      %2791 = vmatpush1.msra.mxu0 %v2743
      %2792 = vmatprep.subr.mxu0 %v2747
      %2793 = vmatpush1.msra.mxu0 %v2746
      %2794 = vmatprep.subr.mxu0 %v2750
      %2795 = vmatpush1.msra.mxu0 %v2749
      %2796 = vmatprep.subr.mxu0 0.0
      %2797 = vmatpush1.msra.mxu0 0.0
      %2798 = vmatprep.subr.mxu0 0.0
      %2799 = vmatpush1.msra.mxu0 0.0
      %2800 = vmatprep.subr.mxu0 0.0
      %2801 = vmatpush1.msra.mxu0 0.0
      %2802 = vmatprep.subr.mxu0 0.0
      %2803 = vmatpush1.msra.mxu0 0.0
      %2804 = vmatprep.subr.mxu0 0.0
      %2805 = vmatpush1.msra.mxu0 0.0
      %2806 = vmatprep.subr.mxu0 0.0
      %2807 = vmatpush1.msra.mxu0 0.0
      %2808 = vmatprep.subr.mxu0 0.0
      %2809 = vmatpush1.msra.mxu0 0.0
      %2810 = vmatprep.subr.mxu0 0.0
      %2811 = vmatpush1.msra.mxu0 0.0
      %2812 = vmatprep.subr.mxu0 0.0
      %2813 = vmatpush1.msra.mxu0 0.0
      %2814 = vmatprep.subr.mxu0 0.0
      %2815 = vmatpush1.msra.mxu0 0.0
      %2816 = vmatprep.subr.mxu0 0.0
      %2817 = vmatpush1.msra.mxu0 0.0
      %2818 = vmatprep.subr.mxu0 0.0
      %2819 = vmatpush1.msra.mxu0 0.0
      %2820 = vmatprep.subr.mxu0 0.0
      %2821 = vmatpush1.msra.mxu0 0.0
      %2822 = vmatprep.mubr.f32.mxu0 %v2753
      %2823 = vmatmul.mubr.f32.gmra.mrb[0].mxu0 %v2691
      %v2824 = vpop.f32.mrb[0].mxu0
      %v2825 = vadd.f32 0.0, %v2824
      %v2826 = vpop.f32.mrb[0].mxu0
      %v2827 = vadd.f32 0.0, %v2826
      %2828 = vmatprep.mubr.f32.mxu0 %v2756
      %2829 = vmatmul.mubr.f32.gmra.mrb[0].mxu0 %v2693
      %v2830 = vpop.f32.mrb[0].mxu0
      %v2831 = vadd.f32 0.0, %v2830
      %v2832 = vpop.f32.mrb[0].mxu0
      %v2833 = vadd.f32 0.0, %v2832
      %2834 = vdwg.mxu0
      %2835 = vmatprep.subr.mxu0 0.0
      %2836 = vmatpush1.msra.mxu0 %v2697
      %2837 = vmatprep.subr.mxu0 0.0
      %2838 = vmatpush1.msra.mxu0 %v2700
      %2839 = vmatprep.subr.mxu0 0.0
      %2840 = vmatpush1.msra.mxu0 %v2703
      %2841 = vmatprep.subr.mxu0 0.0
      %2842 = vmatpush1.msra.mxu0 %v2706
      %2843 = vmatprep.subr.mxu0 0.0
      %2844 = vmatpush1.msra.mxu0 %v2709
      %2845 = vmatprep.subr.mxu0 0.0
      %2846 = vmatpush1.msra.mxu0 %v2712
      %2847 = vmatprep.subr.mxu0 0.0
      %2848 = vmatpush1.msra.mxu0 %v2715
      %2849 = vmatprep.subr.mxu0 0.0
      %2850 = vmatpush1.msra.mxu0 %v2718
      %2851 = vmatprep.subr.mxu0 0.0
      %2852 = vmatpush1.msra.mxu0 %v2721
      %2853 = vmatprep.subr.mxu0 0.0
      %2854 = vmatpush1.msra.mxu0 %v2724
      %2855 = vmatprep.subr.mxu0 0.0
      %2856 = vmatpush1.msra.mxu0 %v2727
      %2857 = vmatprep.subr.mxu0 0.0
      %2858 = vmatpush1.msra.mxu0 %v2730
      %2859 = vmatprep.subr.mxu0 0.0
      %2860 = vmatpush1.msra.mxu0 %v2733
      %2861 = vmatprep.subr.mxu0 0.0
      %2862 = vmatpush1.msra.mxu0 %v2736
      %2863 = vmatprep.subr.mxu0 0.0
      %2864 = vmatpush1.msra.mxu0 %v2739
      %2865 = vmatprep.subr.mxu0 0.0
      %2866 = vmatpush1.msra.mxu0 %v2742
      %2867 = vmatprep.subr.mxu0 0.0
      %2868 = vmatpush1.msra.mxu0 %v2745
      %2869 = vmatprep.subr.mxu0 0.0
      %2870 = vmatpush1.msra.mxu0 %v2748
      %2871 = vmatprep.subr.mxu0 0.0
      %2872 = vmatpush1.msra.mxu0 %v2751
      %2873 = vmatprep.subr.mxu0 0.0
      %2874 = vmatpush1.msra.mxu0 0.0
      %2875 = vmatprep.subr.mxu0 0.0
      %2876 = vmatpush1.msra.mxu0 0.0
      %2877 = vmatprep.subr.mxu0 0.0
      %2878 = vmatpush1.msra.mxu0 0.0
      %2879 = vmatprep.subr.mxu0 0.0
      %2880 = vmatpush1.msra.mxu0 0.0
      %2881 = vmatprep.subr.mxu0 0.0
      %2882 = vmatpush1.msra.mxu0 0.0
      %2883 = vmatprep.subr.mxu0 0.0
      %2884 = vmatpush1.msra.mxu0 0.0
      %2885 = vmatprep.subr.mxu0 0.0
      %2886 = vmatpush1.msra.mxu0 0.0
      %2887 = vmatprep.subr.mxu0 0.0
      %2888 = vmatpush1.msra.mxu0 0.0
      %2889 = vmatprep.subr.mxu0 0.0
      %2890 = vmatpush1.msra.mxu0 0.0
      %2891 = vmatprep.subr.mxu0 0.0
      %2892 = vmatpush1.msra.mxu0 0.0
      %2893 = vmatprep.subr.mxu0 0.0
      %2894 = vmatpush1.msra.mxu0 0.0
      %2895 = vmatprep.subr.mxu0 0.0
      %2896 = vmatpush1.msra.mxu0 0.0
      %2897 = vmatprep.subr.mxu0 0.0
      %2898 = vmatpush1.msra.mxu0 0.0
      %2899 = vmatprep.mubr.f32.mxu0 %v2753
      %2900 = vmatmul.mubr.f32.gmra.mrb[0].mxu0 %v2691
      %v2901 = vpop.f32.mrb[0].mxu0
      %v2902 = vadd.f32 0.0, %v2901
      %v2903 = vpop.f32.mrb[0].mxu0
      %2904 = vmatprep.mubr.f32.mxu0 %v2756
      %2905 = vmatmul.mubr.f32.gmra.mrb[0].mxu0 %v2693
      %v2906 = vpop.f32.mrb[0].mxu0
      %v2907 = vadd.f32 0.0, %v2906
      %v2908 = vpop.f32.mrb[0].mxu0
      %2909 = vdwg.mxu0
      %v2910 = vsel %vm239, %v2825, 0.0
      %v2911 = vsel %vm240, %v2827, 0.0
      %v2912 = vsel %vm241, %v2902, 0.0
      %v2913 = vsel %vm239, %v2831, 0.0
      %v2914 = vsel %vm240, %v2833, 0.0
      %v2915 = vsel %vm241, %v2907, 0.0
      %2922 = vrot.lane.b32.xlu0 %v2910, 19
      %v2923 = vpop.permute.xlu0 %2922
      %2924 = vrot.lane.b32.xlu0 %v2911, 19
      %v2925 = vpop.permute.xlu0 %2924
      %2926 = vrot.lane.b32.xlu0 %v2912, 19
      %v2927 = vpop.permute.xlu0 %2926
      %2928 = vrot.lane.b32.xlu0 %v2913, 19
      %v2929 = vpop.permute.xlu0 %2928
      %2930 = vrot.lane.b32.xlu0 %v2914, 19
      %v2931 = vpop.permute.xlu0 %2930
      %2932 = vrot.lane.b32.xlu0 %v2915, 19
      %v2933 = vpop.permute.xlu0 %2932
      %v2934 = vsel %vm202, %v2923, %v2925
      %v2935 = vsel %vm202, %v2925, %v2927
      %v2936 = vsel %vm202, %v2929, %v2931
      %v2937 = vsel %vm202, %v2931, %v2933
      %2946 = vst.msk [vmem:[#allocation2] sm:$0xff] %vm215, %v2923
      %2947 = vst [vmem:[#allocation2 + $0x8] sm:$0xff] %v2934
      %2948 = vst [vmem:[#allocation2 + $0x10] sm:$0xff] %v2935
      %2949 = vst.msk [vmem:[#allocation2 + $0x18] sm:$0xff] %vm202, %v2927
      %2950 = vst.msk [vmem:[#allocation2 + $0x20] sm:$0xff] %vm215, %v2929
      %2951 = vst [vmem:[#allocation2 + $0x28] sm:$0xff] %v2936
      %2952 = vst [vmem:[#allocation2 + $0x30] sm:$0xff] %v2937
      %2953 = vst.msk [vmem:[#allocation2 + $0x38] sm:$0xff] %vm202, %v2933
      %v2954 = vld [vmem:[#allocation2] sm:$0xff]
      %v2955 = vld [vmem:[#allocation2 + $0x8] sm:$0xff]
      %v2956 = vld [vmem:[#allocation2 + $0x10] sm:$0xff]
      %v2957 = vld [vmem:[#allocation2 + $0x20] sm:$0xff]
      %v2958 = vld [vmem:[#allocation2 + $0x28] sm:$0xff]
      %v2959 = vld [vmem:[#allocation2 + $0x30] sm:$0xff]
      %2960 = vst [vmem:[#allocation3] sm:$0xff] %v2954
      %2961 = vst [vmem:[#allocation3 + $0x8] sm:$0xff] %v2955
      %2962 = vst [vmem:[#allocation3 + $0x10] sm:$0xff] %v2956
      %2963 = vst [vmem:[#allocation3 + $0x18] sm:$0xff] %v2957
      %2964 = vst [vmem:[#allocation3 + $0x20] sm:$0xff] %v2958
      %2965 = vst [vmem:[#allocation3 + $0x28] sm:$0xff] %v2959
      %v2966 = vld [vmem:[#allocation2] sm:$0xff]
      %v2967 = vld [vmem:[#allocation2 + $0x8] sm:$0xff]
      %v2968 = vld [vmem:[#allocation2 + $0x10] sm:$0xff]
      %v2969 = vld [vmem:[#allocation2 + $0x18] sm:$0xff]
      %v2970 = vld [vmem:[#allocation2 + $0x20] sm:$0xff]
      %v2971 = vld [vmem:[#allocation2 + $0x28] sm:$0xff]
      %v2972 = vld [vmem:[#allocation2 + $0x30] sm:$0xff]
      %v2973 = vld [vmem:[#allocation2 + $0x38] sm:$0xff]
      %2982 = vrot.lane.b32.xlu0 %v2966, 127
      %v2983 = vpop.permute.xlu0 %2982
      %2984 = vrot.lane.b32.xlu0 %v2967, 127
      %v2985 = vpop.permute.xlu0 %2984
      %2986 = vrot.lane.b32.xlu0 %v2968, 127
      %v2987 = vpop.permute.xlu0 %2986
      %2988 = vrot.lane.b32.xlu0 %v2969, 127
      %v2989 = vpop.permute.xlu0 %2988
      %2990 = vrot.lane.b32.xlu0 %v2970, 127
      %v2991 = vpop.permute.xlu0 %2990
      %2992 = vrot.lane.b32.xlu0 %v2971, 127
      %v2993 = vpop.permute.xlu0 %2992
      %2994 = vrot.lane.b32.xlu0 %v2972, 127
      %v2995 = vpop.permute.xlu0 %2994
      %2996 = vrot.lane.b32.xlu0 %v2973, 127
      %v2997 = vpop.permute.xlu0 %2996
      %v2998 = vsel %vm286, %v2983, %v2985
      %v2999 = vsel %vm286, %v2985, %v2987
      %v3000 = vsel %vm286, %v2987, %v2989
      %v3001 = vsel %vm286, %v2991, %v2993
      %v3002 = vsel %vm286, %v2993, %v2995
      %v3003 = vsel %vm286, %v2995, %v2997
      %3010 = vst [vmem:[#allocation3 + $0x30] sm:$0xff] %v2998
      %3011 = vst [vmem:[#allocation3 + $0x38] sm:$0xff] %v2999
      %3012 = vst [vmem:[#allocation3 + $0x40] sm:$0xff] %v3000
      %3013 = vst [vmem:[#allocation3 + $0x48] sm:$0xff] %v3001
      %3014 = vst [vmem:[#allocation3 + $0x50] sm:$0xff] %v3002
      %3015 = vst [vmem:[#allocation3 + $0x58] sm:$0xff] %v3003
      %v3016 = vld [vmem:[#allocation2] sm:$0xff]
      %v3017 = vld [vmem:[#allocation2 + $0x8] sm:$0xff]
      %v3018 = vld [vmem:[#allocation2 + $0x10] sm:$0xff]
      %v3019 = vld [vmem:[#allocation2 + $0x18] sm:$0xff]
      %v3020 = vld [vmem:[#allocation2 + $0x20] sm:$0xff]
      %v3021 = vld [vmem:[#allocation2 + $0x28] sm:$0xff]
      %v3022 = vld [vmem:[#allocation2 + $0x30] sm:$0xff]
      %v3023 = vld [vmem:[#allocation2 + $0x38] sm:$0xff]
      %3032 = vrot.lane.b32.xlu0 %v3016, 126
      %v3033 = vpop.permute.xlu0 %3032
      %3034 = vrot.lane.b32.xlu0 %v3017, 126
      %v3035 = vpop.permute.xlu0 %3034
      %3036 = vrot.lane.b32.xlu0 %v3018, 126
      %v3037 = vpop.permute.xlu0 %3036
      %3038 = vrot.lane.b32.xlu0 %v3019, 126
      %v3039 = vpop.permute.xlu0 %3038
      %3040 = vrot.lane.b32.xlu0 %v3020, 126
      %v3041 = vpop.permute.xlu0 %3040
      %3042 = vrot.lane.b32.xlu0 %v3021, 126
      %v3043 = vpop.permute.xlu0 %3042
      %3044 = vrot.lane.b32.xlu0 %v3022, 126
      %v3045 = vpop.permute.xlu0 %3044
      %3046 = vrot.lane.b32.xlu0 %v3023, 126
      %v3047 = vpop.permute.xlu0 %3046
      %v3048 = vsel %vm337, %v3033, %v3035
      %v3049 = vsel %vm337, %v3035, %v3037
      %v3050 = vsel %vm337, %v3037, %v3039
      %v3051 = vsel %vm337, %v3041, %v3043
      %v3052 = vsel %vm337, %v3043, %v3045
      %v3053 = vsel %vm337, %v3045, %v3047
      %3060 = vst [vmem:[#allocation3 + $0x60] sm:$0xff] %v3048
      %3061 = vst [vmem:[#allocation3 + $0x68] sm:$0xff] %v3049
      %3062 = vst [vmem:[#allocation3 + $0x70] sm:$0xff] %v3050
      %3063 = vst [vmem:[#allocation3 + $0x78] sm:$0xff] %v3051
      %3064 = vst [vmem:[#allocation3 + $0x80] sm:$0xff] %v3052
      %3065 = vst [vmem:[#allocation3 + $0x88] sm:$0xff] %v3053
      %v3066 = vld [vmem:[#allocation2] sm:$0xff]
      %v3067 = vld [vmem:[#allocation2 + $0x8] sm:$0xff]
      %v3068 = vld [vmem:[#allocation2 + $0x10] sm:$0xff]
      %v3069 = vld [vmem:[#allocation2 + $0x18] sm:$0xff]
      %v3070 = vld [vmem:[#allocation2 + $0x20] sm:$0xff]
      %v3071 = vld [vmem:[#allocation2 + $0x28] sm:$0xff]
      %v3072 = vld [vmem:[#allocation2 + $0x30] sm:$0xff]
      %v3073 = vld [vmem:[#allocation2 + $0x38] sm:$0xff]
      %3082 = vrot.lane.b32.xlu0 %v3066, 110
      %v3083 = vpop.permute.xlu0 %3082
      %3084 = vrot.lane.b32.xlu0 %v3067, 110
      %v3085 = vpop.permute.xlu0 %3084
      %3086 = vrot.lane.b32.xlu0 %v3068, 110
      %v3087 = vpop.permute.xlu0 %3086
      %3088 = vrot.lane.b32.xlu0 %v3069, 110
      %v3089 = vpop.permute.xlu0 %3088
      %3090 = vrot.lane.b32.xlu0 %v3070, 110
      %v3091 = vpop.permute.xlu0 %3090
      %3092 = vrot.lane.b32.xlu0 %v3071, 110
      %v3093 = vpop.permute.xlu0 %3092
      %3094 = vrot.lane.b32.xlu0 %v3072, 110
      %v3095 = vpop.permute.xlu0 %3094
      %3096 = vrot.lane.b32.xlu0 %v3073, 110
      %v3097 = vpop.permute.xlu0 %3096
      %v3098 = vsel %vm388, %v3083, %v3085
      %v3099 = vsel %vm388, %v3085, %v3087
      %v3100 = vsel %vm388, %v3087, %v3089
      %v3101 = vsel %vm388, %v3091, %v3093
      %v3102 = vsel %vm388, %v3093, %v3095
      %v3103 = vsel %vm388, %v3095, %v3097
      %3110 = vst [vmem:[#allocation3 + $0x90] sm:$0xff] %v3098
      %3111 = vst [vmem:[#allocation3 + $0x98] sm:$0xff] %v3099
      %3112 = vst [vmem:[#allocation3 + $0xa0] sm:$0xff] %v3100
      %3113 = vst [vmem:[#allocation3 + $0xa8] sm:$0xff] %v3101
      %3114 = vst [vmem:[#allocation3 + $0xb0] sm:$0xff] %v3102
      %3115 = vst [vmem:[#allocation3 + $0xb8] sm:$0xff] %v3103
      %v3116 = vld [vmem:[#allocation2] sm:$0xff]
      %v3117 = vld [vmem:[#allocation2 + $0x8] sm:$0xff]
      %v3118 = vld [vmem:[#allocation2 + $0x10] sm:$0xff]
      %v3119 = vld [vmem:[#allocation2 + $0x18] sm:$0xff]
      %v3120 = vld [vmem:[#allocation2 + $0x20] sm:$0xff]
      %v3121 = vld [vmem:[#allocation2 + $0x28] sm:$0xff]
      %v3122 = vld [vmem:[#allocation2 + $0x30] sm:$0xff]
      %v3123 = vld [vmem:[#allocation2 + $0x38] sm:$0xff]
      %3132 = vrot.lane.b32.xlu0 %v3116, 109
      %v3133 = vpop.permute.xlu0 %3132
      %3134 = vrot.lane.b32.xlu0 %v3117, 109
      %v3135 = vpop.permute.xlu0 %3134
      %3136 = vrot.lane.b32.xlu0 %v3118, 109
      %v3137 = vpop.permute.xlu0 %3136
      %3138 = vrot.lane.b32.xlu0 %v3119, 109
      %v3139 = vpop.permute.xlu0 %3138
      %3140 = vrot.lane.b32.xlu0 %v3120, 109
      %v3141 = vpop.permute.xlu0 %3140
      %3142 = vrot.lane.b32.xlu0 %v3121, 109
      %v3143 = vpop.permute.xlu0 %3142
      %3144 = vrot.lane.b32.xlu0 %v3122, 109
      %v3145 = vpop.permute.xlu0 %3144
      %3146 = vrot.lane.b32.xlu0 %v3123, 109
      %v3147 = vpop.permute.xlu0 %3146
      %v3148 = vsel %vm439, %v3133, %v3135
      %v3149 = vsel %vm439, %v3135, %v3137
      %v3150 = vsel %vm439, %v3137, %v3139
      %v3151 = vsel %vm439, %v3141, %v3143
      %v3152 = vsel %vm439, %v3143, %v3145
      %v3153 = vsel %vm439, %v3145, %v3147
      %3160 = vst [vmem:[#allocation3 + $0xc0] sm:$0xff] %v3148
      %3161 = vst [vmem:[#allocation3 + $0xc8] sm:$0xff] %v3149
      %3162 = vst [vmem:[#allocation3 + $0xd0] sm:$0xff] %v3150
      %3163 = vst [vmem:[#allocation3 + $0xd8] sm:$0xff] %v3151
      %3164 = vst [vmem:[#allocation3 + $0xe0] sm:$0xff] %v3152
      %3165 = vst [vmem:[#allocation3 + $0xe8] sm:$0xff] %v3153
      %v3166 = vld [vmem:[#allocation2] sm:$0xff]
      %v3167 = vld [vmem:[#allocation2 + $0x8] sm:$0xff]
      %v3168 = vld [vmem:[#allocation2 + $0x10] sm:$0xff]
      %v3169 = vld [vmem:[#allocation2 + $0x18] sm:$0xff]
      %v3170 = vld [vmem:[#allocation2 + $0x20] sm:$0xff]
      %v3171 = vld [vmem:[#allocation2 + $0x28] sm:$0xff]
      %v3172 = vld [vmem:[#allocation2 + $0x30] sm:$0xff]
      %v3173 = vld [vmem:[#allocation2 + $0x38] sm:$0xff]
      %3182 = vrot.lane.b32.xlu0 %v3166, 108
      %v3183 = vpop.permute.xlu0 %3182
      %3184 = vrot.lane.b32.xlu0 %v3167, 108
      %v3185 = vpop.permute.xlu0 %3184
      %3186 = vrot.lane.b32.xlu0 %v3168, 108
      %v3187 = vpop.permute.xlu0 %3186
      %3188 = vrot.lane.b32.xlu0 %v3169, 108
      %v3189 = vpop.permute.xlu0 %3188
      %3190 = vrot.lane.b32.xlu0 %v3170, 108
      %v3191 = vpop.permute.xlu0 %3190
      %3192 = vrot.lane.b32.xlu0 %v3171, 108
      %v3193 = vpop.permute.xlu0 %3192
      %3194 = vrot.lane.b32.xlu0 %v3172, 108
      %v3195 = vpop.permute.xlu0 %3194
      %3196 = vrot.lane.b32.xlu0 %v3173, 108
      %v3197 = vpop.permute.xlu0 %3196
      %v3198 = vsel %vm490, %v3183, %v3185
      %v3199 = vsel %vm490, %v3185, %v3187
      %v3200 = vsel %vm490, %v3187, %v3189
      %v3201 = vsel %vm490, %v3191, %v3193
      %v3202 = vsel %vm490, %v3193, %v3195
      %v3203 = vsel %vm490, %v3195, %v3197
      %3210 = vst [vmem:[#allocation3 + $0xf0] sm:$0xff] %v3198
      %3211 = vst [vmem:[#allocation3 + $0xf8] sm:$0xff] %v3199
      %3212 = vst [vmem:[#allocation3 + $0x100] sm:$0xff] %v3200
      %3213 = vst [vmem:[#allocation3 + $0x108] sm:$0xff] %v3201
      %3214 = vst [vmem:[#allocation3 + $0x110] sm:$0xff] %v3202
      %3215 = vst [vmem:[#allocation3 + $0x118] sm:$0xff] %v3203
      %v3216 = vld [vmem:[#allocation2] sm:$0xff]
      %v3217 = vld [vmem:[#allocation2 + $0x8] sm:$0xff]
      %v3218 = vld [vmem:[#allocation2 + $0x10] sm:$0xff]
      %v3219 = vld [vmem:[#allocation2 + $0x18] sm:$0xff]
      %v3220 = vld [vmem:[#allocation2 + $0x20] sm:$0xff]
      %v3221 = vld [vmem:[#allocation2 + $0x28] sm:$0xff]
      %v3222 = vld [vmem:[#allocation2 + $0x30] sm:$0xff]
      %v3223 = vld [vmem:[#allocation2 + $0x38] sm:$0xff]
      %3232 = vrot.lane.b32.xlu0 %v3216, 92
      %v3233 = vpop.permute.xlu0 %3232
      %3234 = vrot.lane.b32.xlu0 %v3217, 92
      %v3235 = vpop.permute.xlu0 %3234
      %3236 = vrot.lane.b32.xlu0 %v3218, 92
      %v3237 = vpop.permute.xlu0 %3236
      %3238 = vrot.lane.b32.xlu0 %v3219, 92
      %v3239 = vpop.permute.xlu0 %3238
      %3240 = vrot.lane.b32.xlu0 %v3220, 92
      %v3241 = vpop.permute.xlu0 %3240
      %3242 = vrot.lane.b32.xlu0 %v3221, 92
      %v3243 = vpop.permute.xlu0 %3242
      %3244 = vrot.lane.b32.xlu0 %v3222, 92
      %v3245 = vpop.permute.xlu0 %3244
      %3246 = vrot.lane.b32.xlu0 %v3223, 92
      %v3247 = vpop.permute.xlu0 %3246
      %v3248 = vsel %vm541, %v3233, %v3235
      %v3249 = vsel %vm541, %v3235, %v3237
      %v3250 = vsel %vm541, %v3237, %v3239
      %v3251 = vsel %vm541, %v3241, %v3243
      %v3252 = vsel %vm541, %v3243, %v3245
      %v3253 = vsel %vm541, %v3245, %v3247
      %3260 = vst [vmem:[#allocation3 + $0x120] sm:$0xff] %v3248
      %3261 = vst [vmem:[#allocation3 + $0x128] sm:$0xff] %v3249
      %3262 = vst [vmem:[#allocation3 + $0x130] sm:$0xff] %v3250
      %3263 = vst [vmem:[#allocation3 + $0x138] sm:$0xff] %v3251
      %3264 = vst [vmem:[#allocation3 + $0x140] sm:$0xff] %v3252
      %3265 = vst [vmem:[#allocation3 + $0x148] sm:$0xff] %v3253
      %v3266 = vld [vmem:[#allocation2] sm:$0xff]
      %v3267 = vld [vmem:[#allocation2 + $0x8] sm:$0xff]
      %v3268 = vld [vmem:[#allocation2 + $0x10] sm:$0xff]
      %v3269 = vld [vmem:[#allocation2 + $0x18] sm:$0xff]
      %v3270 = vld [vmem:[#allocation2 + $0x20] sm:$0xff]
      %v3271 = vld [vmem:[#allocation2 + $0x28] sm:$0xff]
      %v3272 = vld [vmem:[#allocation2 + $0x30] sm:$0xff]
      %v3273 = vld [vmem:[#allocation2 + $0x38] sm:$0xff]
      %3282 = vrot.lane.b32.xlu0 %v3266, 91
      %v3283 = vpop.permute.xlu0 %3282
      %3284 = vrot.lane.b32.xlu0 %v3267, 91
      %v3285 = vpop.permute.xlu0 %3284
      %3286 = vrot.lane.b32.xlu0 %v3268, 91
      %v3287 = vpop.permute.xlu0 %3286
      %3288 = vrot.lane.b32.xlu0 %v3269, 91
      %v3289 = vpop.permute.xlu0 %3288
      %3290 = vrot.lane.b32.xlu0 %v3270, 91
      %v3291 = vpop.permute.xlu0 %3290
      %3292 = vrot.lane.b32.xlu0 %v3271, 91
      %v3293 = vpop.permute.xlu0 %3292
      %3294 = vrot.lane.b32.xlu0 %v3272, 91
      %v3295 = vpop.permute.xlu0 %3294
      %3296 = vrot.lane.b32.xlu0 %v3273, 91
      %v3297 = vpop.permute.xlu0 %3296
      %v3298 = vsel %vm592, %v3283, %v3285
      %v3299 = vsel %vm592, %v3285, %v3287
      %v3300 = vsel %vm592, %v3287, %v3289
      %v3301 = vsel %vm592, %v3291, %v3293
      %v3302 = vsel %vm592, %v3293, %v3295
      %v3303 = vsel %vm592, %v3295, %v3297
      %3310 = vst [vmem:[#allocation3 + $0x150] sm:$0xff] %v3298
      %3311 = vst [vmem:[#allocation3 + $0x158] sm:$0xff] %v3299
      %3312 = vst [vmem:[#allocation3 + $0x160] sm:$0xff] %v3300
      %3313 = vst [vmem:[#allocation3 + $0x168] sm:$0xff] %v3301
      %3314 = vst [vmem:[#allocation3 + $0x170] sm:$0xff] %v3302
      %3315 = vst [vmem:[#allocation3 + $0x178] sm:$0xff] %v3303
      %v3316 = vld [vmem:[#allocation2] sm:$0xff]
      %v3317 = vld [vmem:[#allocation2 + $0x8] sm:$0xff]
      %v3318 = vld [vmem:[#allocation2 + $0x10] sm:$0xff]
      %v3319 = vld [vmem:[#allocation2 + $0x18] sm:$0xff]
      %v3320 = vld [vmem:[#allocation2 + $0x20] sm:$0xff]
      %v3321 = vld [vmem:[#allocation2 + $0x28] sm:$0xff]
      %v3322 = vld [vmem:[#allocation2 + $0x30] sm:$0xff]
      %v3323 = vld [vmem:[#allocation2 + $0x38] sm:$0xff]
      %3332 = vrot.lane.b32.xlu0 %v3316, 90
      %v3333 = vpop.permute.xlu0 %3332
      %3334 = vrot.lane.b32.xlu0 %v3317, 90
      %v3335 = vpop.permute.xlu0 %3334
      %3336 = vrot.lane.b32.xlu0 %v3318, 90
      %v3337 = vpop.permute.xlu0 %3336
      %3338 = vrot.lane.b32.xlu0 %v3319, 90
      %v3339 = vpop.permute.xlu0 %3338
      %3340 = vrot.lane.b32.xlu0 %v3320, 90
      %v3341 = vpop.permute.xlu0 %3340
      %3342 = vrot.lane.b32.xlu0 %v3321, 90
      %v3343 = vpop.permute.xlu0 %3342
      %3344 = vrot.lane.b32.xlu0 %v3322, 90
      %v3345 = vpop.permute.xlu0 %3344
      %3346 = vrot.lane.b32.xlu0 %v3323, 90
      %v3347 = vpop.permute.xlu0 %3346
      %v3348 = vsel %vm643, %v3333, %v3335
      %v3349 = vsel %vm643, %v3335, %v3337
      %v3350 = vsel %vm643, %v3337, %v3339
      %v3351 = vsel %vm643, %v3341, %v3343
      %v3352 = vsel %vm643, %v3343, %v3345
      %v3353 = vsel %vm643, %v3345, %v3347
      %3360 = vst [vmem:[#allocation3 + $0x180] sm:$0xff] %v3348
      %3361 = vst [vmem:[#allocation3 + $0x188] sm:$0xff] %v3349
      %3362 = vst [vmem:[#allocation3 + $0x190] sm:$0xff] %v3350
      %3363 = vst [vmem:[#allocation3 + $0x198] sm:$0xff] %v3351
      %3364 = vst [vmem:[#allocation3 + $0x1a0] sm:$0xff] %v3352
      %3365 = vst [vmem:[#allocation3 + $0x1a8] sm:$0xff] %v3353
      %s3366 = scalar_lea.vmem %s1, 128
      %v3367 = vld [vmem:[%s3366] sm:$0xff]
      %v3368 = vld [vmem:[%s3366 + $0x8] sm:$0xff]
      %v3369 = vld [vmem:[%s3366 + $0x10] sm:$0xff]
      %v3370 = vld [vmem:[%s3366 + $0x18] sm:$0xff]
      %v3371 = vld [vmem:[#allocation3] sm:$0xff]
      %v3372 = vld [vmem:[#allocation3 + $0x8] sm:$0xff]
      %v3373 = vld [vmem:[#allocation3 + $0x10] sm:$0xff]
      %v3374 = vld [vmem:[#allocation3 + $0x18] sm:$0xff]
      %v3375 = vld [vmem:[#allocation3 + $0x20] sm:$0xff]
      %v3376 = vld [vmem:[#allocation3 + $0x28] sm:$0xff]
      %v3377 = vld [vmem:[#allocation3 + $0x30] sm:$0xff]
      %v3378 = vld [vmem:[#allocation3 + $0x38] sm:$0xff]
      %v3379 = vld [vmem:[#allocation3 + $0x40] sm:$0xff]
      %v3380 = vld [vmem:[#allocation3 + $0x48] sm:$0xff]
      %v3381 = vld [vmem:[#allocation3 + $0x50] sm:$0xff]
      %v3382 = vld [vmem:[#allocation3 + $0x58] sm:$0xff]
      %v3383 = vld [vmem:[#allocation3 + $0x60] sm:$0xff]
      %v3384 = vld [vmem:[#allocation3 + $0x68] sm:$0xff]
      %v3385 = vld [vmem:[#allocation3 + $0x70] sm:$0xff]
      %v3386 = vld [vmem:[#allocation3 + $0x78] sm:$0xff]
      %v3387 = vld [vmem:[#allocation3 + $0x80] sm:$0xff]
      %v3388 = vld [vmem:[#allocation3 + $0x88] sm:$0xff]
      %v3389 = vld [vmem:[#allocation3 + $0x90] sm:$0xff]
      %v3390 = vld [vmem:[#allocation3 + $0x98] sm:$0xff]
      %v3391 = vld [vmem:[#allocation3 + $0xa0] sm:$0xff]
      %v3392 = vld [vmem:[#allocation3 + $0xa8] sm:$0xff]
      %v3393 = vld [vmem:[#allocation3 + $0xb0] sm:$0xff]
      %v3394 = vld [vmem:[#allocation3 + $0xb8] sm:$0xff]
      %v3395 = vld [vmem:[#allocation3 + $0xc0] sm:$0xff]
      %v3396 = vld [vmem:[#allocation3 + $0xc8] sm:$0xff]
      %v3397 = vld [vmem:[#allocation3 + $0xd0] sm:$0xff]
      %v3398 = vld [vmem:[#allocation3 + $0xd8] sm:$0xff]
      %v3399 = vld [vmem:[#allocation3 + $0xe0] sm:$0xff]
      %v3400 = vld [vmem:[#allocation3 + $0xe8] sm:$0xff]
      %v3401 = vld [vmem:[#allocation3 + $0xf0] sm:$0xff]
      %v3402 = vld [vmem:[#allocation3 + $0xf8] sm:$0xff]
      %v3403 = vld [vmem:[#allocation3 + $0x100] sm:$0xff]
      %v3404 = vld [vmem:[#allocation3 + $0x108] sm:$0xff]
      %v3405 = vld [vmem:[#allocation3 + $0x110] sm:$0xff]
      %v3406 = vld [vmem:[#allocation3 + $0x118] sm:$0xff]
      %v3407 = vld [vmem:[#allocation3 + $0x120] sm:$0xff]
      %v3408 = vld [vmem:[#allocation3 + $0x128] sm:$0xff]
      %v3409 = vld [vmem:[#allocation3 + $0x130] sm:$0xff]
      %v3410 = vld [vmem:[#allocation3 + $0x138] sm:$0xff]
      %v3411 = vld [vmem:[#allocation3 + $0x140] sm:$0xff]
      %v3412 = vld [vmem:[#allocation3 + $0x148] sm:$0xff]
      %v3413 = vld [vmem:[#allocation3 + $0x150] sm:$0xff]
      %v3414 = vld [vmem:[#allocation3 + $0x158] sm:$0xff]
      %v3415 = vld [vmem:[#allocation3 + $0x160] sm:$0xff]
      %v3416 = vld [vmem:[#allocation3 + $0x168] sm:$0xff]
      %v3417 = vld [vmem:[#allocation3 + $0x170] sm:$0xff]
      %v3418 = vld [vmem:[#allocation3 + $0x178] sm:$0xff]
      %v3419 = vld [vmem:[#allocation3 + $0x180] sm:$0xff]
      %v3420 = vld [vmem:[#allocation3 + $0x188] sm:$0xff]
      %v3421 = vld [vmem:[#allocation3 + $0x190] sm:$0xff]
      %v3422 = vld [vmem:[#allocation3 + $0x198] sm:$0xff]
      %v3423 = vld [vmem:[#allocation3 + $0x1a0] sm:$0xff]
      %v3424 = vld [vmem:[#allocation3 + $0x1a8] sm:$0xff]
      %v3425 = vld [vmem:[#allocation3 + $0x1b0] sm:$0xff]
      %v3426 = vld [vmem:[#allocation3 + $0x1b8] sm:$0xff]
      %v3427 = vld [vmem:[#allocation3 + $0x1c0] sm:$0xff]
      %v3429 = vsel %vm723, %v3368, 0
      %v3432 = vsel %vm723, %v3370, 0
      %3434 = vmatprep.subr.mxu0 %v3372
      %3435 = vmatpush1.msra.mxu0 %v3371
      %3436 = vmatprep.subr.mxu0 %v3375
      %3437 = vmatpush1.msra.mxu0 %v3374
      %3438 = vmatprep.subr.mxu0 %v3378
      %3439 = vmatpush1.msra.mxu0 %v3377
      %3440 = vmatprep.subr.mxu0 %v3381
      %3441 = vmatpush1.msra.mxu0 %v3380
      %3442 = vmatprep.subr.mxu0 %v3384
      %3443 = vmatpush1.msra.mxu0 %v3383
      %3444 = vmatprep.subr.mxu0 %v3387
      %3445 = vmatpush1.msra.mxu0 %v3386
      %3446 = vmatprep.subr.mxu0 %v3390
      %3447 = vmatpush1.msra.mxu0 %v3389
      %3448 = vmatprep.subr.mxu0 %v3393
      %3449 = vmatpush1.msra.mxu0 %v3392
      %3450 = vmatprep.subr.mxu0 %v3396
      %3451 = vmatpush1.msra.mxu0 %v3395
      %3452 = vmatprep.subr.mxu0 %v3399
      %3453 = vmatpush1.msra.mxu0 %v3398
      %3454 = vmatprep.subr.mxu0 %v3402
      %3455 = vmatpush1.msra.mxu0 %v3401
      %3456 = vmatprep.subr.mxu0 %v3405
      %3457 = vmatpush1.msra.mxu0 %v3404
      %3458 = vmatprep.subr.mxu0 %v3408
      %3459 = vmatpush1.msra.mxu0 %v3407
      %3460 = vmatprep.subr.mxu0 %v3411
      %3461 = vmatpush1.msra.mxu0 %v3410
      %3462 = vmatprep.subr.mxu0 %v3414
      %3463 = vmatpush1.msra.mxu0 %v3413
      %3464 = vmatprep.subr.mxu0 %v3417
      %3465 = vmatpush1.msra.mxu0 %v3416
      %3466 = vmatprep.subr.mxu0 %v3420
      %3467 = vmatpush1.msra.mxu0 %v3419
      %3468 = vmatprep.subr.mxu0 %v3423
      %3469 = vmatpush1.msra.mxu0 %v3422
      %3470 = vmatprep.subr.mxu0 %v3426
      %3471 = vmatpush1.msra.mxu0 %v3425
      %3472 = vmatprep.subr.mxu0 0.0
      %3473 = vmatpush1.msra.mxu0 0.0
      %3474 = vmatprep.subr.mxu0 0.0
      %3475 = vmatpush1.msra.mxu0 0.0
      %3476 = vmatprep.subr.mxu0 0.0
      %3477 = vmatpush1.msra.mxu0 0.0
      %3478 = vmatprep.subr.mxu0 0.0
      %3479 = vmatpush1.msra.mxu0 0.0
      %3480 = vmatprep.subr.mxu0 0.0
      %3481 = vmatpush1.msra.mxu0 0.0
      %3482 = vmatprep.subr.mxu0 0.0
      %3483 = vmatpush1.msra.mxu0 0.0
      %3484 = vmatprep.subr.mxu0 0.0
      %3485 = vmatpush1.msra.mxu0 0.0
      %3486 = vmatprep.subr.mxu0 0.0
      %3487 = vmatpush1.msra.mxu0 0.0
      %3488 = vmatprep.subr.mxu0 0.0
      %3489 = vmatpush1.msra.mxu0 0.0
      %3490 = vmatprep.subr.mxu0 0.0
      %3491 = vmatpush1.msra.mxu0 0.0
      %3492 = vmatprep.subr.mxu0 0.0
      %3493 = vmatpush1.msra.mxu0 0.0
      %3494 = vmatprep.subr.mxu0 0.0
      %3495 = vmatpush1.msra.mxu0 0.0
      %3496 = vmatprep.subr.mxu0 0.0
      %3497 = vmatpush1.msra.mxu0 0.0
      %3498 = vmatprep.mubr.f32.mxu0 %v3429
      %3499 = vmatmul.mubr.f32.gmra.mrb[0].mxu0 %v3367
      %v3500 = vpop.f32.mrb[0].mxu0
      %v3501 = vadd.f32 0.0, %v3500
      %v3502 = vpop.f32.mrb[0].mxu0
      %v3503 = vadd.f32 0.0, %v3502
      %3504 = vmatprep.mubr.f32.mxu0 %v3432
      %3505 = vmatmul.mubr.f32.gmra.mrb[0].mxu0 %v3369
      %v3506 = vpop.f32.mrb[0].mxu0
      %v3507 = vadd.f32 0.0, %v3506
      %v3508 = vpop.f32.mrb[0].mxu0
      %v3509 = vadd.f32 0.0, %v3508
      %3510 = vdwg.mxu0
      %3511 = vmatprep.subr.mxu0 0.0
      %3512 = vmatpush1.msra.mxu0 %v3373
      %3513 = vmatprep.subr.mxu0 0.0
      %3514 = vmatpush1.msra.mxu0 %v3376
      %3515 = vmatprep.subr.mxu0 0.0
      %3516 = vmatpush1.msra.mxu0 %v3379
      %3517 = vmatprep.subr.mxu0 0.0
      %3518 = vmatpush1.msra.mxu0 %v3382
      %3519 = vmatprep.subr.mxu0 0.0
      %3520 = vmatpush1.msra.mxu0 %v3385
      %3521 = vmatprep.subr.mxu0 0.0
      %3522 = vmatpush1.msra.mxu0 %v3388
      %3523 = vmatprep.subr.mxu0 0.0
      %3524 = vmatpush1.msra.mxu0 %v3391
      %3525 = vmatprep.subr.mxu0 0.0
      %3526 = vmatpush1.msra.mxu0 %v3394
      %3527 = vmatprep.subr.mxu0 0.0
      %3528 = vmatpush1.msra.mxu0 %v3397
      %3529 = vmatprep.subr.mxu0 0.0
      %3530 = vmatpush1.msra.mxu0 %v3400
      %3531 = vmatprep.subr.mxu0 0.0
      %3532 = vmatpush1.msra.mxu0 %v3403
      %3533 = vmatprep.subr.mxu0 0.0
      %3534 = vmatpush1.msra.mxu0 %v3406
      %3535 = vmatprep.subr.mxu0 0.0
      %3536 = vmatpush1.msra.mxu0 %v3409
      %3537 = vmatprep.subr.mxu0 0.0
      %3538 = vmatpush1.msra.mxu0 %v3412
      %3539 = vmatprep.subr.mxu0 0.0
      %3540 = vmatpush1.msra.mxu0 %v3415
      %3541 = vmatprep.subr.mxu0 0.0
      %3542 = vmatpush1.msra.mxu0 %v3418
      %3543 = vmatprep.subr.mxu0 0.0
      %3544 = vmatpush1.msra.mxu0 %v3421
      %3545 = vmatprep.subr.mxu0 0.0
      %3546 = vmatpush1.msra.mxu0 %v3424
      %3547 = vmatprep.subr.mxu0 0.0
      %3548 = vmatpush1.msra.mxu0 %v3427
      %3549 = vmatprep.subr.mxu0 0.0
      %3550 = vmatpush1.msra.mxu0 0.0
      %3551 = vmatprep.subr.mxu0 0.0
      %3552 = vmatpush1.msra.mxu0 0.0
      %3553 = vmatprep.subr.mxu0 0.0
      %3554 = vmatpush1.msra.mxu0 0.0
      %3555 = vmatprep.subr.mxu0 0.0
      %3556 = vmatpush1.msra.mxu0 0.0
      %3557 = vmatprep.subr.mxu0 0.0
      %3558 = vmatpush1.msra.mxu0 0.0
      %3559 = vmatprep.subr.mxu0 0.0
      %3560 = vmatpush1.msra.mxu0 0.0
      %3561 = vmatprep.subr.mxu0 0.0
      %3562 = vmatpush1.msra.mxu0 0.0
      %3563 = vmatprep.subr.mxu0 0.0
      %3564 = vmatpush1.msra.mxu0 0.0
      %3565 = vmatprep.subr.mxu0 0.0
      %3566 = vmatpush1.msra.mxu0 0.0
      %3567 = vmatprep.subr.mxu0 0.0
      %3568 = vmatpush1.msra.mxu0 0.0
      %3569 = vmatprep.subr.mxu0 0.0
      %3570 = vmatpush1.msra.mxu0 0.0
      %3571 = vmatprep.subr.mxu0 0.0
      %3572 = vmatpush1.msra.mxu0 0.0
      %3573 = vmatprep.subr.mxu0 0.0
      %3574 = vmatpush1.msra.mxu0 0.0
      %3575 = vmatprep.mubr.f32.mxu0 %v3429
      %3576 = vmatmul.mubr.f32.gmra.mrb[0].mxu0 %v3367
      %v3577 = vpop.f32.mrb[0].mxu0
      %v3578 = vadd.f32 0.0, %v3577
      %v3579 = vpop.f32.mrb[0].mxu0
      %3580 = vmatprep.mubr.f32.mxu0 %v3432
      %3581 = vmatmul.mubr.f32.gmra.mrb[0].mxu0 %v3369
      %v3582 = vpop.f32.mrb[0].mxu0
      %v3583 = vadd.f32 0.0, %v3582
      %v3584 = vpop.f32.mrb[0].mxu0
      %3585 = vdwg.mxu0
      %v3586 = vsel %vm239, %v3501, 0.0
      %v3587 = vsel %vm240, %v3503, 0.0
      %v3588 = vsel %vm241, %v3578, 0.0
      %v3589 = vsel %vm239, %v3507, 0.0
      %v3590 = vsel %vm240, %v3509, 0.0
      %v3591 = vsel %vm241, %v3583, 0.0
      %v3592 = vld [vmem:[%s165] sm:$0xff]
      %v3593 = vld [vmem:[%s165 + $0x8] sm:$0xff]
      %v3594 = vld [vmem:[%s165 + $0x10] sm:$0xff]
      %v3595 = vld [vmem:[%s165 + $0x18] sm:$0xff]
      %v3596 = vld [vmem:[%s165 + $0x20] sm:$0xff]
      %v3597 = vld [vmem:[%s165 + $0x28] sm:$0xff]
      %v3598 = vadd.f32 %v3586, %v3592
      %v3599 = vadd.f32 %v3587, %v3593
      %v3600 = vadd.f32 %v3588, %v3594
      %v3601 = vadd.f32 %v3589, %v3595
      %v3602 = vadd.f32 %v3590, %v3596
      %v3603 = vadd.f32 %v3591, %v3597
      %v3604 = vmax.f32 %v3598, 0.0
      %v3605 = vmax.f32 %v3599, 0.0
      %v3606 = vmax.f32 %v3600, 0.0
      %v3607 = vmax.f32 %v3601, 0.0
      %v3608 = vmax.f32 %v3602, 0.0
      %v3609 = vmax.f32 %v3603, 0.0
      %3610 = vst [vmem:[%s170] sm:$0xff] %v3604
      %3611 = vst [vmem:[%s170 + $0x8] sm:$0xff] %v3605
      %3612 = vst [vmem:[%s170 + $0x10] sm:$0xff] %v3606
      %3613 = vst [vmem:[%s170 + $0x18] sm:$0xff] %v3607
      %3614 = vst [vmem:[%s170 + $0x20] sm:$0xff] %v3608
      %3615 = vst [vmem:[%s170 + $0x28] sm:$0xff] %v3609
      %p3616 = scmp.lt.s32.totalorder %s14, 1
      %s3617 = scalar_select %p3616, %s14, 1
      %s3618 = smul.addr %s3617, 6
      %s3619 = smul.addr %s3618, 8
      %s3620 = scalar_lea.vmem %s3, %s3619
      // Predicated region
      $region33: #{model_forward.1} parent=31 // pred_check
        %p3621 = pneg %p100
      $region34: #{model_forward.1} parent=31 // pred_check_branch
        %3623 = sbr.rel (%p3621) target = $region36
      $region35: #{model_forward.1} parent=31 // pred_region
        _
      $region36: #{model_forward.1} parent=31 // pred_fallthru
        _
    $region32: #{model_forward.1} parent=5 // pred_fallthru
      _
    %p3624 = scmp.le.s32.totalorder 2, %s9
    // Predicated region
    $region37: #{model_forward.1} parent=5 // pred_check
      %p3625 = pneg %p3624
    $region38: #{model_forward.1} parent=5 // pred_check_branch
      %3627 = sbr.rel (%p3625) target = $region40
    $region39: #{model_forward.1} parent=5 // pred_region
      %s3628 = ssub.s32 %s9, 2
      // Predicated region
      $region41: #{model_forward.1} parent=39 // pred_check
        %p3629 = pneg %p106
      $region42: #{model_forward.1} parent=39 // pred_check_branch
        %3631 = sbr.rel (%p3629) target = $region44
      $region43: #{model_forward.1} parent=39 // pred_region
        %p3632 = scmp.lt.s32.totalorder %s15, 1
        %s3633 = scalar_select %p3632, %s15, 1
        %s3634 = smul.addr %s3633, 6
        %s3635 = smul.addr %s3634, 8
        %s3636 = scalar_lea.vmem %s3, %s3635
      $region44: #{model_forward.1} parent=39 // pred_fallthru
        _
    $region40: #{model_forward.1} parent=5 // pred_fallthru
      _
  $region6: #{model_forward.1} parent=0 // loop_footer
    %s13 = sadd.s32 1, %s9
  $region7: #{model_forward.1} parent=0 // loop_footer_branch
    %8 = sbr.rel target = $region3
  $region8: #{model_forward.1} parent=0 // loop_exit
    _

</llo_original>
